<compile_context>
chip_gen: v7x
topology: tpu7x:2x2x1
jax: 0.10.0
libtpu: 0.0.40
codegen_flags: <defaults>
</compile_context>

<pallas_src>
import math

import jax
import jax.numpy as jnp
from jax.experimental import pallas as pl
from jax.experimental.pallas import tpu as pltpu


# ----------------------------------------------------------------------------
# Fused kernel: conv1+BN1+ReLU -> grouped conv2(3x3)+BN2+ReLU -> conv3+BN3
#               -> SE gate -> shortcut -> residual add -> ReLU.
# One batch image per grid step; activations are laid out (C, H*W).
# ----------------------------------------------------------------------------
def _make_fused_kernel(H, W, halo, conv_shortcut):
    P = H * W

    def kernel(x_ref, w1_ref, b1_ref, w2_ref, b2_ref, w3_ref, b3_ref,
               wse1_ref, bse1_ref, wse2_ref, bse2_ref, *rest):
        if conv_shortcut:
            wsc_ref, bsc_ref, o_ref, u1p_ref = rest
        else:
            o_ref, u1p_ref = rest

        Cmid = w1_ref.shape[0]
        C4 = w3_ref.shape[0]

        # ---- conv1 (1x1) + folded BN1 + ReLU --------------------------------
        x2 = x_ref[0].astype(jnp.bfloat16)                       # (Cin, P)
        u1 = jnp.dot(w1_ref[...], x2, preferred_element_type=jnp.float32)
        u1 = jnp.maximum(u1 + b1_ref[...], 0.0)                  # (Cmid, P) f32

        # ---- stash conv1 output in a zero-halo VMEM scratch -----------------
        # Interior store is lane-tile aligned (offset = halo, a multiple of 128).
        u1p_ref[...] = jnp.zeros_like(u1p_ref)
        u1p_ref[:, pl.ds(halo, P)] = u1.astype(u1p_ref.dtype)

        # ---- grouped conv2 (3x3, pad 1) as ONE K = 9*Cmid matmul ------------
        # Row-edge validity masks for the +-1 column shifts; the +-1 row shifts
        # fall into the zero halo and need no mask.
        col = jax.lax.broadcasted_iota(jnp.int32, (1, P), 1) % W
        mask_for_dx = {-1: col > 0, 0: None, 1: col < (W - 1)}

        taps = []
        for dy in (-1, 0, 1):
            for dx in (-1, 0, 1):
                tap = u1p_ref[:, pl.ds(halo + dy * W + dx, P)]   # (Cmid, P) bf16
                m = mask_for_dx[dx]
                if m is not None:
                    tap = jnp.where(m, tap, jnp.zeros_like(tap))
                taps.append(tap)
        im2col = jnp.concatenate(taps, axis=0)                   # (9*Cmid, P)

        u2 = jnp.dot(w2_ref[...], im2col, preferred_element_type=jnp.float32)
        u2 = jnp.maximum(u2 + b2_ref[...], 0.0)                  # (Cmid, P)

        # ---- conv3 (1x1) + folded BN3 ----------------------------------------
        u3 = jnp.dot(w3_ref[...], u2.astype(jnp.bfloat16),
                     preferred_element_type=jnp.float32) + b3_ref[...]   # (C4, P)

        # ---- Squeeze-and-Excitation gate (f32 throughout) --------------------
        pooled = jnp.mean(u3, axis=1, keepdims=True)             # (C4, 1)
        s = jnp.dot(wse1_ref[...], pooled,
                    preferred_element_type=jnp.float32) + bse1_ref[...]
        s = jnp.maximum(s, 0.0)                                  # (Cr, 1)
        g = jnp.dot(wse2_ref[...], s,
                    preferred_element_type=jnp.float32) + bse2_ref[...]  # (C4, 1)
        gate = pl.reciprocal(1.0 + jnp.exp(-g), approx=True)     # sigmoid on EUP

        # ---- shortcut + residual add + ReLU -----------------------------------
        if conv_shortcut:
            sc = jnp.dot(wsc_ref[...], x2,
                         preferred_element_type=jnp.float32) + bsc_ref[...]
        else:
            sc = x_ref[0]                                        # identity (f32)

        out = jnp.maximum(u3 * gate + sc, 0.0)                   # (C4, P)
        o_ref[0] = out.astype(o_ref.dtype)

    return kernel


# ----------------------------------------------------------------------------
# Wrapper-side parameter preparation: BN folding + grouped-weight expansion.
# ----------------------------------------------------------------------------
def _fold_bn(w, bn, conv_bias=None, eps=1e-5):
    """Fold eval-mode BatchNorm (and optional conv bias) into conv weights."""
    scale = bn["gamma"] / jnp.sqrt(bn["var"] + eps)
    w_f = w * scale.reshape((-1,) + (1,) * (w.ndim - 1))
    b = conv_bias if conv_bias is not None else jnp.zeros_like(bn["mean"])
    b_f = (b - bn["mean"]) * scale + bn["beta"]
    return w_f, b_f


def _expand_grouped(w, groups):
    """(Cout, Cin//groups, 3, 3) grouped conv weight -> dense (Cout, 9*Cin) im2col
    weight (zeros off the block diagonal), K ordered as (ky, kx, cin)."""
    Cout, Cin_g, kh, kw = w.shape
    Cout_g = Cout // groups
    wg = w.reshape(groups, Cout_g, Cin_g, kh, kw)                # (g, o, i, ky, kx)
    eye = jnp.eye(groups, dtype=w.dtype)                         # (g, z)
    dense = jnp.einsum("goikl,gz->goklzi", wg, eye)              # (g, o, ky, kx, z, i)
    return dense.reshape(Cout, kh * kw * groups * Cin_g)


def prepare_kernel_params(p, groups):
    """Fold BN, expand the grouped conv, cast matmul weights to bf16."""
    # TODO(synk): at much larger `width` the x`groups` FLOP inflation of this
    # block-diagonal expansion would warrant a regrouped formulation instead.
    f32, bf16 = jnp.float32, jnp.bfloat16
    kp = {}
    w1f, b1f = _fold_bn(p["w1"][:, :, 0, 0], p["bn1"])
    kp["w1"], kp["b1"] = w1f.astype(bf16), b1f.reshape(-1, 1).astype(f32)

    w2f, b2f = _fold_bn(p["w2"], p["bn2"])
    kp["w2"] = _expand_grouped(w2f, groups).astype(bf16)
    kp["b2"] = b2f.reshape(-1, 1).astype(f32)

    w3f, b3f = _fold_bn(p["w3"][:, :, 0, 0], p["bn3"])
    kp["w3"], kp["b3"] = w3f.astype(bf16), b3f.reshape(-1, 1).astype(f32)

    kp["wse1"] = p["wse1"][:, :, 0, 0].astype(f32)
    kp["bse1"] = p["bse1"].reshape(-1, 1).astype(f32)
    kp["wse2"] = p["wse2"][:, :, 0, 0].astype(f32)
    kp["bse2"] = p["bse2"].reshape(-1, 1).astype(f32)

    if "wsc" in p:
        wscf, bscf = _fold_bn(p["wsc"][:, :, 0, 0], p["bnsc"], conv_bias=p["bsc"])
        kp["wsc"], kp["bsc"] = wscf.astype(bf16), bscf.reshape(-1, 1).astype(f32)
    return kp


# ----------------------------------------------------------------------------
# Forward pass (NCHW in / NCHW out, like the PyTorch module).
# ----------------------------------------------------------------------------
def se_resnext_bottleneck_forward(params, x_nchw, *, groups, stride=1):
    if stride != 1:
        raise NotImplementedError("stride != 1 is not supported by this Pallas path")

    N, Cin, H, W = x_nchw.shape
    P = H * W
    halo = ((W + 1 + 127) // 128) * 128      # lane-tile aligned halo >= W + 1

    kp = prepare_kernel_params(params, groups)
    Cmid = kp["w1"].shape[0]
    C4 = kp["w3"].shape[0]
    Cr = kp["wse1"].shape[0]
    conv_shortcut = "wsc" in kp
    if not conv_shortcut:
        assert Cin == C4, "identity shortcut requires inplanes == 4 * planes"

    # Free row-major reshape: NCHW (N, C, H, W) -> (N, C, H*W).  No transpose.
    x = x_nchw.reshape(N, Cin, P)

    in_specs = [
        pl.BlockSpec((1, Cin, P), lambda n: (n, 0, 0)),
        pl.BlockSpec((Cmid, Cin), lambda n: (0, 0)),
        pl.BlockSpec((Cmid, 1), lambda n: (0, 0)),
        pl.BlockSpec((Cmid, 9 * Cmid), lambda n: (0, 0)),
        pl.BlockSpec((Cmid, 1), lambda n: (0, 0)),
        pl.BlockSpec((C4, Cmid), lambda n: (0, 0)),
        pl.BlockSpec((C4, 1), lambda n: (0, 0)),
        pl.BlockSpec((Cr, C4), lambda n: (0, 0)),
        pl.BlockSpec((Cr, 1), lambda n: (0, 0)),
        pl.BlockSpec((C4, Cr), lambda n: (0, 0)),
        pl.BlockSpec((C4, 1), lambda n: (0, 0)),
    ]
    args = [x, kp["w1"], kp["b1"], kp["w2"], kp["b2"], kp["w3"], kp["b3"],
            kp["wse1"], kp["bse1"], kp["wse2"], kp["bse2"]]
    if conv_shortcut:
        in_specs += [pl.BlockSpec((C4, Cin), lambda n: (0, 0)),
                     pl.BlockSpec((C4, 1), lambda n: (0, 0))]
        args += [kp["wsc"], kp["bsc"]]

    # Batch stays a "parallel" grid axis (free 2x on v7x megacore).  On the
    # single-TensorCore v5e/v6e the N serial steps are negligible at this size.
    out = pl.pallas_call(
        _make_fused_kernel(H, W, halo, conv_shortcut),
        out_shape=jax.ShapeDtypeStruct((N, C4, P), jnp.float32),
        grid=(N,),
        in_specs=in_specs,
        out_specs=pl.BlockSpec((1, C4, P), lambda n: (n, 0, 0)),
        scratch_shapes=[pltpu.VMEM((Cmid, P + 2 * halo), jnp.bfloat16)],
        compiler_params=pltpu.CompilerParams(dimension_semantics=("parallel",)),
    )(*args)

    return out.reshape(N, C4, H, W)          # free reshape back to NCHW


# ----------------------------------------------------------------------------
# Parameter initialization (PyTorch weight-shape conventions) + pure-JAX reference.
# ----------------------------------------------------------------------------
def init_params(key, inplanes, planes, groups=32, reduction=16, base_width=4):
    width = math.floor(planes * (base_width / 64)) * groups
    c4 = planes * 4
    cr = c4 // reduction
    ks = iter(jax.random.split(key, 32))

    def nrm(shape, scale):
        return jax.random.normal(next(ks), shape, jnp.float32) * scale

    def bn_params(c):
        return dict(
            gamma=jax.random.uniform(next(ks), (c,), jnp.float32, 0.5, 1.5),
            beta=nrm((c,), 0.1),
            mean=nrm((c,), 0.1),
            var=jax.random.uniform(next(ks), (c,), jnp.float32, 0.5, 1.5),
        )

    p = dict(
        w1=nrm((width, inplanes, 1, 1), 1.0 / math.sqrt(inplanes)),
        bn1=bn_params(width),
        w2=nrm((width, width // groups, 3, 3), 1.0 / math.sqrt(9 * (width // groups))),
        bn2=bn_params(width),
        w3=nrm((c4, width, 1, 1), 1.0 / math.sqrt(width)),
        bn3=bn_params(c4),
        wse1=nrm((cr, c4, 1, 1), 1.0 / math.sqrt(c4)),
        bse1=nrm((cr,), 0.1),
        wse2=nrm((c4, cr, 1, 1), 1.0 / math.sqrt(cr)),
        bse2=nrm((c4,), 0.1),
    )
    if inplanes != c4:   # stride == 1 assumed -> conv shortcut iff channel mismatch
        p["wsc"] = nrm((c4, inplanes, 1, 1), 1.0 / math.sqrt(inplanes))
        p["bsc"] = nrm((c4,), 0.1)
        p["bnsc"] = bn_params(c4)
    return p


def reference_forward(p, x, *, groups, stride=1, eps=1e-5):
    """Independent pure-JAX (lax.conv) reference, eval-mode BN."""
    def conv(a, w, stride=1, padding=0, fgc=1, bias=None):
        y = jax.lax.conv_general_dilated(
            a, w, window_strides=(stride, stride),
            padding=((padding, padding), (padding, padding)),
            dimension_numbers=("NCHW", "OIHW", "NCHW"),
            feature_group_count=fgc,
            precision=jax.lax.Precision.HIGHEST)
        if bias is not None:
            y = y + bias.reshape(1, -1, 1, 1)
        return y

    def bn(a, b):
        sh = (1, -1, 1, 1)
        return ((a - b["mean"].reshape(sh)) / jnp.sqrt(b["var"].reshape(sh) + eps)
                * b["gamma"].reshape(sh) + b["beta"].reshape(sh))

    out = jax.nn.relu(bn(conv(x, p["w1"]), p["bn1"]))
    out = jax.nn.relu(bn(conv(out, p["w2"], stride=stride, padding=1, fgc=groups),
                         p["bn2"]))
    out = bn(conv(out, p["w3"]), p["bn3"])

    pooled = out.mean(axis=(2, 3), keepdims=True)
    s = jax.nn.relu(conv(pooled, p["wse1"], bias=p["bse1"]))
    gate = jax.nn.sigmoid(conv(s, p["wse2"], bias=p["bse2"]))
    se_out = out * gate

    if "wsc" in p:
        sc = bn(conv(x, p["wsc"], stride=stride, bias=p["bsc"]), p["bnsc"])
    else:
        sc = x
    return jax.nn.relu(se_out + sc)


if __name__ == "__main__":
    # SEResNeXtBottleneck(inplanes=64, planes=32, groups=32, reduction=16, stride=1)
    #   -> width (Cmid) = 64, output channels = 4*planes = 128 (conv shortcut path).
    inplanes, planes, groups, reduction = 64, 32, 32, 16
    N, H, W = 2, 16, 16

    key = jax.random.PRNGKey(0)
    k_x, k_p = jax.random.split(key)
    x = jax.random.normal(k_x, (N, inplanes, H, W), dtype=jnp.float32)
    params = init_params(k_p, inplanes, planes, groups=groups, reduction=reduction)

    out = se_resnext_bottleneck_forward(params, x, groups=groups, stride=1)
    out = jax.block_until_ready(out)
    assert out.shape == (N, planes * 4, H, W)

    ref = jax.block_until_ready(reference_forward(params, x, groups=groups, stride=1))
    # bf16 MXU operands (f32 accumulation) -> ~1e-2 typical error; a structural
    # bug (wrong tap shift / mask / BN fold) would be O(1) and still fail this.
    max_rel = float(jnp.max(jnp.abs(out - ref) / (1.0 + jnp.abs(ref))))
    assert max_rel < 1e-1, f"max normalized |kernel - reference| = {max_rel}"

    print("KERNEL_OK")
</pallas_src>

<mosaic_0001>
module attributes {stable_mosaic.version = 11 : i64} {
  func.func @kernel(%arg0: i32, %arg1: memref<1x64x256xf32, #tpu.memory_space<vmem>>, %arg2: memref<64x64xbf16, #tpu.memory_space<vmem>>, %arg3: memref<64x1xf32, #tpu.memory_space<vmem>>, %arg4: memref<64x576xbf16, #tpu.memory_space<vmem>>, %arg5: memref<64x1xf32, #tpu.memory_space<vmem>>, %arg6: memref<128x64xbf16, #tpu.memory_space<vmem>>, %arg7: memref<128x1xf32, #tpu.memory_space<vmem>>, %arg8: memref<8x128xf32, #tpu.memory_space<vmem>>, %arg9: memref<8x1xf32, #tpu.memory_space<vmem>>, %arg10: memref<128x8xf32, #tpu.memory_space<vmem>>, %arg11: memref<128x1xf32, #tpu.memory_space<vmem>>, %arg12: memref<128x64xbf16, #tpu.memory_space<vmem>>, %arg13: memref<128x1xf32, #tpu.memory_space<vmem>>, %arg14: memref<1x128x256xf32, #tpu.memory_space<vmem>>, %arg15: memref<64x512xbf16, #tpu.memory_space<vmem>>) attributes {dimension_semantics = [#tpu.dimension_semantics<parallel>], iteration_bounds = array<i64: 2>, scalar_prefetch = 0 : i64, scratch_operands = 1 : i64, tpu.core_type = #tpu.core_type<tc>, window_params = [{transform_indices = @transform_0, window_bounds = array<i64: 1, 64, 256>}, {pipeline_mode = #tpu.pipeline_mode<synchronous>, transform_indices = @transform_1, window_bounds = array<i64: 64, 64>}, {pipeline_mode = #tpu.pipeline_mode<synchronous>, transform_indices = @transform_2, window_bounds = array<i64: 64, 1>}, {pipeline_mode = #tpu.pipeline_mode<synchronous>, transform_indices = @transform_3, window_bounds = array<i64: 64, 576>}, {pipeline_mode = #tpu.pipeline_mode<synchronous>, transform_indices = @transform_4, window_bounds = array<i64: 64, 1>}, {pipeline_mode = #tpu.pipeline_mode<synchronous>, transform_indices = @transform_5, window_bounds = array<i64: 128, 64>}, {pipeline_mode = #tpu.pipeline_mode<synchronous>, transform_indices = @transform_6, window_bounds = array<i64: 128, 1>}, {pipeline_mode = #tpu.pipeline_mode<synchronous>, transform_indices = @transform_7, window_bounds = array<i64: 8, 128>}, {pipeline_mode = #tpu.pipeline_mode<synchronous>, transform_indices = @transform_8, window_bounds = array<i64: 8, 1>}, {pipeline_mode = #tpu.pipeline_mode<synchronous>, transform_indices = @transform_9, window_bounds = array<i64: 128, 8>}, {pipeline_mode = #tpu.pipeline_mode<synchronous>, transform_indices = @transform_10, window_bounds = array<i64: 128, 1>}, {pipeline_mode = #tpu.pipeline_mode<synchronous>, transform_indices = @transform_11, window_bounds = array<i64: 128, 64>}, {pipeline_mode = #tpu.pipeline_mode<synchronous>, transform_indices = @transform_12, window_bounds = array<i64: 128, 1>}, {transform_indices = @transform_13, window_bounds = array<i64: 1, 128, 256>}]} {
    %c0 = arith.constant 0 : index
    %c0_0 = arith.constant 0 : index
    %c0_1 = arith.constant 0 : index
    %0 = vector.load %arg1[%c0, %c0_0, %c0_1] : memref<1x64x256xf32, #tpu.memory_space<vmem>>, vector<1x64x256xf32>
    %1 = vector.shape_cast %0 : vector<1x64x256xf32> to vector<64x256xf32>
    %2 = arith.truncf %1 : vector<64x256xf32> to vector<64x256xbf16>
    %c0_2 = arith.constant 0 : index
    %c0_3 = arith.constant 0 : index
    %3 = vector.load %arg2[%c0_2, %c0_3] : memref<64x64xbf16, #tpu.memory_space<vmem>>, vector<64x64xbf16>
    %cst = arith.constant dense<0.000000e+00> : vector<64x256xf32>
    %4 = tpu.matmul %3, %2, %cst {dimension_numbers = #tpu.dot_dimension_numbers<[1], [0], [0], [1], [0, 0, 1, 1], [], []>} : vector<64x64xbf16>, vector<64x256xbf16>, vector<64x256xf32> -> vector<64x256xf32>
    %c0_4 = arith.constant 0 : index
    %c0_5 = arith.constant 0 : index
    %5 = vector.load %arg3[%c0_4, %c0_5] : memref<64x1xf32, #tpu.memory_space<vmem>>, vector<64x1xf32>
    %6 = vector.broadcast %5 : vector<64x1xf32> to vector<64x256xf32>
    %7 = arith.addf %4, %6 : vector<64x256xf32>
    %cst_6 = arith.constant 0.000000e+00 : f32
    %8 = vector.broadcast %cst_6 : f32 to vector<64x256xf32>
    %9 = arith.maximumf %7, %8 : vector<64x256xf32>
    %cst_7 = arith.constant 0.000000e+00 : bf16
    %10 = vector.broadcast %cst_7 : bf16 to vector<64x512xbf16>
    %c0_8 = arith.constant 0 : index
    %c0_9 = arith.constant 0 : index
    %11 = vector.load %arg15[%c0_8, %c0_9] : memref<64x512xbf16, #tpu.memory_space<vmem>>, vector<64x512xbf16>
    tpu.vector_store %arg15[%c0_8, %c0_9], %10 {strides = array<i32>} : memref<64x512xbf16, #tpu.memory_space<vmem>>, vector<64x512xbf16>,
    %12 = arith.truncf %9 : vector<64x256xf32> to vector<64x256xbf16>
    %c0_10 = arith.constant 0 : index
    %c128 = arith.constant 128 : index
    %13 = vector.load %arg15[%c0_10, %c128] : memref<64x512xbf16, #tpu.memory_space<vmem>>, vector<64x256xbf16>
    tpu.vector_store %arg15[%c0_10, %c128], %12 {strides = array<i32>} : memref<64x512xbf16, #tpu.memory_space<vmem>>, vector<64x256xbf16>,
    %14 = tpu.iota {dimensions = array<i32: 1>} : vector<1x256xi32>
    %c16_i32 = arith.constant 16 : i32
    %c0_i32 = arith.constant 0 : i32
    %15 = arith.cmpi eq, %c16_i32, %c0_i32 : i32
    %c1_i32 = arith.constant 1 : i32
    %16 = arith.select %15, %c1_i32, %c16_i32 : i32
    %17 = vector.broadcast %16 : i32 to vector<1x256xi32>
    %18 = arith.remsi %14, %17 : vector<1x256xi32>
    %c0_i32_11 = arith.constant 0 : i32
    %19 = vector.broadcast %c0_i32_11 : i32 to vector<1x256xi32>
    %20 = arith.cmpi ne, %18, %19 : vector<1x256xi32>
    %c0_i32_12 = arith.constant 0 : i32
    %21 = vector.broadcast %c0_i32_12 : i32 to vector<1x256xi32>
    %22 = arith.cmpi slt, %18, %21 : vector<1x256xi32>
    %c0_i32_13 = arith.constant 0 : i32
    %23 = arith.cmpi slt, %16, %c0_i32_13 : i32
    %24 = vector.broadcast %23 : i1 to vector<1x256xi1>
    %25 = vector.broadcast %24 : vector<1x256xi1> to vector<1x256xi1>
    %26 = arith.xori %22, %25 : vector<1x256xi1>
    %27 = arith.andi %26, %20 : vector<1x256xi1>
    %28 = vector.broadcast %16 : i32 to vector<1x256xi32>
    %29 = arith.addi %18, %28 : vector<1x256xi32>
    %30 = arith.select %27, %29, %18 : vector<1x256xi1>, vector<1x256xi32>
    %c0_i32_14 = arith.constant 0 : i32
    %31 = vector.broadcast %c0_i32_14 : i32 to vector<1x256xi32>
    %32 = arith.cmpi sgt, %30, %31 : vector<1x256xi32>
    %c15_i32 = arith.constant 15 : i32
    %33 = vector.broadcast %c15_i32 : i32 to vector<1x256xi32>
    %34 = arith.cmpi slt, %30, %33 : vector<1x256xi32>
    %c0_15 = arith.constant 0 : index
    %c111 = arith.constant 111 : index
    %35 = vector.load %arg15[%c0_15, %c111] : memref<64x512xbf16, #tpu.memory_space<vmem>>, vector<64x256xbf16>
    %cst_16 = arith.constant 0.000000e+00 : bf16
    %36 = vector.broadcast %cst_16 : bf16 to vector<64x256xbf16>
    %37 = vector.shape_cast %32 : vector<1x256xi1> to vector<1x256xi1>
    %38 = vector.broadcast %37 : vector<1x256xi1> to vector<64x256xi1>
    %39 = arith.select %38, %35, %36 : vector<64x256xi1>, vector<64x256xbf16>
    %c0_17 = arith.constant 0 : index
    %c112 = arith.constant 112 : index
    %40 = vector.load %arg15[%c0_17, %c112] : memref<64x512xbf16, #tpu.memory_space<vmem>>, vector<64x256xbf16>
    %c0_18 = arith.constant 0 : index
    %c113 = arith.constant 113 : index
    %41 = vector.load %arg15[%c0_18, %c113] : memref<64x512xbf16, #tpu.memory_space<vmem>>, vector<64x256xbf16>
    %cst_19 = arith.constant 0.000000e+00 : bf16
    %42 = vector.broadcast %cst_19 : bf16 to vector<64x256xbf16>
    %43 = vector.shape_cast %34 : vector<1x256xi1> to vector<1x256xi1>
    %44 = vector.broadcast %43 : vector<1x256xi1> to vector<64x256xi1>
    %45 = arith.select %44, %41, %42 : vector<64x256xi1>, vector<64x256xbf16>
    %c0_20 = arith.constant 0 : index
    %c127 = arith.constant 127 : index
    %46 = vector.load %arg15[%c0_20, %c127] : memref<64x512xbf16, #tpu.memory_space<vmem>>, vector<64x256xbf16>
    %cst_21 = arith.constant 0.000000e+00 : bf16
    %47 = vector.broadcast %cst_21 : bf16 to vector<64x256xbf16>
    %48 = vector.shape_cast %32 : vector<1x256xi1> to vector<1x256xi1>
    %49 = vector.broadcast %48 : vector<1x256xi1> to vector<64x256xi1>
    %50 = arith.select %49, %46, %47 : vector<64x256xi1>, vector<64x256xbf16>
    %c0_22 = arith.constant 0 : index
    %c128_23 = arith.constant 128 : index
    %51 = vector.load %arg15[%c0_22, %c128_23] : memref<64x512xbf16, #tpu.memory_space<vmem>>, vector<64x256xbf16>
    %c0_24 = arith.constant 0 : index
    %c129 = arith.constant 129 : index
    %52 = vector.load %arg15[%c0_24, %c129] : memref<64x512xbf16, #tpu.memory_space<vmem>>, vector<64x256xbf16>
    %cst_25 = arith.constant 0.000000e+00 : bf16
    %53 = vector.broadcast %cst_25 : bf16 to vector<64x256xbf16>
    %54 = vector.shape_cast %34 : vector<1x256xi1> to vector<1x256xi1>
    %55 = vector.broadcast %54 : vector<1x256xi1> to vector<64x256xi1>
    %56 = arith.select %55, %52, %53 : vector<64x256xi1>, vector<64x256xbf16>
    %c0_26 = arith.constant 0 : index
    %c143 = arith.constant 143 : index
    %57 = vector.load %arg15[%c0_26, %c143] : memref<64x512xbf16, #tpu.memory_space<vmem>>, vector<64x256xbf16>
    %cst_27 = arith.constant 0.000000e+00 : bf16
    %58 = vector.broadcast %cst_27 : bf16 to vector<64x256xbf16>
    %59 = vector.shape_cast %32 : vector<1x256xi1> to vector<1x256xi1>
    %60 = vector.broadcast %59 : vector<1x256xi1> to vector<64x256xi1>
    %61 = arith.select %60, %57, %58 : vector<64x256xi1>, vector<64x256xbf16>
    %c0_28 = arith.constant 0 : index
    %c144 = arith.constant 144 : index
    %62 = vector.load %arg15[%c0_28, %c144] : memref<64x512xbf16, #tpu.memory_space<vmem>>, vector<64x256xbf16>
    %c0_29 = arith.constant 0 : index
    %c145 = arith.constant 145 : index
    %63 = vector.load %arg15[%c0_29, %c145] : memref<64x512xbf16, #tpu.memory_space<vmem>>, vector<64x256xbf16>
    %cst_30 = arith.constant 0.000000e+00 : bf16
    %64 = vector.broadcast %cst_30 : bf16 to vector<64x256xbf16>
    %65 = vector.shape_cast %34 : vector<1x256xi1> to vector<1x256xi1>
    %66 = vector.broadcast %65 : vector<1x256xi1> to vector<64x256xi1>
    %67 = arith.select %66, %63, %64 : vector<64x256xi1>, vector<64x256xbf16>
    %68 = tpu.concatenate %39, %40, %45, %50, %51, %56, %61, %62, %67 in 0 : vector<64x256xbf16>, vector<64x256xbf16>, vector<64x256xbf16>, vector<64x256xbf16>, vector<64x256xbf16>, vector<64x256xbf16>, vector<64x256xbf16>, vector<64x256xbf16>, vector<64x256xbf16> -> vector<576x256xbf16>
    %c0_31 = arith.constant 0 : index
    %c0_32 = arith.constant 0 : index
    %69 = vector.load %arg4[%c0_31, %c0_32] : memref<64x576xbf16, #tpu.memory_space<vmem>>, vector<64x576xbf16>
    %cst_33 = arith.constant dense<0.000000e+00> : vector<64x256xf32>
    %70 = tpu.matmul %69, %68, %cst_33 {dimension_numbers = #tpu.dot_dimension_numbers<[1], [0], [0], [1], [0, 0, 1, 1], [], []>} : vector<64x576xbf16>, vector<576x256xbf16>, vector<64x256xf32> -> vector<64x256xf32>
    %c0_34 = arith.constant 0 : index
    %c0_35 = arith.constant 0 : index
    %71 = vector.load %arg5[%c0_34, %c0_35] : memref<64x1xf32, #tpu.memory_space<vmem>>, vector<64x1xf32>
    %72 = vector.broadcast %71 : vector<64x1xf32> to vector<64x256xf32>
    %73 = arith.addf %70, %72 : vector<64x256xf32>
    %cst_36 = arith.constant 0.000000e+00 : f32
    %74 = vector.broadcast %cst_36 : f32 to vector<64x256xf32>
    %75 = arith.maximumf %73, %74 : vector<64x256xf32>
    %c0_37 = arith.constant 0 : index
    %c0_38 = arith.constant 0 : index
    %76 = vector.load %arg6[%c0_37, %c0_38] : memref<128x64xbf16, #tpu.memory_space<vmem>>, vector<128x64xbf16>
    %77 = arith.truncf %75 : vector<64x256xf32> to vector<64x256xbf16>
    %cst_39 = arith.constant dense<0.000000e+00> : vector<128x256xf32>
    %78 = tpu.matmul %76, %77, %cst_39 {dimension_numbers = #tpu.dot_dimension_numbers<[1], [0], [0], [1], [0, 0, 1, 1], [], []>} : vector<128x64xbf16>, vector<64x256xbf16>, vector<128x256xf32> -> vector<128x256xf32>
    %c0_40 = arith.constant 0 : index
    %c0_41 = arith.constant 0 : index
    %79 = vector.load %arg7[%c0_40, %c0_41] : memref<128x1xf32, #tpu.memory_space<vmem>>, vector<128x1xf32>
    %80 = vector.broadcast %79 : vector<128x1xf32> to vector<128x256xf32>
    %81 = arith.addf %78, %80 : vector<128x256xf32>
    %cst_42 = arith.constant dense<0.000000e+00> : vector<128xf32>
    %82 = vector.multi_reduction <add>, %81, %cst_42 [1] : vector<128x256xf32> to vector<128xf32>
    %83 = vector.shape_cast %82 : vector<128xf32> to vector<128x1xf32>
    %cst_43 = arith.constant 2.560000e+02 : f32
    %84 = vector.broadcast %cst_43 : f32 to vector<128x1xf32>
    %85 = arith.divf %83, %84 : vector<128x1xf32>
    %c0_44 = arith.constant 0 : index
    %c0_45 = arith.constant 0 : index
    %86 = vector.load %arg8[%c0_44, %c0_45] : memref<8x128xf32, #tpu.memory_space<vmem>>, vector<8x128xf32>
    %cst_46 = arith.constant dense<0.000000e+00> : vector<8x1xf32>
    %87 = tpu.matmul %86, %85, %cst_46 {dimension_numbers = #tpu.dot_dimension_numbers<[1], [0], [0], [1], [0, 0, 1, 1], [], []>} : vector<8x128xf32>, vector<128x1xf32>, vector<8x1xf32> -> vector<8x1xf32>
    %c0_47 = arith.constant 0 : index
    %c0_48 = arith.constant 0 : index
    %88 = vector.load %arg9[%c0_47, %c0_48] : memref<8x1xf32, #tpu.memory_space<vmem>>, vector<8x1xf32>
    %89 = arith.addf %87, %88 : vector<8x1xf32>
    %cst_49 = arith.constant 0.000000e+00 : f32
    %90 = vector.broadcast %cst_49 : f32 to vector<8x1xf32>
    %91 = arith.maximumf %89, %90 : vector<8x1xf32>
    %c0_50 = arith.constant 0 : index
    %c0_51 = arith.constant 0 : index
    %92 = vector.load %arg10[%c0_50, %c0_51] : memref<128x8xf32, #tpu.memory_space<vmem>>, vector<128x8xf32>
    %cst_52 = arith.constant dense<0.000000e+00> : vector<128x1xf32>
    %93 = tpu.matmul %92, %91, %cst_52 {dimension_numbers = #tpu.dot_dimension_numbers<[1], [0], [0], [1], [0, 0, 1, 1], [], []>} : vector<128x8xf32>, vector<8x1xf32>, vector<128x1xf32> -> vector<128x1xf32>
    %c0_53 = arith.constant 0 : index
    %c0_54 = arith.constant 0 : index
    %94 = vector.load %arg11[%c0_53, %c0_54] : memref<128x1xf32, #tpu.memory_space<vmem>>, vector<128x1xf32>
    %95 = arith.addf %93, %94 : vector<128x1xf32>
    %cst_55 = arith.constant 0.000000e+00 : f32
    %96 = vector.broadcast %cst_55 : f32 to vector<128x1xf32>
    %97 = arith.subf %96, %95 : vector<128x1xf32>
    %98 = math.exp %97 : vector<128x1xf32>
    %cst_56 = arith.constant 1.000000e+00 : f32
    %99 = vector.broadcast %cst_56 : f32 to vector<128x1xf32>
    %100 = arith.addf %99, %98 : vector<128x1xf32>
    %101 = tpu.reciprocal %100 {approx = true} : vector<128x1xf32> -> vector<128x1xf32>
    %c0_57 = arith.constant 0 : index
    %c0_58 = arith.constant 0 : index
    %102 = vector.load %arg12[%c0_57, %c0_58] : memref<128x64xbf16, #tpu.memory_space<vmem>>, vector<128x64xbf16>
    %cst_59 = arith.constant dense<0.000000e+00> : vector<128x256xf32>
    %103 = tpu.matmul %102, %2, %cst_59 {dimension_numbers = #tpu.dot_dimension_numbers<[1], [0], [0], [1], [0, 0, 1, 1], [], []>} : vector<128x64xbf16>, vector<64x256xbf16>, vector<128x256xf32> -> vector<128x256xf32>
    %c0_60 = arith.constant 0 : index
    %c0_61 = arith.constant 0 : index
    %104 = vector.load %arg13[%c0_60, %c0_61] : memref<128x1xf32, #tpu.memory_space<vmem>>, vector<128x1xf32>
    %105 = vector.broadcast %104 : vector<128x1xf32> to vector<128x256xf32>
    %106 = arith.addf %103, %105 : vector<128x256xf32>
    %107 = vector.broadcast %101 : vector<128x1xf32> to vector<128x256xf32>
    %108 = arith.mulf %81, %107 : vector<128x256xf32>
    %109 = arith.addf %108, %106 : vector<128x256xf32>
    %cst_62 = arith.constant 0.000000e+00 : f32
    %110 = vector.broadcast %cst_62 : f32 to vector<128x256xf32>
    %111 = arith.maximumf %109, %110 : vector<128x256xf32>
    %c0_63 = arith.constant 0 : index
    %c0_64 = arith.constant 0 : index
    %c0_65 = arith.constant 0 : index
    %112 = vector.load %arg14[%c0_63, %c0_64, %c0_65] : memref<1x128x256xf32, #tpu.memory_space<vmem>>, vector<1x128x256xf32>
    %113 = vector.shape_cast %112 : vector<1x128x256xf32> to vector<128x256xf32>
    %114 = vector.shape_cast %111 : vector<128x256xf32> to vector<1x128x256xf32>
    tpu.vector_store %arg14[%c0_63, %c0_64, %c0_65], %114 {strides = array<i32>} : memref<1x128x256xf32, #tpu.memory_space<vmem>>, vector<1x128x256xf32>,
    return
  }
  func.func @transform_0(%arg0: i32) -> (i32, i32, i32) {
    %c0_i32 = arith.constant 0 : i32
    %c0_i32_0 = arith.constant 0 : i32
    %c0_i32_1 = arith.constant 0 : i32
    return %arg0, %c0_i32, %c0_i32_0 : i32, i32, i32
  }
  func.func @transform_1(%arg0: i32) -> (i32, i32) {
    %c0_i32 = arith.constant 0 : i32
    %c0_i32_0 = arith.constant 0 : i32
    %c0_i32_1 = arith.constant 0 : i32
    return %c0_i32, %c0_i32_0 : i32, i32
  }
  func.func @transform_2(%arg0: i32) -> (i32, i32) {
    %c0_i32 = arith.constant 0 : i32
    %c0_i32_0 = arith.constant 0 : i32
    %c0_i32_1 = arith.constant 0 : i32
    return %c0_i32, %c0_i32_0 : i32, i32
  }
  func.func @transform_3(%arg0: i32) -> (i32, i32) {
    %c0_i32 = arith.constant 0 : i32
    %c0_i32_0 = arith.constant 0 : i32
    %c0_i32_1 = arith.constant 0 : i32
    return %c0_i32, %c0_i32_0 : i32, i32
  }
  func.func @transform_4(%arg0: i32) -> (i32, i32) {
    %c0_i32 = arith.constant 0 : i32
    %c0_i32_0 = arith.constant 0 : i32
    %c0_i32_1 = arith.constant 0 : i32
    return %c0_i32, %c0_i32_0 : i32, i32
  }
  func.func @transform_5(%arg0: i32) -> (i32, i32) {
    %c0_i32 = arith.constant 0 : i32
    %c0_i32_0 = arith.constant 0 : i32
    %c0_i32_1 = arith.constant 0 : i32
    return %c0_i32, %c0_i32_0 : i32, i32
  }
  func.func @transform_6(%arg0: i32) -> (i32, i32) {
    %c0_i32 = arith.constant 0 : i32
    %c0_i32_0 = arith.constant 0 : i32
    %c0_i32_1 = arith.constant 0 : i32
    return %c0_i32, %c0_i32_0 : i32, i32
  }
  func.func @transform_7(%arg0: i32) -> (i32, i32) {
    %c0_i32 = arith.constant 0 : i32
    %c0_i32_0 = arith.constant 0 : i32
    %c0_i32_1 = arith.constant 0 : i32
    return %c0_i32, %c0_i32_0 : i32, i32
  }
  func.func @transform_8(%arg0: i32) -> (i32, i32) {
    %c0_i32 = arith.constant 0 : i32
    %c0_i32_0 = arith.constant 0 : i32
    %c0_i32_1 = arith.constant 0 : i32
    return %c0_i32, %c0_i32_0 : i32, i32
  }
  func.func @transform_9(%arg0: i32) -> (i32, i32) {
    %c0_i32 = arith.constant 0 : i32
    %c0_i32_0 = arith.constant 0 : i32
    %c0_i32_1 = arith.constant 0 : i32
    return %c0_i32, %c0_i32_0 : i32, i32
  }
  func.func @transform_10(%arg0: i32) -> (i32, i32) {
    %c0_i32 = arith.constant 0 : i32
    %c0_i32_0 = arith.constant 0 : i32
    %c0_i32_1 = arith.constant 0 : i32
    return %c0_i32, %c0_i32_0 : i32, i32
  }
  func.func @transform_11(%arg0: i32) -> (i32, i32) {
    %c0_i32 = arith.constant 0 : i32
    %c0_i32_0 = arith.constant 0 : i32
    %c0_i32_1 = arith.constant 0 : i32
    return %c0_i32, %c0_i32_0 : i32, i32
  }
  func.func @transform_12(%arg0: i32) -> (i32, i32) {
    %c0_i32 = arith.constant 0 : i32
    %c0_i32_0 = arith.constant 0 : i32
    %c0_i32_1 = arith.constant 0 : i32
    return %c0_i32, %c0_i32_0 : i32, i32
  }
  func.func @transform_13(%arg0: i32) -> (i32, i32, i32) {
    %c0_i32 = arith.constant 0 : i32
    %c0_i32_0 = arith.constant 0 : i32
    %c0_i32_1 = arith.constant 0 : i32
    return %arg0, %c0_i32, %c0_i32_0 : i32, i32, i32
  }
}

</mosaic_0001>

<llo_original>
// kernel: tpu_custom_call.1
$region0: #{tpu_custom_call.1}
  #allocation0 [shape = 'u32[]', space=smem, size = 0x4, offset = 0x4, fixed_abs, tag = 'smem constant byte address 0x4 - core index']
  #allocation1 [shape = 'u32[144,128]{1,0:T(1,128)}', space=vmem, size = 0x12000, scoped, tag = 'internal scratch']
  #allocation2 [shape = 'bf16[64,512]{1,0:T(16,128)(2,1)}', space=vmem, size = 0x10000, scoped, tag = 'scratch operand']
  %s0 = inlined_call_operand.vmem [shape: f32[2,64,256], index: 0, kind: input, shape index: {}]
  %s1 = inlined_call_operand.vmem [shape: bf16[64,64], index: 1, kind: input, shape index: {}]
  %s2 = inlined_call_operand.vmem [shape: f32[64,1], index: 2, kind: input, shape index: {}]
  %s3 = inlined_call_operand.vmem [shape: bf16[64,576], index: 3, kind: input, shape index: {}]
  %s4 = inlined_call_operand.vmem [shape: f32[64,1], index: 4, kind: input, shape index: {}]
  %s5 = inlined_call_operand.vmem [shape: bf16[128,64], index: 5, kind: input, shape index: {}]
  %s6 = inlined_call_operand.vmem [shape: f32[128,1], index: 6, kind: input, shape index: {}]
  %s7 = inlined_call_operand.vmem [shape: f32[8,128], index: 7, kind: input, shape index: {}]
  %s8 = inlined_call_operand.vmem [shape: f32[8,1], index: 8, kind: input, shape index: {}]
  %s9 = inlined_call_operand.vmem [shape: f32[128,8], index: 9, kind: input, shape index: {}]
  %s10 = inlined_call_operand.vmem [shape: f32[128,1], index: 10, kind: input, shape index: {}]
  %s11 = inlined_call_operand.vmem [shape: bf16[128,64], index: 11, kind: input, shape index: {}]
  %s12 = inlined_call_operand.vmem [shape: f32[128,1], index: 12, kind: input, shape index: {}]
  %s13 = inlined_call_operand.hbm [shape: f32[2,128,256], index: 13, kind: output, shape index: {}]
  %s14 = sld [smem:[#allocation0]]
  $region85: #{tpu_custom_call.1} parent=0
    _
  %s16 = ssub.s32 1, %s14
  %s17 = scalar_select 0, %s16, %s14
  $region1: #{tpu_custom_call.1} parent=0
    #allocation3 [shape = 'u8[262144]{0}', space=vmem, size = 0x40000, scoped, tag = 'output window, operand 0']
    #allocation4 [shape = 's32[2]{0}', space=sflag, size = 0x8, scoped, tag = 'scoped memory for tpu_custom_call.1']
    %18 = vsyncpa [#allocation4], 0
    %s19 = scalar_lea.sflag [#allocation4], 1
    %20 = vsyncpa %s19, 0
    loop: start=0, step=1, limit=4
    $region2: #{tpu_custom_call.1} parent=1 // loop_pre_header
      _
    $region3: #{tpu_custom_call.1} parent=1 // loop_header
      %s22 = sphi 0, %s26
      %p23 = scmp.ge.s32.totalorder %s22, 4
      %s32 = sphi 0, %s34
      %s35 = sphi 0, %s32
      %s36 = sphi 0, %s35
      %s52 = sphi 0, %s36
      %s56 = sphi 0, %s56
      %s58 = sphi 0, %s56
      %s59 = sphi 0, %s58
      %s73 = sphi 0, %s59
      %s77 = sphi 0, %s77
      %s79 = sphi 0, %s77
      %s80 = sphi 0, %s79
      %s94 = sphi 0, %s80
      %s98 = sphi 0, %s98
      %s100 = sphi 0, %s98
      %s101 = sphi 0, %s100
      %s115 = sphi 0, %s101
      %s119 = sphi 0, %s119
      %s121 = sphi 0, %s119
      %s122 = sphi 0, %s121
      %s136 = sphi 0, %s122
      %s140 = sphi 0, %s140
      %s142 = sphi 0, %s140
      %s143 = sphi 0, %s142
      %s157 = sphi 0, %s143
      %s161 = sphi 0, %s161
      %s163 = sphi 0, %s161
      %s164 = sphi 0, %s163
      %s178 = sphi 0, %s164
      %s182 = sphi 0, %s182
      %s184 = sphi 0, %s182
      %s185 = sphi 0, %s184
      %s199 = sphi 0, %s185
      %s203 = sphi 0, %s203
      %s205 = sphi 0, %s203
      %s206 = sphi 0, %s205
      %s220 = sphi 0, %s206
      %s224 = sphi 0, %s224
      %s226 = sphi 0, %s224
      %s227 = sphi 0, %s226
      %s241 = sphi 0, %s227
      %s245 = sphi 0, %s245
      %s247 = sphi 0, %s245
      %s248 = sphi 0, %s247
      %s262 = sphi 0, %s248
      %s266 = sphi 0, %s266
      %s268 = sphi 0, %s266
      %s269 = sphi 0, %s268
      %s283 = sphi 0, %s269
      %s287 = sphi 0, %s287
      %s289 = sphi 0, %s287
      %s290 = sphi 0, %s289
      %s304 = sphi 0, %s290
      %s310 = sphi 0, %s312
      %s313 = sphi 0, %s310
      %s314 = sphi 0, %s313
      %s330 = sphi 0, %s314
    $region4: #{tpu_custom_call.1} parent=1 // loop_header_branch
      %25 = sbr.rel (%p23) target = $region8
    $region5: #{tpu_custom_call.1} parent=1 // loop_body
      %s27 = ssub.s32 %s22, 1
      %s28 = ssub.s32 %s22, 2
      %s29 = sadd.s32 %s22, 1
      %s30 = ssub.s32 %s22, %s29
      %p31 = scmp.eq.s32.totalorder %s30, 0
      %s33 = sadd.s32 %s32, 1
      %s34 = scalar_select %p31, %s32, %s33
      %p37 = pneg %p31
      %p38 = scmp.eq.s32.totalorder %s22, 1
      %p39 = por %p37, %p38
      %p40 = scmp.ne.s32.totalorder %s32, %s35
      %p41 = scmp.eq.s32.totalorder %s22, 0
      %p42 = por %p40, %p41
      %p43 = scmp.ne.s32.totalorder %s32, %s35
      %p44 = scmp.eq.s32.totalorder %s27, 1
      %p45 = por %p43, %p44
      %p46 = scmp.ne.s32.totalorder %s35, %s36
      %p47 = scmp.eq.s32.totalorder %s27, 0
      %p48 = por %p46, %p47
      %p49 = scmp.ne.s32.totalorder %s35, %s36
      %p50 = scmp.eq.s32.totalorder %s28, 1
      %p51 = por %p49, %p50
      %p53 = scmp.ne.s32.totalorder %s36, %s52
      %p54 = scmp.eq.s32.totalorder %s28, 0
      %p55 = por %p53, %p54
      %s57 = sadd.s32 %s56, 1
      %p60 = scmp.eq.s32.totalorder %s22, 1
      %p61 = scmp.ne.s32.totalorder %s56, %s58
      %p62 = scmp.eq.s32.totalorder %s22, 0
      %p63 = por %p61, %p62
      %p64 = scmp.ne.s32.totalorder %s56, %s58
      %p65 = scmp.eq.s32.totalorder %s27, 1
      %p66 = por %p64, %p65
      %p67 = scmp.ne.s32.totalorder %s58, %s59
      %p68 = scmp.eq.s32.totalorder %s27, 0
      %p69 = por %p67, %p68
      %p70 = scmp.ne.s32.totalorder %s58, %s59
      %p71 = scmp.eq.s32.totalorder %s28, 1
      %p72 = por %p70, %p71
      %p74 = scmp.ne.s32.totalorder %s59, %s73
      %p75 = scmp.eq.s32.totalorder %s28, 0
      %p76 = por %p74, %p75
      %s78 = sadd.s32 %s77, 1
      %p81 = scmp.eq.s32.totalorder %s22, 1
      %p82 = scmp.ne.s32.totalorder %s77, %s79
      %p83 = scmp.eq.s32.totalorder %s22, 0
      %p84 = por %p82, %p83
      %p85 = scmp.ne.s32.totalorder %s77, %s79
      %p86 = scmp.eq.s32.totalorder %s27, 1
      %p87 = por %p85, %p86
      %p88 = scmp.ne.s32.totalorder %s79, %s80
      %p89 = scmp.eq.s32.totalorder %s27, 0
      %p90 = por %p88, %p89
      %p91 = scmp.ne.s32.totalorder %s79, %s80
      %p92 = scmp.eq.s32.totalorder %s28, 1
      %p93 = por %p91, %p92
      %p95 = scmp.ne.s32.totalorder %s80, %s94
      %p96 = scmp.eq.s32.totalorder %s28, 0
      %p97 = por %p95, %p96
      %s99 = sadd.s32 %s98, 1
      %p102 = scmp.eq.s32.totalorder %s22, 1
      %p103 = scmp.ne.s32.totalorder %s98, %s100
      %p104 = scmp.eq.s32.totalorder %s22, 0
      %p105 = por %p103, %p104
      %p106 = scmp.ne.s32.totalorder %s98, %s100
      %p107 = scmp.eq.s32.totalorder %s27, 1
      %p108 = por %p106, %p107
      %p109 = scmp.ne.s32.totalorder %s100, %s101
      %p110 = scmp.eq.s32.totalorder %s27, 0
      %p111 = por %p109, %p110
      %p112 = scmp.ne.s32.totalorder %s100, %s101
      %p113 = scmp.eq.s32.totalorder %s28, 1
      %p114 = por %p112, %p113
      %p116 = scmp.ne.s32.totalorder %s101, %s115
      %p117 = scmp.eq.s32.totalorder %s28, 0
      %p118 = por %p116, %p117
      %s120 = sadd.s32 %s119, 1
      %p123 = scmp.eq.s32.totalorder %s22, 1
      %p124 = scmp.ne.s32.totalorder %s119, %s121
      %p125 = scmp.eq.s32.totalorder %s22, 0
      %p126 = por %p124, %p125
      %p127 = scmp.ne.s32.totalorder %s119, %s121
      %p128 = scmp.eq.s32.totalorder %s27, 1
      %p129 = por %p127, %p128
      %p130 = scmp.ne.s32.totalorder %s121, %s122
      %p131 = scmp.eq.s32.totalorder %s27, 0
      %p132 = por %p130, %p131
      %p133 = scmp.ne.s32.totalorder %s121, %s122
      %p134 = scmp.eq.s32.totalorder %s28, 1
      %p135 = por %p133, %p134
      %p137 = scmp.ne.s32.totalorder %s122, %s136
      %p138 = scmp.eq.s32.totalorder %s28, 0
      %p139 = por %p137, %p138
      %s141 = sadd.s32 %s140, 1
      %p144 = scmp.eq.s32.totalorder %s22, 1
      %p145 = scmp.ne.s32.totalorder %s140, %s142
      %p146 = scmp.eq.s32.totalorder %s22, 0
      %p147 = por %p145, %p146
      %p148 = scmp.ne.s32.totalorder %s140, %s142
      %p149 = scmp.eq.s32.totalorder %s27, 1
      %p150 = por %p148, %p149
      %p151 = scmp.ne.s32.totalorder %s142, %s143
      %p152 = scmp.eq.s32.totalorder %s27, 0
      %p153 = por %p151, %p152
      %p154 = scmp.ne.s32.totalorder %s142, %s143
      %p155 = scmp.eq.s32.totalorder %s28, 1
      %p156 = por %p154, %p155
      %p158 = scmp.ne.s32.totalorder %s143, %s157
      %p159 = scmp.eq.s32.totalorder %s28, 0
      %p160 = por %p158, %p159
      %s162 = sadd.s32 %s161, 1
      %p165 = scmp.eq.s32.totalorder %s22, 1
      %p166 = scmp.ne.s32.totalorder %s161, %s163
      %p167 = scmp.eq.s32.totalorder %s22, 0
      %p168 = por %p166, %p167
      %p169 = scmp.ne.s32.totalorder %s161, %s163
      %p170 = scmp.eq.s32.totalorder %s27, 1
      %p171 = por %p169, %p170
      %p172 = scmp.ne.s32.totalorder %s163, %s164
      %p173 = scmp.eq.s32.totalorder %s27, 0
      %p174 = por %p172, %p173
      %p175 = scmp.ne.s32.totalorder %s163, %s164
      %p176 = scmp.eq.s32.totalorder %s28, 1
      %p177 = por %p175, %p176
      %p179 = scmp.ne.s32.totalorder %s164, %s178
      %p180 = scmp.eq.s32.totalorder %s28, 0
      %p181 = por %p179, %p180
      %s183 = sadd.s32 %s182, 1
      %p186 = scmp.eq.s32.totalorder %s22, 1
      %p187 = scmp.ne.s32.totalorder %s182, %s184
      %p188 = scmp.eq.s32.totalorder %s22, 0
      %p189 = por %p187, %p188
      %p190 = scmp.ne.s32.totalorder %s182, %s184
      %p191 = scmp.eq.s32.totalorder %s27, 1
      %p192 = por %p190, %p191
      %p193 = scmp.ne.s32.totalorder %s184, %s185
      %p194 = scmp.eq.s32.totalorder %s27, 0
      %p195 = por %p193, %p194
      %p196 = scmp.ne.s32.totalorder %s184, %s185
      %p197 = scmp.eq.s32.totalorder %s28, 1
      %p198 = por %p196, %p197
      %p200 = scmp.ne.s32.totalorder %s185, %s199
      %p201 = scmp.eq.s32.totalorder %s28, 0
      %p202 = por %p200, %p201
      %s204 = sadd.s32 %s203, 1
      %p207 = scmp.eq.s32.totalorder %s22, 1
      %p208 = scmp.ne.s32.totalorder %s203, %s205
      %p209 = scmp.eq.s32.totalorder %s22, 0
      %p210 = por %p208, %p209
      %p211 = scmp.ne.s32.totalorder %s203, %s205
      %p212 = scmp.eq.s32.totalorder %s27, 1
      %p213 = por %p211, %p212
      %p214 = scmp.ne.s32.totalorder %s205, %s206
      %p215 = scmp.eq.s32.totalorder %s27, 0
      %p216 = por %p214, %p215
      %p217 = scmp.ne.s32.totalorder %s205, %s206
      %p218 = scmp.eq.s32.totalorder %s28, 1
      %p219 = por %p217, %p218
      %p221 = scmp.ne.s32.totalorder %s206, %s220
      %p222 = scmp.eq.s32.totalorder %s28, 0
      %p223 = por %p221, %p222
      %s225 = sadd.s32 %s224, 1
      %p228 = scmp.eq.s32.totalorder %s22, 1
      %p229 = scmp.ne.s32.totalorder %s224, %s226
      %p230 = scmp.eq.s32.totalorder %s22, 0
      %p231 = por %p229, %p230
      %p232 = scmp.ne.s32.totalorder %s224, %s226
      %p233 = scmp.eq.s32.totalorder %s27, 1
      %p234 = por %p232, %p233
      %p235 = scmp.ne.s32.totalorder %s226, %s227
      %p236 = scmp.eq.s32.totalorder %s27, 0
      %p237 = por %p235, %p236
      %p238 = scmp.ne.s32.totalorder %s226, %s227
      %p239 = scmp.eq.s32.totalorder %s28, 1
      %p240 = por %p238, %p239
      %p242 = scmp.ne.s32.totalorder %s227, %s241
      %p243 = scmp.eq.s32.totalorder %s28, 0
      %p244 = por %p242, %p243
      %s246 = sadd.s32 %s245, 1
      %p249 = scmp.eq.s32.totalorder %s22, 1
      %p250 = scmp.ne.s32.totalorder %s245, %s247
      %p251 = scmp.eq.s32.totalorder %s22, 0
      %p252 = por %p250, %p251
      %p253 = scmp.ne.s32.totalorder %s245, %s247
      %p254 = scmp.eq.s32.totalorder %s27, 1
      %p255 = por %p253, %p254
      %p256 = scmp.ne.s32.totalorder %s247, %s248
      %p257 = scmp.eq.s32.totalorder %s27, 0
      %p258 = por %p256, %p257
      %p259 = scmp.ne.s32.totalorder %s247, %s248
      %p260 = scmp.eq.s32.totalorder %s28, 1
      %p261 = por %p259, %p260
      %p263 = scmp.ne.s32.totalorder %s248, %s262
      %p264 = scmp.eq.s32.totalorder %s28, 0
      %p265 = por %p263, %p264
      %s267 = sadd.s32 %s266, 1
      %p270 = scmp.eq.s32.totalorder %s22, 1
      %p271 = scmp.ne.s32.totalorder %s266, %s268
      %p272 = scmp.eq.s32.totalorder %s22, 0
      %p273 = por %p271, %p272
      %p274 = scmp.ne.s32.totalorder %s266, %s268
      %p275 = scmp.eq.s32.totalorder %s27, 1
      %p276 = por %p274, %p275
      %p277 = scmp.ne.s32.totalorder %s268, %s269
      %p278 = scmp.eq.s32.totalorder %s27, 0
      %p279 = por %p277, %p278
      %p280 = scmp.ne.s32.totalorder %s268, %s269
      %p281 = scmp.eq.s32.totalorder %s28, 1
      %p282 = por %p280, %p281
      %p284 = scmp.ne.s32.totalorder %s269, %s283
      %p285 = scmp.eq.s32.totalorder %s28, 0
      %p286 = por %p284, %p285
      %s288 = sadd.s32 %s287, 1
      %p291 = scmp.eq.s32.totalorder %s22, 1
      %p292 = scmp.ne.s32.totalorder %s287, %s289
      %p293 = scmp.eq.s32.totalorder %s22, 0
      %p294 = por %p292, %p293
      %p295 = scmp.ne.s32.totalorder %s287, %s289
      %p296 = scmp.eq.s32.totalorder %s27, 1
      %p297 = por %p295, %p296
      %p298 = scmp.ne.s32.totalorder %s289, %s290
      %p299 = scmp.eq.s32.totalorder %s27, 0
      %p300 = por %p298, %p299
      %p301 = scmp.ne.s32.totalorder %s289, %s290
      %p302 = scmp.eq.s32.totalorder %s28, 1
      %p303 = por %p301, %p302
      %p305 = scmp.ne.s32.totalorder %s290, %s304
      %p306 = scmp.eq.s32.totalorder %s28, 0
      %p307 = por %p305, %p306
      %s308 = ssub.s32 %s22, %s29
      %p309 = scmp.eq.s32.totalorder %s308, 0
      %s311 = sadd.s32 %s310, 1
      %s312 = scalar_select %p309, %s310, %s311
      %p315 = pneg %p309
      %p316 = scmp.eq.s32.totalorder %s22, 1
      %p317 = por %p315, %p316
      %p318 = scmp.ne.s32.totalorder %s310, %s313
      %p319 = scmp.eq.s32.totalorder %s22, 0
      %p320 = por %p318, %p319
      %p321 = scmp.ne.s32.totalorder %s310, %s313
      %p322 = scmp.eq.s32.totalorder %s27, 1
      %p323 = por %p321, %p322
      %p324 = scmp.ne.s32.totalorder %s313, %s314
      %p325 = scmp.eq.s32.totalorder %s27, 0
      %p326 = por %p324, %p325
      %p327 = scmp.ne.s32.totalorder %s313, %s314
      %p328 = scmp.eq.s32.totalorder %s28, 1
      %p329 = por %p327, %p328
      %p331 = scmp.ne.s32.totalorder %s314, %s330
      %p332 = scmp.eq.s32.totalorder %s28, 0
      %p333 = por %p331, %p332
      %p334 = scmp.le.s32.totalorder 1, %s22
      %p335 = scmp.lt.s32.totalorder %s22, 3
      %p336 = pnand %p334, %p335
      %p337 = pneg %p336
      // Predicated region
      $region9: #{tpu_custom_call.1} parent=5 // pred_check
        _
      $region10: #{tpu_custom_call.1} parent=5 // pred_check_branch
        %339 = sbr.rel (%p336) target = $region12
      $region11: #{tpu_custom_call.1} parent=5 // pred_region
        %s340 = ssub.s32 %s22, 1
        // Predicated region
        $region13: #{tpu_custom_call.1} parent=11 // pred_check
          %p341 = pneg %p69
        $region14: #{tpu_custom_call.1} parent=11 // pred_check_branch
          %343 = sbr.rel (%p341) target = $region16
        $region15: #{tpu_custom_call.1} parent=11 // pred_region
          _
        $region16: #{tpu_custom_call.1} parent=11 // pred_fallthru
          _
        // Predicated region
        $region17: #{tpu_custom_call.1} parent=11 // pred_check
          %p344 = pneg %p90
        $region18: #{tpu_custom_call.1} parent=11 // pred_check_branch
          %346 = sbr.rel (%p344) target = $region20
        $region19: #{tpu_custom_call.1} parent=11 // pred_region
          _
        $region20: #{tpu_custom_call.1} parent=11 // pred_fallthru
          _
        // Predicated region
        $region21: #{tpu_custom_call.1} parent=11 // pred_check
          %p347 = pneg %p111
        $region22: #{tpu_custom_call.1} parent=11 // pred_check_branch
          %349 = sbr.rel (%p347) target = $region24
        $region23: #{tpu_custom_call.1} parent=11 // pred_region
          _
        $region24: #{tpu_custom_call.1} parent=11 // pred_fallthru
          _
        // Predicated region
        $region25: #{tpu_custom_call.1} parent=11 // pred_check
          %p350 = pneg %p132
        $region26: #{tpu_custom_call.1} parent=11 // pred_check_branch
          %352 = sbr.rel (%p350) target = $region28
        $region27: #{tpu_custom_call.1} parent=11 // pred_region
          _
        $region28: #{tpu_custom_call.1} parent=11 // pred_fallthru
          _
        // Predicated region
        $region29: #{tpu_custom_call.1} parent=11 // pred_check
          %p353 = pneg %p153
        $region30: #{tpu_custom_call.1} parent=11 // pred_check_branch
          %355 = sbr.rel (%p353) target = $region32
        $region31: #{tpu_custom_call.1} parent=11 // pred_region
          _
        $region32: #{tpu_custom_call.1} parent=11 // pred_fallthru
          _
        // Predicated region
        $region33: #{tpu_custom_call.1} parent=11 // pred_check
          %p356 = pneg %p174
        $region34: #{tpu_custom_call.1} parent=11 // pred_check_branch
          %358 = sbr.rel (%p356) target = $region36
        $region35: #{tpu_custom_call.1} parent=11 // pred_region
          _
        $region36: #{tpu_custom_call.1} parent=11 // pred_fallthru
          _
        // Predicated region
        $region37: #{tpu_custom_call.1} parent=11 // pred_check
          %p359 = pneg %p195
        $region38: #{tpu_custom_call.1} parent=11 // pred_check_branch
          %361 = sbr.rel (%p359) target = $region40
        $region39: #{tpu_custom_call.1} parent=11 // pred_region
          _
        $region40: #{tpu_custom_call.1} parent=11 // pred_fallthru
          _
        // Predicated region
        $region41: #{tpu_custom_call.1} parent=11 // pred_check
          %p362 = pneg %p216
        $region42: #{tpu_custom_call.1} parent=11 // pred_check_branch
          %364 = sbr.rel (%p362) target = $region44
        $region43: #{tpu_custom_call.1} parent=11 // pred_region
          _
        $region44: #{tpu_custom_call.1} parent=11 // pred_fallthru
          _
        // Predicated region
        $region45: #{tpu_custom_call.1} parent=11 // pred_check
          %p365 = pneg %p237
        $region46: #{tpu_custom_call.1} parent=11 // pred_check_branch
          %367 = sbr.rel (%p365) target = $region48
        $region47: #{tpu_custom_call.1} parent=11 // pred_region
          _
        $region48: #{tpu_custom_call.1} parent=11 // pred_fallthru
          _
        // Predicated region
        $region49: #{tpu_custom_call.1} parent=11 // pred_check
          %p368 = pneg %p258
        $region50: #{tpu_custom_call.1} parent=11 // pred_check_branch
          %370 = sbr.rel (%p368) target = $region52
        $region51: #{tpu_custom_call.1} parent=11 // pred_region
          _
        $region52: #{tpu_custom_call.1} parent=11 // pred_fallthru
          _
        // Predicated region
        $region53: #{tpu_custom_call.1} parent=11 // pred_check
          %p371 = pneg %p279
        $region54: #{tpu_custom_call.1} parent=11 // pred_check_branch
          %373 = sbr.rel (%p371) target = $region56
        $region55: #{tpu_custom_call.1} parent=11 // pred_region
          _
        $region56: #{tpu_custom_call.1} parent=11 // pred_fallthru
          _
        // Predicated region
        $region57: #{tpu_custom_call.1} parent=11 // pred_check
          %p374 = pneg %p300
        $region58: #{tpu_custom_call.1} parent=11 // pred_check_branch
          %376 = sbr.rel (%p374) target = $region60
        $region59: #{tpu_custom_call.1} parent=11 // pred_region
          _
        $region60: #{tpu_custom_call.1} parent=11 // pred_fallthru
          _
      $region12: #{tpu_custom_call.1} parent=5 // pred_fallthru
        _
      %p377 = scmp.lt.s32.totalorder %s22, 2
      // Predicated region
      $region61: #{tpu_custom_call.1} parent=5 // pred_check
        %p378 = pneg %p377
      $region62: #{tpu_custom_call.1} parent=5 // pred_check_branch
        %380 = sbr.rel (%p378) target = $region64
      $region63: #{tpu_custom_call.1} parent=5 // pred_region
        // Predicated region
        $region65: #{tpu_custom_call.1} parent=63 // pred_check
          %p381 = pneg %p42
        $region66: #{tpu_custom_call.1} parent=63 // pred_check_branch
          %383 = sbr.rel (%p381) target = $region68
        $region67: #{tpu_custom_call.1} parent=63 // pred_region
          %p384 = scmp.lt.s32.totalorder %s22, 1
          %s385 = scalar_select %p384, %s22, 1
          %s386 = smul.addr %s385, 16
          %s387 = smul.addr %s386, 8
          %s388 = scalar_lea.vmem %s0, %s387
        $region68: #{tpu_custom_call.1} parent=63 // pred_fallthru
          _
      $region64: #{tpu_custom_call.1} parent=5 // pred_fallthru
        _
      %p389 = scmp.le.s32.totalorder 1, %s22
      %p390 = scmp.lt.s32.totalorder %s22, 3
      %p391 = pnand %p389, %p390
      %p392 = pneg %p391
      // Predicated region
      $region69: #{tpu_custom_call.1} parent=5 // pred_check
        _
      $region70: #{tpu_custom_call.1} parent=5 // pred_check_branch
        %394 = sbr.rel (%p391) target = $region72
      $region71: #{tpu_custom_call.1} parent=5 // pred_region
        %s395 = ssub.s32 %s22, 1
        %p396 = scmp.lt.s32.totalorder %s27, 1
        %s397 = scalar_select %p396, %s27, 1
        %s398 = smul.addr %s397, 16
        %s399 = smul.addr %s398, 8
        %s400 = scalar_lea.vmem %s0, %s399
        %p401 = pneg %p48
        %p402 = pneg %p45
        %p403 = pneg %p69
        %p404 = pneg %p66
        %p405 = pneg %p90
        %p406 = pneg %p87
        %p407 = pneg %p111
        %p408 = pneg %p108
        %p409 = pneg %p132
        %p410 = pneg %p129
        %p411 = pneg %p153
        %p412 = pneg %p150
        %p413 = pneg %p174
        %p414 = pneg %p171
        %p415 = pneg %p195
        %p416 = pneg %p192
        %p417 = pneg %p216
        %p418 = pneg %p213
        %p419 = pneg %p237
        %p420 = pneg %p234
        %p421 = pneg %p258
        %p422 = pneg %p255
        %p423 = pneg %p279
        %p424 = pneg %p276
        %p425 = pneg %p300
        %p426 = pneg %p297
        %p427 = pneg %p326
        %p428 = pneg %p323
        %s429 = sand.u32 %s313, 1
        %s430 = scalar_lea.sflag [#allocation4], %s429
        %s431 = sand.u32 %s313, 1
        %s432 = smul.addr %s431, 256
        %s433 = scalar_lea.vmem [#allocation3], %s432
        %p434 = scmp.lt.s32.totalorder %s27, 1
        %s435 = scalar_select %p434, %s27, 1
        %s436 = smul.addr %s435, 16
        %s437 = smul.addr %s436, 8
        %s438 = scalar_lea.vmem %s0, %s437
        %v442 = vld [vmem:[%s438] sm:$0xff]
        %v443 = vld [vmem:[%s438 + $0x8] sm:$0xff]
        %v444 = vld [vmem:[%s438 + $0x10] sm:$0xff]
        %v445 = vld [vmem:[%s438 + $0x18] sm:$0xff]
        %v446 = vld [vmem:[%s438 + $0x20] sm:$0xff]
        %v447 = vld [vmem:[%s438 + $0x28] sm:$0xff]
        %v448 = vld [vmem:[%s438 + $0x30] sm:$0xff]
        %v449 = vld [vmem:[%s438 + $0x38] sm:$0xff]
        %v450 = vld [vmem:[%s438 + $0x40] sm:$0xff]
        %v451 = vld [vmem:[%s438 + $0x48] sm:$0xff]
        %v452 = vld [vmem:[%s438 + $0x50] sm:$0xff]
        %v453 = vld [vmem:[%s438 + $0x58] sm:$0xff]
        %v454 = vld [vmem:[%s438 + $0x60] sm:$0xff]
        %v455 = vld [vmem:[%s438 + $0x68] sm:$0xff]
        %v456 = vld [vmem:[%s438 + $0x70] sm:$0xff]
        %v457 = vld [vmem:[%s438 + $0x78] sm:$0xff]
        %v458 = vpack.c.bf16 %v444, %v442
        %v459 = vpack.c.bf16 %v445, %v443
        %v460 = vpack.c.bf16 %v448, %v446
        %v461 = vpack.c.bf16 %v449, %v447
        %v462 = vpack.c.bf16 %v452, %v450
        %v463 = vpack.c.bf16 %v453, %v451
        %v464 = vpack.c.bf16 %v456, %v454
        %v465 = vpack.c.bf16 %v457, %v455
        %v466 = vld [vmem:[%s1] sm:$0xf]
        %v467 = vld [vmem:[%s1 + $0x4] sm:$0xf]
        %v468 = vld [vmem:[%s1 + $0x8] sm:$0xf]
        %v469 = vld [vmem:[%s1 + $0xc] sm:$0xf]
        %v470 = vld [vmem:[%s1 + $0x10] sm:$0xf]
        %v471 = vld [vmem:[%s1 + $0x14] sm:$0xf]
        %v472 = vld [vmem:[%s1 + $0x18] sm:$0xf]
        %v473 = vld [vmem:[%s1 + $0x1c] sm:$0xf]
        %v474 = vld [vmem:[%s2] sm:$0xff]
        %v475 = vld [vmem:[%s2 + $0x8] sm:$0xff]
        %v476 = vld [vmem:[%s2 + $0x10] sm:$0xff]
        %v477 = vld [vmem:[%s2 + $0x18] sm:$0xff]
        %v478 = vld [vmem:[%s2 + $0x20] sm:$0xff]
        %v479 = vld [vmem:[%s2 + $0x28] sm:$0xff]
        %v480 = vld [vmem:[%s2 + $0x30] sm:$0xff]
        %v481 = vld [vmem:[%s2 + $0x38] sm:$0xff]
        %483 = vset.pattern.permute.xlu0 0
        %484 = vperm.xlu0 %483, %v474
        %v485 = vpop.permute.xlu0 %484
        %488 = vset.pattern.permute.xlu0 0
        %489 = vperm.xlu0 %488, %v475
        %v490 = vpop.permute.xlu0 %489
        %493 = vset.pattern.permute.xlu0 0
        %494 = vperm.xlu0 %493, %v476
        %v495 = vpop.permute.xlu0 %494
        %498 = vset.pattern.permute.xlu0 0
        %499 = vperm.xlu0 %498, %v477
        %v500 = vpop.permute.xlu0 %499
        %503 = vset.pattern.permute.xlu0 0
        %504 = vperm.xlu0 %503, %v478
        %v505 = vpop.permute.xlu0 %504
        %508 = vset.pattern.permute.xlu0 0
        %509 = vperm.xlu0 %508, %v479
        %v510 = vpop.permute.xlu0 %509
        %513 = vset.pattern.permute.xlu0 0
        %514 = vperm.xlu0 %513, %v480
        %v515 = vpop.permute.xlu0 %514
        %518 = vset.pattern.permute.xlu0 0
        %519 = vperm.xlu0 %518, %v481
        %v520 = vpop.permute.xlu0 %519
        %v530 = vunpack.c.l.b16 %v466
        %v531 = vunpack.c.l.b16 %v467
        %v532 = vunpack.c.l.b16 %v468
        %v533 = vunpack.c.l.b16 %v469
        %v534 = vunpack.c.l.b16 %v470
        %v535 = vunpack.c.l.b16 %v471
        %v536 = vunpack.c.l.b16 %v472
        %v537 = vunpack.c.l.b16 %v473
        %v538 = vpack.c.b16 %v531, %v530
        %v539 = vpack.c.b16 %v533, %v532
        %v540 = vpack.c.b16 %v535, %v534
        %v541 = vpack.c.b16 %v537, %v536
        %vm542 = vcmask 523264
        %v544 = vsel %vm542, %v538, 0
        %v547 = vsel %vm542, %v539, 0
        %v550 = vsel %vm542, %v540, 0
        %v553 = vsel %vm542, %v541, 0
        %555 = vmatprep.subr.bf16.mxu0 %v459
        %556 = vmatpush1.bf16.msra.mxu0 %v458
        %557 = vmatprep.subr.bf16.mxu0 %v461
        %558 = vmatpush1.bf16.msra.mxu0 %v460
        %559 = vmatprep.subr.bf16.mxu0 %v463
        %560 = vmatpush1.bf16.msra.mxu0 %v462
        %561 = vmatprep.subr.bf16.mxu0 %v465
        %562 = vmatpush1.bf16.msra.mxu0 %v464
        %563 = vmatprep.subr.bf16.mxu0 0
        %564 = vmatpush1.bf16.msra.mxu0 0
        %565 = vmatprep.subr.bf16.mxu0 0
        %566 = vmatpush1.bf16.msra.mxu0 0
        %567 = vmatprep.subr.bf16.mxu0 0
        %568 = vmatpush1.bf16.msra.mxu0 0
        %569 = vmatprep.subr.bf16.mxu0 0
        %570 = vmatpush1.bf16.msra.mxu0 0
        %571 = vmatprep.subr.bf16.mxu0 0
        %572 = vmatpush1.bf16.msra.mxu0 0
        %573 = vmatprep.subr.bf16.mxu0 0
        %574 = vmatpush1.bf16.msra.mxu0 0
        %575 = vmatprep.subr.bf16.mxu0 0
        %576 = vmatpush1.bf16.msra.mxu0 0
        %577 = vmatprep.subr.bf16.mxu0 0
        %578 = vmatpush1.bf16.msra.mxu0 0
        %579 = vmatprep.subr.bf16.mxu0 0
        %580 = vmatpush1.bf16.msra.mxu0 0
        %581 = vmatprep.subr.bf16.mxu0 0
        %582 = vmatpush1.bf16.msra.mxu0 0
        %583 = vmatprep.subr.bf16.mxu0 0
        %584 = vmatpush1.bf16.msra.mxu0 0
        %585 = vmatprep.subr.bf16.mxu0 0
        %586 = vmatpush1.bf16.msra.mxu0 0
        %587 = vmatprep.mubr.bf16.mxu0 0
        %588 = vmatmul.mubr.bf16.gmra.mrb[0].mxu0 %v544
        %v589 = vpop.f32.mrb[0].mxu0
        %v590 = vadd.f32 %v485, %v589
        %v591 = vpop.f32.mrb[0].mxu0
        %v592 = vadd.f32 %v485, %v591
        %v593 = vpop.f32.mrb[0].mxu0
        %v594 = vadd.f32 %v490, %v593
        %v595 = vpop.f32.mrb[0].mxu0
        %v596 = vadd.f32 %v490, %v595
        %597 = vmatprep.mubr.bf16.mxu0 0
        %598 = vmatmul.mubr.bf16.gmra.mrb[0].mxu0 %v547
        %v599 = vpop.f32.mrb[0].mxu0
        %v600 = vadd.f32 %v495, %v599
        %v601 = vpop.f32.mrb[0].mxu0
        %v602 = vadd.f32 %v495, %v601
        %v603 = vpop.f32.mrb[0].mxu0
        %v604 = vadd.f32 %v500, %v603
        %v605 = vpop.f32.mrb[0].mxu0
        %v606 = vadd.f32 %v500, %v605
        %607 = vmatprep.mubr.bf16.mxu0 0
        %608 = vmatmul.mubr.bf16.gmra.mrb[0].mxu0 %v550
        %v609 = vpop.f32.mrb[0].mxu0
        %v610 = vadd.f32 %v505, %v609
        %v611 = vpop.f32.mrb[0].mxu0
        %v612 = vadd.f32 %v505, %v611
        %v613 = vpop.f32.mrb[0].mxu0
        %v614 = vadd.f32 %v510, %v613
        %v615 = vpop.f32.mrb[0].mxu0
        %v616 = vadd.f32 %v510, %v615
        %617 = vmatprep.mubr.bf16.mxu0 0
        %618 = vmatmul.mubr.bf16.gmra.mrb[0].mxu0 %v553
        %v619 = vpop.f32.mrb[0].mxu0
        %v620 = vadd.f32 %v515, %v619
        %v621 = vpop.f32.mrb[0].mxu0
        %v622 = vadd.f32 %v515, %v621
        %v623 = vpop.f32.mrb[0].mxu0
        %v624 = vadd.f32 %v520, %v623
        %v625 = vpop.f32.mrb[0].mxu0
        %v626 = vadd.f32 %v520, %v625
        %627 = vdwg.mxu0
        %v628 = vmax.f32 %v590, 0.0
        %v629 = vmax.f32 %v592, 0.0
        %v630 = vmax.f32 %v594, 0.0
        %v631 = vmax.f32 %v596, 0.0
        %v632 = vmax.f32 %v600, 0.0
        %v633 = vmax.f32 %v602, 0.0
        %v634 = vmax.f32 %v604, 0.0
        %v635 = vmax.f32 %v606, 0.0
        %v636 = vmax.f32 %v610, 0.0
        %v637 = vmax.f32 %v612, 0.0
        %v638 = vmax.f32 %v614, 0.0
        %v639 = vmax.f32 %v616, 0.0
        %v640 = vmax.f32 %v620, 0.0
        %v641 = vmax.f32 %v622, 0.0
        %v642 = vmax.f32 %v624, 0.0
        %v643 = vmax.f32 %v626, 0.0
        %644 = vst [vmem:[#allocation2] sm:$0xff] 0
        %645 = vst [vmem:[#allocation2 + $0x8] sm:$0xff] 0
        %646 = vst [vmem:[#allocation2 + $0x10] sm:$0xff] 0
        %647 = vst [vmem:[#allocation2 + $0x18] sm:$0xff] 0
        %648 = vst [vmem:[#allocation2 + $0x20] sm:$0xff] 0
        %649 = vst [vmem:[#allocation2 + $0x28] sm:$0xff] 0
        %650 = vst [vmem:[#allocation2 + $0x30] sm:$0xff] 0
        %651 = vst [vmem:[#allocation2 + $0x38] sm:$0xff] 0
        %652 = vst [vmem:[#allocation2 + $0x40] sm:$0xff] 0
        %653 = vst [vmem:[#allocation2 + $0x48] sm:$0xff] 0
        %654 = vst [vmem:[#allocation2 + $0x50] sm:$0xff] 0
        %655 = vst [vmem:[#allocation2 + $0x58] sm:$0xff] 0
        %656 = vst [vmem:[#allocation2 + $0x60] sm:$0xff] 0
        %657 = vst [vmem:[#allocation2 + $0x68] sm:$0xff] 0
        %658 = vst [vmem:[#allocation2 + $0x70] sm:$0xff] 0
        %659 = vst [vmem:[#allocation2 + $0x78] sm:$0xff] 0
        %v660 = vpack.c.bf16 %v630, %v628
        %v661 = vpack.c.bf16 %v631, %v629
        %v662 = vpack.c.bf16 %v634, %v632
        %v663 = vpack.c.bf16 %v635, %v633
        %v664 = vpack.c.bf16 %v638, %v636
        %v665 = vpack.c.bf16 %v639, %v637
        %v666 = vpack.c.bf16 %v642, %v640
        %v667 = vpack.c.bf16 %v643, %v641
        %668 = vst [vmem:[#allocation2 + $0x8] sm:$0xff] %v660
        %669 = vst [vmem:[#allocation2 + $0x10] sm:$0xff] %v661
        %670 = vst [vmem:[#allocation2 + $0x28] sm:$0xff] %v662
        %671 = vst [vmem:[#allocation2 + $0x30] sm:$0xff] %v663
        %672 = vst [vmem:[#allocation2 + $0x48] sm:$0xff] %v664
        %673 = vst [vmem:[#allocation2 + $0x50] sm:$0xff] %v665
        %674 = vst [vmem:[#allocation2 + $0x68] sm:$0xff] %v666
        %675 = vst [vmem:[#allocation2 + $0x70] sm:$0xff] %v667
        %v676 = vlaneseq
        %v677 = vand.u32 %v676, 127
        %v678 = vadd.s32 %v677, 128
        %vm679 = vcmp.lt.s32.totalorder %v677, 0
        %v680 = vsub.s32 0, %v677
        %v681 = vsel %vm679, %v680, %v677
        %v682 = vshrl.u32 %v681, 4
        %v683 = vand.u32 %v681, 15
        %v684 = vsub.s32 0, %v683
        %v685 = vsel %vm679, %v684, %v683
        %vm686 = vcmp.lt.s32.totalorder %v678, 0
        %v687 = vsub.s32 0, %v678
        %v688 = vsel %vm686, %v687, %v678
        %v689 = vshrl.u32 %v688, 4
        %v690 = vand.u32 %v688, 15
        %v691 = vsub.s32 0, %v690
        %v692 = vsel %vm686, %v691, %v690
        %vm693 = vcmp.ne.s32.totalorder %v685, 0
        %vm694 = vcmp.ne.s32.totalorder %v692, 0
        %vm695 = vcmp.lt.s32.totalorder %v685, 0
        %vm696 = vcmp.lt.s32.totalorder %v692, 0
        %vm697 = vmand %vm695, %vm693
        %vm698 = vmand %vm696, %vm694
        %v699 = vadd.s32 %v685, 16
        %v700 = vadd.s32 %v692, 16
        %v701 = vsel %vm697, %v699, %v685
        %v702 = vsel %vm698, %v700, %v692
        %vm703 = vcmp.gt.s32.totalorder %v701, 0
        %vm704 = vcmp.gt.s32.totalorder %v702, 0
        %vm705 = vcmp.lt.s32.totalorder %v701, 15
        %vm706 = vcmp.lt.s32.totalorder %v702, 15
        %v707 = vld [vmem:[#allocation2] sm:$0xff]
        %v708 = vld [vmem:[#allocation2 + $0x8] sm:$0xff]
        %v709 = vld [vmem:[#allocation2 + $0x10] sm:$0xff]
        %v710 = vld [vmem:[#allocation2 + $0x20] sm:$0xff]
        %v711 = vld [vmem:[#allocation2 + $0x28] sm:$0xff]
        %v712 = vld [vmem:[#allocation2 + $0x30] sm:$0xff]
        %v713 = vld [vmem:[#allocation2 + $0x40] sm:$0xff]
        %v714 = vld [vmem:[#allocation2 + $0x48] sm:$0xff]
        %v715 = vld [vmem:[#allocation2 + $0x50] sm:$0xff]
        %v716 = vld [vmem:[#allocation2 + $0x60] sm:$0xff]
        %v717 = vld [vmem:[#allocation2 + $0x68] sm:$0xff]
        %v718 = vld [vmem:[#allocation2 + $0x70] sm:$0xff]
        %v719 = vsel %vm703, 1, 0
        %v720 = vsel %vm704, 1, 0
        %vm721 = vcmp.eq.s32.totalorder %v719, 1
        %vm722 = vcmp.eq.s32.totalorder %v720, 1
        %vm723 = vmpackc.low %vm722, %vm721
        %v724 = vsel %vm723, 65537, 0
        %v725 = vlaneseq
        %v726 = vshrl.u32 %v725, 7
        %v727 = vsub.s32 0, %v726
        %v728 = vrot.slane %v724, %v727
        %v729 = vlaneseq
        %v730 = vshrl.u32 %v729, 7
        %v731 = vsub.s32 4, %v730
        %v732 = vrot.slane %v724, %v731
        %733 = vrot.lane.b32.xlu0 %v728, 111
        %v734 = vpop.permute.xlu0 %733
        %735 = vrot.lane.b32.xlu0 %v732, 111
        %v736 = vpop.permute.xlu0 %735
        %vm737 = vcmask 908288
        %v738 = vsel %vm737, %v734, %v736
        %vm739 = vcmp.ne.s16.totalorder %v734, 0
        %vm740 = vcmp.ne.s16.totalorder %v738, 0
        %vm741 = vcmp.ne.s16.totalorder %v736, 0
        %v742 = vsel %vm739, %v707, 0
        %v743 = vsel %vm740, %v708, 0
        %v744 = vsel %vm741, %v709, 0
        %v745 = vsel %vm739, %v710, 0
        %v746 = vsel %vm740, %v711, 0
        %v747 = vsel %vm741, %v712, 0
        %v748 = vsel %vm739, %v713, 0
        %v749 = vsel %vm740, %v714, 0
        %v750 = vsel %vm741, %v715, 0
        %v751 = vsel %vm739, %v716, 0
        %v752 = vsel %vm740, %v717, 0
        %v753 = vsel %vm741, %v718, 0
        %v754 = vsel %vm705, 1, 0
        %v755 = vsel %vm706, 1, 0
        %vm756 = vcmp.eq.s32.totalorder %v754, 1
        %vm757 = vcmp.eq.s32.totalorder %v755, 1
        %vm758 = vmpackc.low %vm757, %vm756
        %v759 = vsel %vm758, 65537, 0
        %v760 = vlaneseq
        %v761 = vshrl.u32 %v760, 7
        %v762 = vsub.s32 0, %v761
        %v763 = vrot.slane %v759, %v762
        %v764 = vlaneseq
        %v765 = vshrl.u32 %v764, 7
        %v766 = vsub.s32 4, %v765
        %v767 = vrot.slane %v759, %v766
        %768 = vrot.lane.b32.xlu0 %v763, 113
        %v769 = vpop.permute.xlu0 %768
        %770 = vrot.lane.b32.xlu0 %v767, 113
        %v771 = vpop.permute.xlu0 %770
        %vm772 = vcmask 924672
        %v773 = vsel %vm772, %v769, %v771
        %vm774 = vcmp.ne.s16.totalorder %v769, 0
        %vm775 = vcmp.ne.s16.totalorder %v773, 0
        %vm776 = vcmp.ne.s16.totalorder %v771, 0
        %v777 = vsel %vm774, %v707, 0
        %v778 = vsel %vm775, %v708, 0
        %v779 = vsel %vm776, %v709, 0
        %v780 = vsel %vm774, %v710, 0
        %v781 = vsel %vm775, %v711, 0
        %v782 = vsel %vm776, %v712, 0
        %v783 = vsel %vm774, %v713, 0
        %v784 = vsel %vm775, %v714, 0
        %v785 = vsel %vm776, %v715, 0
        %v786 = vsel %vm774, %v716, 0
        %v787 = vsel %vm775, %v717, 0
        %v788 = vsel %vm776, %v718, 0
        %789 = vrot.lane.b32.xlu0 %v728, 127
        %v790 = vpop.permute.xlu0 %789
        %791 = vrot.lane.b32.xlu0 %v732, 127
        %v792 = vpop.permute.xlu0 %791
        %vm793 = vcmask 1039360
        %v794 = vsel %vm793, %v790, %v792
        %vm795 = vcmp.ne.s16.totalorder %v790, 0
        %vm796 = vcmp.ne.s16.totalorder %v794, 0
        %vm797 = vcmp.ne.s16.totalorder %v792, 0
        %v798 = vsel %vm795, %v707, 0
        %v799 = vsel %vm796, %v708, 0
        %v800 = vsel %vm797, %v709, 0
        %v801 = vsel %vm795, %v710, 0
        %v802 = vsel %vm796, %v711, 0
        %v803 = vsel %vm797, %v712, 0
        %v804 = vsel %vm795, %v713, 0
        %v805 = vsel %vm796, %v714, 0
        %v806 = vsel %vm797, %v715, 0
        %v807 = vsel %vm795, %v716, 0
        %v808 = vsel %vm796, %v717, 0
        %v809 = vsel %vm797, %v718, 0
        %v810 = vld [vmem:[#allocation2 + $0x8] sm:$0xff]
        %v811 = vld [vmem:[#allocation2 + $0x10] sm:$0xff]
        %v812 = vld [vmem:[#allocation2 + $0x18] sm:$0xff]
        %v813 = vld [vmem:[#allocation2 + $0x28] sm:$0xff]
        %v814 = vld [vmem:[#allocation2 + $0x30] sm:$0xff]
        %v815 = vld [vmem:[#allocation2 + $0x38] sm:$0xff]
        %v816 = vld [vmem:[#allocation2 + $0x48] sm:$0xff]
        %v817 = vld [vmem:[#allocation2 + $0x50] sm:$0xff]
        %v818 = vld [vmem:[#allocation2 + $0x58] sm:$0xff]
        %v819 = vld [vmem:[#allocation2 + $0x68] sm:$0xff]
        %v820 = vld [vmem:[#allocation2 + $0x70] sm:$0xff]
        %v821 = vld [vmem:[#allocation2 + $0x78] sm:$0xff]
        %822 = vrot.lane.b32.xlu0 %v763, 1
        %v823 = vpop.permute.xlu0 %822
        %824 = vrot.lane.b32.xlu0 %v767, 1
        %v825 = vpop.permute.xlu0 %824
        %vm826 = vcmask 7168
        %v827 = vsel %vm826, %v823, %v825
        %vm828 = vcmp.ne.s16.totalorder %v823, 0
        %vm829 = vcmp.ne.s16.totalorder %v827, 0
        %vm830 = vcmp.ne.s16.totalorder %v825, 0
        %v831 = vsel %vm828, %v810, 0
        %v832 = vsel %vm829, %v811, 0
        %v833 = vsel %vm830, %v812, 0
        %v834 = vsel %vm828, %v813, 0
        %v835 = vsel %vm829, %v814, 0
        %v836 = vsel %vm830, %v815, 0
        %v837 = vsel %vm828, %v816, 0
        %v838 = vsel %vm829, %v817, 0
        %v839 = vsel %vm830, %v818, 0
        %v840 = vsel %vm828, %v819, 0
        %v841 = vsel %vm829, %v820, 0
        %v842 = vsel %vm830, %v821, 0
        %843 = vrot.lane.b32.xlu0 %v728, 15
        %v844 = vpop.permute.xlu0 %843
        %845 = vrot.lane.b32.xlu0 %v732, 15
        %v846 = vpop.permute.xlu0 %845
        %vm847 = vcmask 121856
        %v848 = vsel %vm847, %v844, %v846
        %vm849 = vcmp.ne.s16.totalorder %v844, 0
        %vm850 = vcmp.ne.s16.totalorder %v848, 0
        %vm851 = vcmp.ne.s16.totalorder %v846, 0
        %v852 = vsel %vm849, %v810, 0
        %v853 = vsel %vm850, %v811, 0
        %v854 = vsel %vm851, %v812, 0
        %v855 = vsel %vm849, %v813, 0
        %v856 = vsel %vm850, %v814, 0
        %v857 = vsel %vm851, %v815, 0
        %v858 = vsel %vm849, %v816, 0
        %v859 = vsel %vm850, %v817, 0
        %v860 = vsel %vm851, %v818, 0
        %v861 = vsel %vm849, %v819, 0
        %v862 = vsel %vm850, %v820, 0
        %v863 = vsel %vm851, %v821, 0
        %864 = vrot.lane.b32.xlu0 %v763, 17
        %v865 = vpop.permute.xlu0 %864
        %866 = vrot.lane.b32.xlu0 %v767, 17
        %v867 = vpop.permute.xlu0 %866
        %vm868 = vcmask 138240
        %v869 = vsel %vm868, %v865, %v867
        %vm870 = vcmp.ne.s16.totalorder %v865, 0
        %vm871 = vcmp.ne.s16.totalorder %v869, 0
        %vm872 = vcmp.ne.s16.totalorder %v867, 0
        %v873 = vsel %vm870, %v810, 0
        %v874 = vsel %vm871, %v811, 0
        %v875 = vsel %vm872, %v812, 0
        %v876 = vsel %vm870, %v813, 0
        %v877 = vsel %vm871, %v814, 0
        %v878 = vsel %vm872, %v815, 0
        %v879 = vsel %vm870, %v816, 0
        %v880 = vsel %vm871, %v817, 0
        %v881 = vsel %vm872, %v818, 0
        %v882 = vsel %vm870, %v819, 0
        %v883 = vsel %vm871, %v820, 0
        %v884 = vsel %vm872, %v821, 0
        %897 = vrot.lane.b32.xlu0 %v707, 127
        %v898 = vpop.permute.xlu0 %897
        %899 = vrot.lane.b32.xlu0 %v708, 127
        %v900 = vpop.permute.xlu0 %899
        %901 = vrot.lane.b32.xlu0 %v709, 127
        %v902 = vpop.permute.xlu0 %901
        %903 = vrot.lane.b32.xlu0 %v710, 127
        %v904 = vpop.permute.xlu0 %903
        %905 = vrot.lane.b32.xlu0 %v711, 127
        %v906 = vpop.permute.xlu0 %905
        %907 = vrot.lane.b32.xlu0 %v712, 127
        %v908 = vpop.permute.xlu0 %907
        %909 = vrot.lane.b32.xlu0 %v713, 127
        %v910 = vpop.permute.xlu0 %909
        %911 = vrot.lane.b32.xlu0 %v714, 127
        %v912 = vpop.permute.xlu0 %911
        %913 = vrot.lane.b32.xlu0 %v715, 127
        %v914 = vpop.permute.xlu0 %913
        %915 = vrot.lane.b32.xlu0 %v716, 127
        %v916 = vpop.permute.xlu0 %915
        %917 = vrot.lane.b32.xlu0 %v717, 127
        %v918 = vpop.permute.xlu0 %917
        %919 = vrot.lane.b32.xlu0 %v718, 127
        %v920 = vpop.permute.xlu0 %919
        %v921 = vsel %vm793, %v898, %v900
        %v922 = vsel %vm793, %v900, %v902
        %v923 = vsel %vm793, %v904, %v906
        %v924 = vsel %vm793, %v906, %v908
        %v925 = vsel %vm793, %v910, %v912
        %v926 = vsel %vm793, %v912, %v914
        %v927 = vsel %vm793, %v916, %v918
        %v928 = vsel %vm793, %v918, %v920
        %941 = vrot.lane.b32.xlu0 %v777, 126
        %v942 = vpop.permute.xlu0 %941
        %943 = vrot.lane.b32.xlu0 %v778, 126
        %v944 = vpop.permute.xlu0 %943
        %945 = vrot.lane.b32.xlu0 %v779, 126
        %v946 = vpop.permute.xlu0 %945
        %947 = vrot.lane.b32.xlu0 %v780, 126
        %v948 = vpop.permute.xlu0 %947
        %949 = vrot.lane.b32.xlu0 %v781, 126
        %v950 = vpop.permute.xlu0 %949
        %951 = vrot.lane.b32.xlu0 %v782, 126
        %v952 = vpop.permute.xlu0 %951
        %953 = vrot.lane.b32.xlu0 %v783, 126
        %v954 = vpop.permute.xlu0 %953
        %955 = vrot.lane.b32.xlu0 %v784, 126
        %v956 = vpop.permute.xlu0 %955
        %957 = vrot.lane.b32.xlu0 %v785, 126
        %v958 = vpop.permute.xlu0 %957
        %959 = vrot.lane.b32.xlu0 %v786, 126
        %v960 = vpop.permute.xlu0 %959
        %961 = vrot.lane.b32.xlu0 %v787, 126
        %v962 = vpop.permute.xlu0 %961
        %963 = vrot.lane.b32.xlu0 %v788, 126
        %v964 = vpop.permute.xlu0 %963
        %vm965 = vcmask 1031168
        %v966 = vsel %vm965, %v942, %v944
        %v967 = vsel %vm965, %v944, %v946
        %v968 = vsel %vm965, %v948, %v950
        %v969 = vsel %vm965, %v950, %v952
        %v970 = vsel %vm965, %v954, %v956
        %v971 = vsel %vm965, %v956, %v958
        %v972 = vsel %vm965, %v960, %v962
        %v973 = vsel %vm965, %v962, %v964
        %986 = vrot.lane.b32.xlu0 %v798, 112
        %v987 = vpop.permute.xlu0 %986
        %988 = vrot.lane.b32.xlu0 %v799, 112
        %v989 = vpop.permute.xlu0 %988
        %990 = vrot.lane.b32.xlu0 %v800, 112
        %v991 = vpop.permute.xlu0 %990
        %992 = vrot.lane.b32.xlu0 %v801, 112
        %v993 = vpop.permute.xlu0 %992
        %994 = vrot.lane.b32.xlu0 %v802, 112
        %v995 = vpop.permute.xlu0 %994
        %996 = vrot.lane.b32.xlu0 %v803, 112
        %v997 = vpop.permute.xlu0 %996
        %998 = vrot.lane.b32.xlu0 %v804, 112
        %v999 = vpop.permute.xlu0 %998
        %1000 = vrot.lane.b32.xlu0 %v805, 112
        %v1001 = vpop.permute.xlu0 %1000
        %1002 = vrot.lane.b32.xlu0 %v806, 112
        %v1003 = vpop.permute.xlu0 %1002
        %1004 = vrot.lane.b32.xlu0 %v807, 112
        %v1005 = vpop.permute.xlu0 %1004
        %1006 = vrot.lane.b32.xlu0 %v808, 112
        %v1007 = vpop.permute.xlu0 %1006
        %1008 = vrot.lane.b32.xlu0 %v809, 112
        %v1009 = vpop.permute.xlu0 %1008
        %vm1010 = vcmask 916480
        %v1011 = vsel %vm1010, %v987, %v989
        %v1012 = vsel %vm1010, %v989, %v991
        %v1013 = vsel %vm1010, %v993, %v995
        %v1014 = vsel %vm1010, %v995, %v997
        %v1015 = vsel %vm1010, %v999, %v1001
        %v1016 = vsel %vm1010, %v1001, %v1003
        %v1017 = vsel %vm1010, %v1005, %v1007
        %v1018 = vsel %vm1010, %v1007, %v1009
        %1019 = vrot.lane.b32.xlu0 %v708, 111
        %v1020 = vpop.permute.xlu0 %1019
        %1021 = vrot.lane.b32.xlu0 %v709, 111
        %v1022 = vpop.permute.xlu0 %1021
        %1023 = vrot.lane.b32.xlu0 %v711, 111
        %v1024 = vpop.permute.xlu0 %1023
        %1025 = vrot.lane.b32.xlu0 %v712, 111
        %v1026 = vpop.permute.xlu0 %1025
        %1027 = vrot.lane.b32.xlu0 %v714, 111
        %v1028 = vpop.permute.xlu0 %1027
        %1029 = vrot.lane.b32.xlu0 %v715, 111
        %v1030 = vpop.permute.xlu0 %1029
        %1031 = vrot.lane.b32.xlu0 %v717, 111
        %v1032 = vpop.permute.xlu0 %1031
        %1033 = vrot.lane.b32.xlu0 %v718, 111
        %v1034 = vpop.permute.xlu0 %1033
        %v1035 = vsel %vm737, %v1020, %v1022
        %v1036 = vsel %vm737, %v1024, %v1026
        %v1037 = vsel %vm737, %v1028, %v1030
        %v1038 = vsel %vm737, %v1032, %v1034
        %1051 = vrot.lane.b32.xlu0 %v831, 110
        %v1052 = vpop.permute.xlu0 %1051
        %1053 = vrot.lane.b32.xlu0 %v832, 110
        %v1054 = vpop.permute.xlu0 %1053
        %1055 = vrot.lane.b32.xlu0 %v833, 110
        %v1056 = vpop.permute.xlu0 %1055
        %1057 = vrot.lane.b32.xlu0 %v834, 110
        %v1058 = vpop.permute.xlu0 %1057
        %1059 = vrot.lane.b32.xlu0 %v835, 110
        %v1060 = vpop.permute.xlu0 %1059
        %1061 = vrot.lane.b32.xlu0 %v836, 110
        %v1062 = vpop.permute.xlu0 %1061
        %1063 = vrot.lane.b32.xlu0 %v837, 110
        %v1064 = vpop.permute.xlu0 %1063
        %1065 = vrot.lane.b32.xlu0 %v838, 110
        %v1066 = vpop.permute.xlu0 %1065
        %1067 = vrot.lane.b32.xlu0 %v839, 110
        %v1068 = vpop.permute.xlu0 %1067
        %1069 = vrot.lane.b32.xlu0 %v840, 110
        %v1070 = vpop.permute.xlu0 %1069
        %1071 = vrot.lane.b32.xlu0 %v841, 110
        %v1072 = vpop.permute.xlu0 %1071
        %1073 = vrot.lane.b32.xlu0 %v842, 110
        %v1074 = vpop.permute.xlu0 %1073
        %vm1075 = vcmask 900096
        %v1076 = vsel %vm1075, %v1052, %v1054
        %v1077 = vsel %vm1075, %v1054, %v1056
        %v1078 = vsel %vm1075, %v1058, %v1060
        %v1079 = vsel %vm1075, %v1060, %v1062
        %v1080 = vsel %vm1075, %v1064, %v1066
        %v1081 = vsel %vm1075, %v1066, %v1068
        %v1082 = vsel %vm1075, %v1070, %v1072
        %v1083 = vsel %vm1075, %v1072, %v1074
        %1096 = vrot.lane.b32.xlu0 %v852, 96
        %v1097 = vpop.permute.xlu0 %1096
        %1098 = vrot.lane.b32.xlu0 %v853, 96
        %v1099 = vpop.permute.xlu0 %1098
        %1100 = vrot.lane.b32.xlu0 %v854, 96
        %v1101 = vpop.permute.xlu0 %1100
        %1102 = vrot.lane.b32.xlu0 %v855, 96
        %v1103 = vpop.permute.xlu0 %1102
        %1104 = vrot.lane.b32.xlu0 %v856, 96
        %v1105 = vpop.permute.xlu0 %1104
        %1106 = vrot.lane.b32.xlu0 %v857, 96
        %v1107 = vpop.permute.xlu0 %1106
        %1108 = vrot.lane.b32.xlu0 %v858, 96
        %v1109 = vpop.permute.xlu0 %1108
        %1110 = vrot.lane.b32.xlu0 %v859, 96
        %v1111 = vpop.permute.xlu0 %1110
        %1112 = vrot.lane.b32.xlu0 %v860, 96
        %v1113 = vpop.permute.xlu0 %1112
        %1114 = vrot.lane.b32.xlu0 %v861, 96
        %v1115 = vpop.permute.xlu0 %1114
        %1116 = vrot.lane.b32.xlu0 %v862, 96
        %v1117 = vpop.permute.xlu0 %1116
        %1118 = vrot.lane.b32.xlu0 %v863, 96
        %v1119 = vpop.permute.xlu0 %1118
        %vm1120 = vcmask 785408
        %v1121 = vsel %vm1120, %v1097, %v1099
        %v1122 = vsel %vm1120, %v1099, %v1101
        %v1123 = vsel %vm1120, %v1103, %v1105
        %v1124 = vsel %vm1120, %v1105, %v1107
        %v1125 = vsel %vm1120, %v1109, %v1111
        %v1126 = vsel %vm1120, %v1111, %v1113
        %v1127 = vsel %vm1120, %v1115, %v1117
        %v1128 = vsel %vm1120, %v1117, %v1119
        %1141 = vrot.lane.b32.xlu0 %v810, 95
        %v1142 = vpop.permute.xlu0 %1141
        %1143 = vrot.lane.b32.xlu0 %v811, 95
        %v1144 = vpop.permute.xlu0 %1143
        %1145 = vrot.lane.b32.xlu0 %v812, 95
        %v1146 = vpop.permute.xlu0 %1145
        %1147 = vrot.lane.b32.xlu0 %v813, 95
        %v1148 = vpop.permute.xlu0 %1147
        %1149 = vrot.lane.b32.xlu0 %v814, 95
        %v1150 = vpop.permute.xlu0 %1149
        %1151 = vrot.lane.b32.xlu0 %v815, 95
        %v1152 = vpop.permute.xlu0 %1151
        %1153 = vrot.lane.b32.xlu0 %v816, 95
        %v1154 = vpop.permute.xlu0 %1153
        %1155 = vrot.lane.b32.xlu0 %v817, 95
        %v1156 = vpop.permute.xlu0 %1155
        %1157 = vrot.lane.b32.xlu0 %v818, 95
        %v1158 = vpop.permute.xlu0 %1157
        %1159 = vrot.lane.b32.xlu0 %v819, 95
        %v1160 = vpop.permute.xlu0 %1159
        %1161 = vrot.lane.b32.xlu0 %v820, 95
        %v1162 = vpop.permute.xlu0 %1161
        %1163 = vrot.lane.b32.xlu0 %v821, 95
        %v1164 = vpop.permute.xlu0 %1163
        %vm1165 = vcmask 777216
        %v1166 = vsel %vm1165, %v1142, %v1144
        %v1167 = vsel %vm1165, %v1144, %v1146
        %v1168 = vsel %vm1165, %v1148, %v1150
        %v1169 = vsel %vm1165, %v1150, %v1152
        %v1170 = vsel %vm1165, %v1154, %v1156
        %v1171 = vsel %vm1165, %v1156, %v1158
        %v1172 = vsel %vm1165, %v1160, %v1162
        %v1173 = vsel %vm1165, %v1162, %v1164
        %1186 = vrot.lane.b32.xlu0 %v873, 94
        %v1187 = vpop.permute.xlu0 %1186
        %1188 = vrot.lane.b32.xlu0 %v874, 94
        %v1189 = vpop.permute.xlu0 %1188
        %1190 = vrot.lane.b32.xlu0 %v875, 94
        %v1191 = vpop.permute.xlu0 %1190
        %1192 = vrot.lane.b32.xlu0 %v876, 94
        %v1193 = vpop.permute.xlu0 %1192
        %1194 = vrot.lane.b32.xlu0 %v877, 94
        %v1195 = vpop.permute.xlu0 %1194
        %1196 = vrot.lane.b32.xlu0 %v878, 94
        %v1197 = vpop.permute.xlu0 %1196
        %1198 = vrot.lane.b32.xlu0 %v879, 94
        %v1199 = vpop.permute.xlu0 %1198
        %1200 = vrot.lane.b32.xlu0 %v880, 94
        %v1201 = vpop.permute.xlu0 %1200
        %1202 = vrot.lane.b32.xlu0 %v881, 94
        %v1203 = vpop.permute.xlu0 %1202
        %1204 = vrot.lane.b32.xlu0 %v882, 94
        %v1205 = vpop.permute.xlu0 %1204
        %1206 = vrot.lane.b32.xlu0 %v883, 94
        %v1207 = vpop.permute.xlu0 %1206
        %1208 = vrot.lane.b32.xlu0 %v884, 94
        %v1209 = vpop.permute.xlu0 %1208
        %vm1210 = vcmask 769024
        %v1211 = vsel %vm1210, %v1187, %v1189
        %v1212 = vsel %vm1210, %v1189, %v1191
        %v1213 = vsel %vm1210, %v1193, %v1195
        %v1214 = vsel %vm1210, %v1195, %v1197
        %v1215 = vsel %vm1210, %v1199, %v1201
        %v1216 = vsel %vm1210, %v1201, %v1203
        %v1217 = vsel %vm1210, %v1205, %v1207
        %v1218 = vsel %vm1210, %v1207, %v1209
        %v1219 = vld [vmem:[%s3] sm:$0xff]
        %v1220 = vld [vmem:[%s3 + $0x8] sm:$0xff]
        %v1221 = vld [vmem:[%s3 + $0x10] sm:$0xf]
        %v1222 = vld [vmem:[%s3 + $0x14] sm:$0xff]
        %v1223 = vld [vmem:[%s3 + $0x1c] sm:$0xff]
        %v1224 = vld [vmem:[%s3 + $0x24] sm:$0xf]
        %v1225 = vld [vmem:[%s3 + $0x28] sm:$0xff]
        %v1226 = vld [vmem:[%s3 + $0x30] sm:$0xff]
        %v1227 = vld [vmem:[%s3 + $0x38] sm:$0xf]
        %v1228 = vld [vmem:[%s3 + $0x3c] sm:$0xff]
        %v1229 = vld [vmem:[%s3 + $0x44] sm:$0xff]
        %v1230 = vld [vmem:[%s3 + $0x4c] sm:$0xf]
        %v1231 = vld [vmem:[%s3 + $0x50] sm:$0xff]
        %v1232 = vld [vmem:[%s3 + $0x58] sm:$0xff]
        %v1233 = vld [vmem:[%s3 + $0x60] sm:$0xf]
        %v1234 = vld [vmem:[%s3 + $0x64] sm:$0xff]
        %v1235 = vld [vmem:[%s3 + $0x6c] sm:$0xff]
        %v1236 = vld [vmem:[%s3 + $0x74] sm:$0xf]
        %v1237 = vld [vmem:[%s3 + $0x78] sm:$0xff]
        %v1238 = vld [vmem:[%s3 + $0x80] sm:$0xff]
        %v1239 = vld [vmem:[%s3 + $0x88] sm:$0xf]
        %v1240 = vld [vmem:[%s3 + $0x8c] sm:$0xff]
        %v1241 = vld [vmem:[%s3 + $0x94] sm:$0xff]
        %v1242 = vld [vmem:[%s3 + $0x9c] sm:$0xf]
        %v1243 = vld [vmem:[%s4] sm:$0xff]
        %v1244 = vld [vmem:[%s4 + $0x8] sm:$0xff]
        %v1245 = vld [vmem:[%s4 + $0x10] sm:$0xff]
        %v1246 = vld [vmem:[%s4 + $0x18] sm:$0xff]
        %v1247 = vld [vmem:[%s4 + $0x20] sm:$0xff]
        %v1248 = vld [vmem:[%s4 + $0x28] sm:$0xff]
        %v1249 = vld [vmem:[%s4 + $0x30] sm:$0xff]
        %v1250 = vld [vmem:[%s4 + $0x38] sm:$0xff]
        %1252 = vset.pattern.permute.xlu0 0
        %1253 = vperm.xlu0 %1252, %v1243
        %v1254 = vpop.permute.xlu0 %1253
        %1257 = vset.pattern.permute.xlu0 0
        %1258 = vperm.xlu0 %1257, %v1244
        %v1259 = vpop.permute.xlu0 %1258
        %1262 = vset.pattern.permute.xlu0 0
        %1263 = vperm.xlu0 %1262, %v1245
        %v1264 = vpop.permute.xlu0 %1263
        %1267 = vset.pattern.permute.xlu0 0
        %1268 = vperm.xlu0 %1267, %v1246
        %v1269 = vpop.permute.xlu0 %1268
        %1272 = vset.pattern.permute.xlu0 0
        %1273 = vperm.xlu0 %1272, %v1247
        %v1274 = vpop.permute.xlu0 %1273
        %1277 = vset.pattern.permute.xlu0 0
        %1278 = vperm.xlu0 %1277, %v1248
        %v1279 = vpop.permute.xlu0 %1278
        %1282 = vset.pattern.permute.xlu0 0
        %1283 = vperm.xlu0 %1282, %v1249
        %v1284 = vpop.permute.xlu0 %1283
        %1287 = vset.pattern.permute.xlu0 0
        %1288 = vperm.xlu0 %1287, %v1250
        %v1289 = vpop.permute.xlu0 %1288
        %v1315 = vunpack.c.l.b16 %v1219
        %v1316 = vunpack.c.h.b16 %v1219
        %v1317 = vunpack.c.l.b16 %v1220
        %v1318 = vunpack.c.h.b16 %v1220
        %v1319 = vunpack.c.l.b16 %v1221
        %v1320 = vunpack.c.l.b16 %v1222
        %v1321 = vunpack.c.h.b16 %v1222
        %v1322 = vunpack.c.l.b16 %v1223
        %v1323 = vunpack.c.h.b16 %v1223
        %v1324 = vunpack.c.l.b16 %v1224
        %v1325 = vunpack.c.l.b16 %v1225
        %v1326 = vunpack.c.h.b16 %v1225
        %v1327 = vunpack.c.l.b16 %v1226
        %v1328 = vunpack.c.h.b16 %v1226
        %v1329 = vunpack.c.l.b16 %v1227
        %v1330 = vunpack.c.l.b16 %v1228
        %v1331 = vunpack.c.h.b16 %v1228
        %v1332 = vunpack.c.l.b16 %v1229
        %v1333 = vunpack.c.h.b16 %v1229
        %v1334 = vunpack.c.l.b16 %v1230
        %v1335 = vunpack.c.l.b16 %v1231
        %v1336 = vunpack.c.h.b16 %v1231
        %v1337 = vunpack.c.l.b16 %v1232
        %v1338 = vunpack.c.h.b16 %v1232
        %v1339 = vunpack.c.l.b16 %v1233
        %v1340 = vunpack.c.l.b16 %v1234
        %v1341 = vunpack.c.h.b16 %v1234
        %v1342 = vunpack.c.l.b16 %v1235
        %v1343 = vunpack.c.h.b16 %v1235
        %v1344 = vunpack.c.l.b16 %v1236
        %v1345 = vunpack.c.l.b16 %v1237
        %v1346 = vunpack.c.h.b16 %v1237
        %v1347 = vunpack.c.l.b16 %v1238
        %v1348 = vunpack.c.h.b16 %v1238
        %v1349 = vunpack.c.l.b16 %v1239
        %v1350 = vunpack.c.l.b16 %v1240
        %v1351 = vunpack.c.h.b16 %v1240
        %v1352 = vunpack.c.l.b16 %v1241
        %v1353 = vunpack.c.h.b16 %v1241
        %v1354 = vunpack.c.l.b16 %v1242
        %v1355 = vpack.c.b16 %v1320, %v1315
        %v1356 = vpack.c.b16 %v1321, %v1316
        %v1357 = vpack.c.b16 %v1322, %v1317
        %v1358 = vpack.c.b16 %v1323, %v1318
        %v1359 = vpack.c.b16 %v1324, %v1319
        %v1360 = vpack.c.b16 %v1330, %v1325
        %v1361 = vpack.c.b16 %v1331, %v1326
        %v1362 = vpack.c.b16 %v1332, %v1327
        %v1363 = vpack.c.b16 %v1333, %v1328
        %v1364 = vpack.c.b16 %v1334, %v1329
        %v1365 = vpack.c.b16 %v1340, %v1335
        %v1366 = vpack.c.b16 %v1341, %v1336
        %v1367 = vpack.c.b16 %v1342, %v1337
        %v1368 = vpack.c.b16 %v1343, %v1338
        %v1369 = vpack.c.b16 %v1344, %v1339
        %v1370 = vpack.c.b16 %v1350, %v1345
        %v1371 = vpack.c.b16 %v1351, %v1346
        %v1372 = vpack.c.b16 %v1352, %v1347
        %v1373 = vpack.c.b16 %v1353, %v1348
        %v1374 = vpack.c.b16 %v1354, %v1349
        %1403 = vrot.lane.b32.xlu0 %v742, 17
        %v1404 = vpop.permute.xlu0 %1403
        %1405 = vrot.lane.b32.xlu0 %v743, 17
        %v1406 = vpop.permute.xlu0 %1405
        %1407 = vrot.lane.b32.xlu0 %v744, 17
        %v1408 = vpop.permute.xlu0 %1407
        %1409 = vrot.lane.b32.xlu0 %v745, 17
        %v1410 = vpop.permute.xlu0 %1409
        %1411 = vrot.lane.b32.xlu0 %v746, 17
        %v1412 = vpop.permute.xlu0 %1411
        %1413 = vrot.lane.b32.xlu0 %v747, 17
        %v1414 = vpop.permute.xlu0 %1413
        %1415 = vrot.lane.b32.xlu0 %v748, 17
        %v1416 = vpop.permute.xlu0 %1415
        %1417 = vrot.lane.b32.xlu0 %v749, 17
        %v1418 = vpop.permute.xlu0 %1417
        %1419 = vrot.lane.b32.xlu0 %v750, 17
        %v1420 = vpop.permute.xlu0 %1419
        %1421 = vrot.lane.b32.xlu0 %v751, 17
        %v1422 = vpop.permute.xlu0 %1421
        %1423 = vrot.lane.b32.xlu0 %v752, 17
        %v1424 = vpop.permute.xlu0 %1423
        %1425 = vrot.lane.b32.xlu0 %v753, 17
        %v1426 = vpop.permute.xlu0 %1425
        %1427 = vrot.lane.b32.xlu0 %v921, 17
        %v1428 = vpop.permute.xlu0 %1427
        %1429 = vrot.lane.b32.xlu0 %v922, 17
        %v1430 = vpop.permute.xlu0 %1429
        %1431 = vrot.lane.b32.xlu0 %v902, 17
        %v1432 = vpop.permute.xlu0 %1431
        %1433 = vrot.lane.b32.xlu0 %v923, 17
        %v1434 = vpop.permute.xlu0 %1433
        %1435 = vrot.lane.b32.xlu0 %v924, 17
        %v1436 = vpop.permute.xlu0 %1435
        %1437 = vrot.lane.b32.xlu0 %v908, 17
        %v1438 = vpop.permute.xlu0 %1437
        %1439 = vrot.lane.b32.xlu0 %v925, 17
        %v1440 = vpop.permute.xlu0 %1439
        %1441 = vrot.lane.b32.xlu0 %v926, 17
        %v1442 = vpop.permute.xlu0 %1441
        %1443 = vrot.lane.b32.xlu0 %v914, 17
        %v1444 = vpop.permute.xlu0 %1443
        %1445 = vrot.lane.b32.xlu0 %v927, 17
        %v1446 = vpop.permute.xlu0 %1445
        %1447 = vrot.lane.b32.xlu0 %v928, 17
        %v1448 = vpop.permute.xlu0 %1447
        %1449 = vrot.lane.b32.xlu0 %v920, 17
        %v1450 = vpop.permute.xlu0 %1449
        %1451 = vrot.lane.b32.xlu0 %v966, 17
        %v1452 = vpop.permute.xlu0 %1451
        %1453 = vrot.lane.b32.xlu0 %v967, 17
        %v1454 = vpop.permute.xlu0 %1453
        %1455 = vrot.lane.b32.xlu0 %v946, 17
        %v1456 = vpop.permute.xlu0 %1455
        %1457 = vrot.lane.b32.xlu0 %v968, 17
        %v1458 = vpop.permute.xlu0 %1457
        %1459 = vrot.lane.b32.xlu0 %v969, 17
        %v1460 = vpop.permute.xlu0 %1459
        %1461 = vrot.lane.b32.xlu0 %v952, 17
        %v1462 = vpop.permute.xlu0 %1461
        %1463 = vrot.lane.b32.xlu0 %v970, 17
        %v1464 = vpop.permute.xlu0 %1463
        %1465 = vrot.lane.b32.xlu0 %v971, 17
        %v1466 = vpop.permute.xlu0 %1465
        %1467 = vrot.lane.b32.xlu0 %v958, 17
        %v1468 = vpop.permute.xlu0 %1467
        %1469 = vrot.lane.b32.xlu0 %v972, 17
        %v1470 = vpop.permute.xlu0 %1469
        %1471 = vrot.lane.b32.xlu0 %v973, 17
        %v1472 = vpop.permute.xlu0 %1471
        %1473 = vrot.lane.b32.xlu0 %v964, 17
        %v1474 = vpop.permute.xlu0 %1473
        %1475 = vrot.lane.b32.xlu0 %v1011, 17
        %v1476 = vpop.permute.xlu0 %1475
        %1477 = vrot.lane.b32.xlu0 %v1012, 17
        %v1478 = vpop.permute.xlu0 %1477
        %1479 = vrot.lane.b32.xlu0 %v991, 17
        %v1480 = vpop.permute.xlu0 %1479
        %1481 = vrot.lane.b32.xlu0 %v1013, 17
        %v1482 = vpop.permute.xlu0 %1481
        %1483 = vrot.lane.b32.xlu0 %v1014, 17
        %v1484 = vpop.permute.xlu0 %1483
        %1485 = vrot.lane.b32.xlu0 %v997, 17
        %v1486 = vpop.permute.xlu0 %1485
        %1487 = vrot.lane.b32.xlu0 %v1015, 17
        %v1488 = vpop.permute.xlu0 %1487
        %1489 = vrot.lane.b32.xlu0 %v1016, 17
        %v1490 = vpop.permute.xlu0 %1489
        %1491 = vrot.lane.b32.xlu0 %v1003, 17
        %v1492 = vpop.permute.xlu0 %1491
        %1493 = vrot.lane.b32.xlu0 %v1017, 17
        %v1494 = vpop.permute.xlu0 %1493
        %1495 = vrot.lane.b32.xlu0 %v1018, 17
        %v1496 = vpop.permute.xlu0 %1495
        %1497 = vrot.lane.b32.xlu0 %v1009, 17
        %v1498 = vpop.permute.xlu0 %1497
        %1499 = vrot.lane.b32.xlu0 %v1020, 17
        %v1500 = vpop.permute.xlu0 %1499
        %1501 = vrot.lane.b32.xlu0 %v1035, 17
        %v1502 = vpop.permute.xlu0 %1501
        %1503 = vrot.lane.b32.xlu0 %v1022, 17
        %v1504 = vpop.permute.xlu0 %1503
        %1505 = vrot.lane.b32.xlu0 %v1024, 17
        %v1506 = vpop.permute.xlu0 %1505
        %1507 = vrot.lane.b32.xlu0 %v1036, 17
        %v1508 = vpop.permute.xlu0 %1507
        %1509 = vrot.lane.b32.xlu0 %v1026, 17
        %v1510 = vpop.permute.xlu0 %1509
        %1511 = vrot.lane.b32.xlu0 %v1028, 17
        %v1512 = vpop.permute.xlu0 %1511
        %1513 = vrot.lane.b32.xlu0 %v1037, 17
        %v1514 = vpop.permute.xlu0 %1513
        %1515 = vrot.lane.b32.xlu0 %v1030, 17
        %v1516 = vpop.permute.xlu0 %1515
        %1517 = vrot.lane.b32.xlu0 %v1032, 17
        %v1518 = vpop.permute.xlu0 %1517
        %1519 = vrot.lane.b32.xlu0 %v1038, 17
        %v1520 = vpop.permute.xlu0 %1519
        %1521 = vrot.lane.b32.xlu0 %v1034, 17
        %v1522 = vpop.permute.xlu0 %1521
        %1523 = vrot.lane.b32.xlu0 %v1052, 17
        %v1524 = vpop.permute.xlu0 %1523
        %1525 = vrot.lane.b32.xlu0 %v1076, 17
        %v1526 = vpop.permute.xlu0 %1525
        %1527 = vrot.lane.b32.xlu0 %v1077, 17
        %v1528 = vpop.permute.xlu0 %1527
        %1529 = vrot.lane.b32.xlu0 %v1058, 17
        %v1530 = vpop.permute.xlu0 %1529
        %1531 = vrot.lane.b32.xlu0 %v1078, 17
        %v1532 = vpop.permute.xlu0 %1531
        %1533 = vrot.lane.b32.xlu0 %v1079, 17
        %v1534 = vpop.permute.xlu0 %1533
        %1535 = vrot.lane.b32.xlu0 %v1064, 17
        %v1536 = vpop.permute.xlu0 %1535
        %1537 = vrot.lane.b32.xlu0 %v1080, 17
        %v1538 = vpop.permute.xlu0 %1537
        %1539 = vrot.lane.b32.xlu0 %v1081, 17
        %v1540 = vpop.permute.xlu0 %1539
        %1541 = vrot.lane.b32.xlu0 %v1070, 17
        %v1542 = vpop.permute.xlu0 %1541
        %1543 = vrot.lane.b32.xlu0 %v1082, 17
        %v1544 = vpop.permute.xlu0 %1543
        %1545 = vrot.lane.b32.xlu0 %v1083, 17
        %v1546 = vpop.permute.xlu0 %1545
        %1547 = vrot.lane.b32.xlu0 %v1097, 17
        %v1548 = vpop.permute.xlu0 %1547
        %1549 = vrot.lane.b32.xlu0 %v1121, 17
        %v1550 = vpop.permute.xlu0 %1549
        %1551 = vrot.lane.b32.xlu0 %v1122, 17
        %v1552 = vpop.permute.xlu0 %1551
        %1553 = vrot.lane.b32.xlu0 %v1103, 17
        %v1554 = vpop.permute.xlu0 %1553
        %1555 = vrot.lane.b32.xlu0 %v1123, 17
        %v1556 = vpop.permute.xlu0 %1555
        %1557 = vrot.lane.b32.xlu0 %v1124, 17
        %v1558 = vpop.permute.xlu0 %1557
        %1559 = vrot.lane.b32.xlu0 %v1109, 17
        %v1560 = vpop.permute.xlu0 %1559
        %1561 = vrot.lane.b32.xlu0 %v1125, 17
        %v1562 = vpop.permute.xlu0 %1561
        %1563 = vrot.lane.b32.xlu0 %v1126, 17
        %v1564 = vpop.permute.xlu0 %1563
        %1565 = vrot.lane.b32.xlu0 %v1115, 17
        %v1566 = vpop.permute.xlu0 %1565
        %1567 = vrot.lane.b32.xlu0 %v1127, 17
        %v1568 = vpop.permute.xlu0 %1567
        %1569 = vrot.lane.b32.xlu0 %v1128, 17
        %v1570 = vpop.permute.xlu0 %1569
        %1571 = vrot.lane.b32.xlu0 %v1142, 17
        %v1572 = vpop.permute.xlu0 %1571
        %1573 = vrot.lane.b32.xlu0 %v1166, 17
        %v1574 = vpop.permute.xlu0 %1573
        %1575 = vrot.lane.b32.xlu0 %v1167, 17
        %v1576 = vpop.permute.xlu0 %1575
        %1577 = vrot.lane.b32.xlu0 %v1148, 17
        %v1578 = vpop.permute.xlu0 %1577
        %1579 = vrot.lane.b32.xlu0 %v1168, 17
        %v1580 = vpop.permute.xlu0 %1579
        %1581 = vrot.lane.b32.xlu0 %v1169, 17
        %v1582 = vpop.permute.xlu0 %1581
        %1583 = vrot.lane.b32.xlu0 %v1154, 17
        %v1584 = vpop.permute.xlu0 %1583
        %1585 = vrot.lane.b32.xlu0 %v1170, 17
        %v1586 = vpop.permute.xlu0 %1585
        %1587 = vrot.lane.b32.xlu0 %v1171, 17
        %v1588 = vpop.permute.xlu0 %1587
        %1589 = vrot.lane.b32.xlu0 %v1160, 17
        %v1590 = vpop.permute.xlu0 %1589
        %1591 = vrot.lane.b32.xlu0 %v1172, 17
        %v1592 = vpop.permute.xlu0 %1591
        %1593 = vrot.lane.b32.xlu0 %v1173, 17
        %v1594 = vpop.permute.xlu0 %1593
        %1595 = vrot.lane.b32.xlu0 %v1187, 17
        %v1596 = vpop.permute.xlu0 %1595
        %1597 = vrot.lane.b32.xlu0 %v1211, 17
        %v1598 = vpop.permute.xlu0 %1597
        %1599 = vrot.lane.b32.xlu0 %v1212, 17
        %v1600 = vpop.permute.xlu0 %1599
        %1601 = vrot.lane.b32.xlu0 %v1193, 17
        %v1602 = vpop.permute.xlu0 %1601
        %1603 = vrot.lane.b32.xlu0 %v1213, 17
        %v1604 = vpop.permute.xlu0 %1603
        %1605 = vrot.lane.b32.xlu0 %v1214, 17
        %v1606 = vpop.permute.xlu0 %1605
        %1607 = vrot.lane.b32.xlu0 %v1199, 17
        %v1608 = vpop.permute.xlu0 %1607
        %1609 = vrot.lane.b32.xlu0 %v1215, 17
        %v1610 = vpop.permute.xlu0 %1609
        %1611 = vrot.lane.b32.xlu0 %v1216, 17
        %v1612 = vpop.permute.xlu0 %1611
        %1613 = vrot.lane.b32.xlu0 %v1205, 17
        %v1614 = vpop.permute.xlu0 %1613
        %1615 = vrot.lane.b32.xlu0 %v1217, 17
        %v1616 = vpop.permute.xlu0 %1615
        %1617 = vrot.lane.b32.xlu0 %v1218, 17
        %v1618 = vpop.permute.xlu0 %1617
        %v1619 = vsel %vm868, %v1404, %v1406
        %v1620 = vsel %vm868, %v1406, %v1408
        %v1621 = vsel %vm868, %v1410, %v1412
        %v1622 = vsel %vm868, %v1412, %v1414
        %v1623 = vsel %vm868, %v1416, %v1418
        %v1624 = vsel %vm868, %v1418, %v1420
        %v1625 = vsel %vm868, %v1422, %v1424
        %v1626 = vsel %vm868, %v1424, %v1426
        %v1627 = vsel %vm868, %v1428, %v1430
        %v1628 = vsel %vm868, %v1430, %v1432
        %v1629 = vsel %vm868, %v1434, %v1436
        %v1630 = vsel %vm868, %v1436, %v1438
        %v1631 = vsel %vm868, %v1440, %v1442
        %v1632 = vsel %vm868, %v1442, %v1444
        %v1633 = vsel %vm868, %v1446, %v1448
        %v1634 = vsel %vm868, %v1448, %v1450
        %v1635 = vsel %vm868, %v1452, %v1454
        %v1636 = vsel %vm868, %v1454, %v1456
        %v1637 = vsel %vm868, %v1458, %v1460
        %v1638 = vsel %vm868, %v1460, %v1462
        %v1639 = vsel %vm868, %v1464, %v1466
        %v1640 = vsel %vm868, %v1466, %v1468
        %v1641 = vsel %vm868, %v1470, %v1472
        %v1642 = vsel %vm868, %v1472, %v1474
        %v1643 = vsel %vm868, %v1476, %v1478
        %v1644 = vsel %vm868, %v1478, %v1480
        %v1645 = vsel %vm868, %v1482, %v1484
        %v1646 = vsel %vm868, %v1484, %v1486
        %v1647 = vsel %vm868, %v1488, %v1490
        %v1648 = vsel %vm868, %v1490, %v1492
        %v1649 = vsel %vm868, %v1494, %v1496
        %v1650 = vsel %vm868, %v1496, %v1498
        %v1651 = vsel %vm868, %v1500, %v1502
        %v1652 = vsel %vm868, %v1502, %v1504
        %v1653 = vsel %vm868, %v1506, %v1508
        %v1654 = vsel %vm868, %v1508, %v1510
        %v1655 = vsel %vm868, %v1512, %v1514
        %v1656 = vsel %vm868, %v1514, %v1516
        %v1657 = vsel %vm868, %v1518, %v1520
        %v1658 = vsel %vm868, %v1520, %v1522
        %v1659 = vsel %vm868, %v1524, %v1526
        %v1660 = vsel %vm868, %v1526, %v1528
        %v1661 = vsel %vm868, %v1530, %v1532
        %v1662 = vsel %vm868, %v1532, %v1534
        %v1663 = vsel %vm868, %v1536, %v1538
        %v1664 = vsel %vm868, %v1538, %v1540
        %v1665 = vsel %vm868, %v1542, %v1544
        %v1666 = vsel %vm868, %v1544, %v1546
        %v1667 = vsel %vm868, %v1548, %v1550
        %v1668 = vsel %vm868, %v1550, %v1552
        %v1669 = vsel %vm868, %v1554, %v1556
        %v1670 = vsel %vm868, %v1556, %v1558
        %v1671 = vsel %vm868, %v1560, %v1562
        %v1672 = vsel %vm868, %v1562, %v1564
        %v1673 = vsel %vm868, %v1566, %v1568
        %v1674 = vsel %vm868, %v1568, %v1570
        %v1675 = vsel %vm868, %v1572, %v1574
        %v1676 = vsel %vm868, %v1574, %v1576
        %v1677 = vsel %vm868, %v1578, %v1580
        %v1678 = vsel %vm868, %v1580, %v1582
        %v1679 = vsel %vm868, %v1584, %v1586
        %v1680 = vsel %vm868, %v1586, %v1588
        %v1681 = vsel %vm868, %v1590, %v1592
        %v1682 = vsel %vm868, %v1592, %v1594
        %v1683 = vsel %vm868, %v1596, %v1598
        %v1684 = vsel %vm868, %v1598, %v1600
        %v1685 = vsel %vm868, %v1602, %v1604
        %v1686 = vsel %vm868, %v1604, %v1606
        %v1687 = vsel %vm868, %v1608, %v1610
        %v1688 = vsel %vm868, %v1610, %v1612
        %v1689 = vsel %vm868, %v1614, %v1616
        %v1690 = vsel %vm868, %v1616, %v1618
        %v1764 = vsel %vm542, %v1359, 0
        %v1767 = vsel %vm542, %v1364, 0
        %v1770 = vsel %vm542, %v1369, 0
        %v1773 = vsel %vm542, %v1374, 0
        %1775 = vmatprep.subr.bf16.mxu0 %v1620
        %1776 = vmatpush1.bf16.msra.mxu0 %v1619
        %1777 = vmatprep.subr.bf16.mxu0 %v1622
        %1778 = vmatpush1.bf16.msra.mxu0 %v1621
        %1779 = vmatprep.subr.bf16.mxu0 %v1624
        %1780 = vmatpush1.bf16.msra.mxu0 %v1623
        %1781 = vmatprep.subr.bf16.mxu0 %v1626
        %1782 = vmatpush1.bf16.msra.mxu0 %v1625
        %1783 = vmatprep.subr.bf16.mxu0 %v1628
        %1784 = vmatpush1.bf16.msra.mxu0 %v1627
        %1785 = vmatprep.subr.bf16.mxu0 %v1630
        %1786 = vmatpush1.bf16.msra.mxu0 %v1629
        %1787 = vmatprep.subr.bf16.mxu0 %v1632
        %1788 = vmatpush1.bf16.msra.mxu0 %v1631
        %1789 = vmatprep.subr.bf16.mxu0 %v1634
        %1790 = vmatpush1.bf16.msra.mxu0 %v1633
        %1791 = vmatprep.subr.bf16.mxu0 %v1636
        %1792 = vmatpush1.bf16.msra.mxu0 %v1635
        %1793 = vmatprep.subr.bf16.mxu0 %v1638
        %1794 = vmatpush1.bf16.msra.mxu0 %v1637
        %1795 = vmatprep.subr.bf16.mxu0 %v1640
        %1796 = vmatpush1.bf16.msra.mxu0 %v1639
        %1797 = vmatprep.subr.bf16.mxu0 %v1642
        %1798 = vmatpush1.bf16.msra.mxu0 %v1641
        %1799 = vmatprep.subr.bf16.mxu0 %v1644
        %1800 = vmatpush1.bf16.msra.mxu0 %v1643
        %1801 = vmatprep.subr.bf16.mxu0 %v1646
        %1802 = vmatpush1.bf16.msra.mxu0 %v1645
        %1803 = vmatprep.subr.bf16.mxu0 %v1648
        %1804 = vmatpush1.bf16.msra.mxu0 %v1647
        %1805 = vmatprep.subr.bf16.mxu0 %v1650
        %1806 = vmatpush1.bf16.msra.mxu0 %v1649
        %1807 = vmatprep.mubr.bf16.mxu0 %v1356
        %1808 = vmatmul.mubr.bf16.gmra.mrb[0].mxu0 %v1355
        %v1809 = vpop.f32.mrb[0].mxu0
        %v1810 = vadd.f32 %v1254, %v1809
        %v1811 = vpop.f32.mrb[0].mxu0
        %v1812 = vadd.f32 %v1254, %v1811
        %v1813 = vpop.f32.mrb[0].mxu0
        %v1814 = vadd.f32 %v1259, %v1813
        %v1815 = vpop.f32.mrb[0].mxu0
        %v1816 = vadd.f32 %v1259, %v1815
        %1817 = vmatprep.mubr.bf16.mxu0 %v1361
        %1818 = vmatmul.mubr.bf16.gmra.mrb[0].mxu0 %v1360
        %v1819 = vpop.f32.mrb[0].mxu0
        %v1820 = vadd.f32 %v1264, %v1819
        %v1821 = vpop.f32.mrb[0].mxu0
        %v1822 = vadd.f32 %v1264, %v1821
        %v1823 = vpop.f32.mrb[0].mxu0
        %v1824 = vadd.f32 %v1269, %v1823
        %v1825 = vpop.f32.mrb[0].mxu0
        %v1826 = vadd.f32 %v1269, %v1825
        %1827 = vmatprep.mubr.bf16.mxu0 %v1366
        %1828 = vmatmul.mubr.bf16.gmra.mrb[0].mxu0 %v1365
        %v1829 = vpop.f32.mrb[0].mxu0
        %v1830 = vadd.f32 %v1274, %v1829
        %v1831 = vpop.f32.mrb[0].mxu0
        %v1832 = vadd.f32 %v1274, %v1831
        %v1833 = vpop.f32.mrb[0].mxu0
        %v1834 = vadd.f32 %v1279, %v1833
        %v1835 = vpop.f32.mrb[0].mxu0
        %v1836 = vadd.f32 %v1279, %v1835
        %1837 = vmatprep.mubr.bf16.mxu0 %v1371
        %1838 = vmatmul.mubr.bf16.gmra.mrb[0].mxu0 %v1370
        %v1839 = vpop.f32.mrb[0].mxu0
        %v1840 = vadd.f32 %v1284, %v1839
        %v1841 = vpop.f32.mrb[0].mxu0
        %v1842 = vadd.f32 %v1284, %v1841
        %v1843 = vpop.f32.mrb[0].mxu0
        %v1844 = vadd.f32 %v1289, %v1843
        %v1845 = vpop.f32.mrb[0].mxu0
        %v1846 = vadd.f32 %v1289, %v1845
        %1847 = vdwg.mxu0
        %1848 = vmatprep.subr.bf16.mxu0 %v1652
        %1849 = vmatpush1.bf16.msra.mxu0 %v1651
        %1850 = vmatprep.subr.bf16.mxu0 %v1654
        %1851 = vmatpush1.bf16.msra.mxu0 %v1653
        %1852 = vmatprep.subr.bf16.mxu0 %v1656
        %1853 = vmatpush1.bf16.msra.mxu0 %v1655
        %1854 = vmatprep.subr.bf16.mxu0 %v1658
        %1855 = vmatpush1.bf16.msra.mxu0 %v1657
        %1856 = vmatprep.subr.bf16.mxu0 %v1660
        %1857 = vmatpush1.bf16.msra.mxu0 %v1659
        %1858 = vmatprep.subr.bf16.mxu0 %v1662
        %1859 = vmatpush1.bf16.msra.mxu0 %v1661
        %1860 = vmatprep.subr.bf16.mxu0 %v1664
        %1861 = vmatpush1.bf16.msra.mxu0 %v1663
        %1862 = vmatprep.subr.bf16.mxu0 %v1666
        %1863 = vmatpush1.bf16.msra.mxu0 %v1665
        %1864 = vmatprep.subr.bf16.mxu0 %v1668
        %1865 = vmatpush1.bf16.msra.mxu0 %v1667
        %1866 = vmatprep.subr.bf16.mxu0 %v1670
        %1867 = vmatpush1.bf16.msra.mxu0 %v1669
        %1868 = vmatprep.subr.bf16.mxu0 %v1672
        %1869 = vmatpush1.bf16.msra.mxu0 %v1671
        %1870 = vmatprep.subr.bf16.mxu0 %v1674
        %1871 = vmatpush1.bf16.msra.mxu0 %v1673
        %1872 = vmatprep.subr.bf16.mxu0 %v1676
        %1873 = vmatpush1.bf16.msra.mxu0 %v1675
        %1874 = vmatprep.subr.bf16.mxu0 %v1678
        %1875 = vmatpush1.bf16.msra.mxu0 %v1677
        %1876 = vmatprep.subr.bf16.mxu0 %v1680
        %1877 = vmatpush1.bf16.msra.mxu0 %v1679
        %1878 = vmatprep.subr.bf16.mxu0 %v1682
        %1879 = vmatpush1.bf16.msra.mxu0 %v1681
        %1880 = vmatprep.mubr.bf16.mxu0 %v1358
        %1881 = vmatmul.mubr.bf16.gmra.mrb[0].mxu0 %v1357
        %v1882 = vpop.f32.mrb[0].mxu0
        %v1883 = vadd.f32 %v1810, %v1882
        %v1884 = vpop.f32.mrb[0].mxu0
        %v1885 = vadd.f32 %v1812, %v1884
        %v1886 = vpop.f32.mrb[0].mxu0
        %v1887 = vadd.f32 %v1814, %v1886
        %v1888 = vpop.f32.mrb[0].mxu0
        %v1889 = vadd.f32 %v1816, %v1888
        %1890 = vmatprep.mubr.bf16.mxu0 %v1363
        %1891 = vmatmul.mubr.bf16.gmra.mrb[0].mxu0 %v1362
        %v1892 = vpop.f32.mrb[0].mxu0
        %v1893 = vadd.f32 %v1820, %v1892
        %v1894 = vpop.f32.mrb[0].mxu0
        %v1895 = vadd.f32 %v1822, %v1894
        %v1896 = vpop.f32.mrb[0].mxu0
        %v1897 = vadd.f32 %v1824, %v1896
        %v1898 = vpop.f32.mrb[0].mxu0
        %v1899 = vadd.f32 %v1826, %v1898
        %1900 = vmatprep.mubr.bf16.mxu0 %v1368
        %1901 = vmatmul.mubr.bf16.gmra.mrb[0].mxu0 %v1367
        %v1902 = vpop.f32.mrb[0].mxu0
        %v1903 = vadd.f32 %v1830, %v1902
        %v1904 = vpop.f32.mrb[0].mxu0
        %v1905 = vadd.f32 %v1832, %v1904
        %v1906 = vpop.f32.mrb[0].mxu0
        %v1907 = vadd.f32 %v1834, %v1906
        %v1908 = vpop.f32.mrb[0].mxu0
        %v1909 = vadd.f32 %v1836, %v1908
        %1910 = vmatprep.mubr.bf16.mxu0 %v1373
        %1911 = vmatmul.mubr.bf16.gmra.mrb[0].mxu0 %v1372
        %v1912 = vpop.f32.mrb[0].mxu0
        %v1913 = vadd.f32 %v1840, %v1912
        %v1914 = vpop.f32.mrb[0].mxu0
        %v1915 = vadd.f32 %v1842, %v1914
        %v1916 = vpop.f32.mrb[0].mxu0
        %v1917 = vadd.f32 %v1844, %v1916
        %v1918 = vpop.f32.mrb[0].mxu0
        %v1919 = vadd.f32 %v1846, %v1918
        %1920 = vdwg.mxu0
        %1921 = vmatprep.subr.bf16.mxu0 %v1684
        %1922 = vmatpush1.bf16.msra.mxu0 %v1683
        %1923 = vmatprep.subr.bf16.mxu0 %v1686
        %1924 = vmatpush1.bf16.msra.mxu0 %v1685
        %1925 = vmatprep.subr.bf16.mxu0 %v1688
        %1926 = vmatpush1.bf16.msra.mxu0 %v1687
        %1927 = vmatprep.subr.bf16.mxu0 %v1690
        %1928 = vmatpush1.bf16.msra.mxu0 %v1689
        %1929 = vmatprep.subr.bf16.mxu0 0
        %1930 = vmatpush1.bf16.msra.mxu0 0
        %1931 = vmatprep.subr.bf16.mxu0 0
        %1932 = vmatpush1.bf16.msra.mxu0 0
        %1933 = vmatprep.subr.bf16.mxu0 0
        %1934 = vmatpush1.bf16.msra.mxu0 0
        %1935 = vmatprep.subr.bf16.mxu0 0
        %1936 = vmatpush1.bf16.msra.mxu0 0
        %1937 = vmatprep.subr.bf16.mxu0 0
        %1938 = vmatpush1.bf16.msra.mxu0 0
        %1939 = vmatprep.subr.bf16.mxu0 0
        %1940 = vmatpush1.bf16.msra.mxu0 0
        %1941 = vmatprep.subr.bf16.mxu0 0
        %1942 = vmatpush1.bf16.msra.mxu0 0
        %1943 = vmatprep.subr.bf16.mxu0 0
        %1944 = vmatpush1.bf16.msra.mxu0 0
        %1945 = vmatprep.subr.bf16.mxu0 0
        %1946 = vmatpush1.bf16.msra.mxu0 0
        %1947 = vmatprep.subr.bf16.mxu0 0
        %1948 = vmatpush1.bf16.msra.mxu0 0
        %1949 = vmatprep.subr.bf16.mxu0 0
        %1950 = vmatpush1.bf16.msra.mxu0 0
        %1951 = vmatprep.subr.bf16.mxu0 0
        %1952 = vmatpush1.bf16.msra.mxu0 0
        %1953 = vmatprep.mubr.bf16.mxu0 0
        %1954 = vmatmul.mubr.bf16.gmra.mrb[0].mxu0 %v1764
        %v1955 = vpop.f32.mrb[0].mxu0
        %v1956 = vadd.f32 %v1883, %v1955
        %v1957 = vpop.f32.mrb[0].mxu0
        %v1958 = vadd.f32 %v1885, %v1957
        %v1959 = vpop.f32.mrb[0].mxu0
        %v1960 = vadd.f32 %v1887, %v1959
        %v1961 = vpop.f32.mrb[0].mxu0
        %v1962 = vadd.f32 %v1889, %v1961
        %1963 = vmatprep.mubr.bf16.mxu0 0
        %1964 = vmatmul.mubr.bf16.gmra.mrb[0].mxu0 %v1767
        %v1965 = vpop.f32.mrb[0].mxu0
        %v1966 = vadd.f32 %v1893, %v1965
        %v1967 = vpop.f32.mrb[0].mxu0
        %v1968 = vadd.f32 %v1895, %v1967
        %v1969 = vpop.f32.mrb[0].mxu0
        %v1970 = vadd.f32 %v1897, %v1969
        %v1971 = vpop.f32.mrb[0].mxu0
        %v1972 = vadd.f32 %v1899, %v1971
        %1973 = vmatprep.mubr.bf16.mxu0 0
        %1974 = vmatmul.mubr.bf16.gmra.mrb[0].mxu0 %v1770
        %v1975 = vpop.f32.mrb[0].mxu0
        %v1976 = vadd.f32 %v1903, %v1975
        %v1977 = vpop.f32.mrb[0].mxu0
        %v1978 = vadd.f32 %v1905, %v1977
        %v1979 = vpop.f32.mrb[0].mxu0
        %v1980 = vadd.f32 %v1907, %v1979
        %v1981 = vpop.f32.mrb[0].mxu0
        %v1982 = vadd.f32 %v1909, %v1981
        %1983 = vmatprep.mubr.bf16.mxu0 0
        %1984 = vmatmul.mubr.bf16.gmra.mrb[0].mxu0 %v1773
        %v1985 = vpop.f32.mrb[0].mxu0
        %v1986 = vadd.f32 %v1913, %v1985
        %v1987 = vpop.f32.mrb[0].mxu0
        %v1988 = vadd.f32 %v1915, %v1987
        %v1989 = vpop.f32.mrb[0].mxu0
        %v1990 = vadd.f32 %v1917, %v1989
        %v1991 = vpop.f32.mrb[0].mxu0
        %v1992 = vadd.f32 %v1919, %v1991
        %1993 = vdwg.mxu0
        %v1994 = vmax.f32 %v1956, 0.0
        %v1995 = vmax.f32 %v1958, 0.0
        %v1996 = vmax.f32 %v1960, 0.0
        %v1997 = vmax.f32 %v1962, 0.0
        %v1998 = vmax.f32 %v1966, 0.0
        %v1999 = vmax.f32 %v1968, 0.0
        %v2000 = vmax.f32 %v1970, 0.0
        %v2001 = vmax.f32 %v1972, 0.0
        %v2002 = vmax.f32 %v1976, 0.0
        %v2003 = vmax.f32 %v1978, 0.0
        %v2004 = vmax.f32 %v1980, 0.0
        %v2005 = vmax.f32 %v1982, 0.0
        %v2006 = vmax.f32 %v1986, 0.0
        %v2007 = vmax.f32 %v1988, 0.0
        %v2008 = vmax.f32 %v1990, 0.0
        %v2009 = vmax.f32 %v1992, 0.0
        %v2010 = vld [vmem:[%s5] sm:$0xf]
        %v2011 = vld [vmem:[%s5 + $0x4] sm:$0xf]
        %v2012 = vld [vmem:[%s5 + $0x8] sm:$0xf]
        %v2013 = vld [vmem:[%s5 + $0xc] sm:$0xf]
        %v2014 = vld [vmem:[%s5 + $0x10] sm:$0xf]
        %v2015 = vld [vmem:[%s5 + $0x14] sm:$0xf]
        %v2016 = vld [vmem:[%s5 + $0x18] sm:$0xf]
        %v2017 = vld [vmem:[%s5 + $0x1c] sm:$0xf]
        %v2018 = vld [vmem:[%s5 + $0x20] sm:$0xf]
        %v2019 = vld [vmem:[%s5 + $0x24] sm:$0xf]
        %v2020 = vld [vmem:[%s5 + $0x28] sm:$0xf]
        %v2021 = vld [vmem:[%s5 + $0x2c] sm:$0xf]
        %v2022 = vld [vmem:[%s5 + $0x30] sm:$0xf]
        %v2023 = vld [vmem:[%s5 + $0x34] sm:$0xf]
        %v2024 = vld [vmem:[%s5 + $0x38] sm:$0xf]
        %v2025 = vld [vmem:[%s5 + $0x3c] sm:$0xf]
        %v2026 = vpack.c.bf16 %v1996, %v1994
        %v2027 = vpack.c.bf16 %v1997, %v1995
        %v2028 = vpack.c.bf16 %v2000, %v1998
        %v2029 = vpack.c.bf16 %v2001, %v1999
        %v2030 = vpack.c.bf16 %v2004, %v2002
        %v2031 = vpack.c.bf16 %v2005, %v2003
        %v2032 = vpack.c.bf16 %v2008, %v2006
        %v2033 = vpack.c.bf16 %v2009, %v2007
        %v2034 = vld [vmem:[%s6] sm:$0xff]
        %v2035 = vld [vmem:[%s6 + $0x8] sm:$0xff]
        %v2036 = vld [vmem:[%s6 + $0x10] sm:$0xff]
        %v2037 = vld [vmem:[%s6 + $0x18] sm:$0xff]
        %v2038 = vld [vmem:[%s6 + $0x20] sm:$0xff]
        %v2039 = vld [vmem:[%s6 + $0x28] sm:$0xff]
        %v2040 = vld [vmem:[%s6 + $0x30] sm:$0xff]
        %v2041 = vld [vmem:[%s6 + $0x38] sm:$0xff]
        %v2042 = vld [vmem:[%s6 + $0x40] sm:$0xff]
        %v2043 = vld [vmem:[%s6 + $0x48] sm:$0xff]
        %v2044 = vld [vmem:[%s6 + $0x50] sm:$0xff]
        %v2045 = vld [vmem:[%s6 + $0x58] sm:$0xff]
        %v2046 = vld [vmem:[%s6 + $0x60] sm:$0xff]
        %v2047 = vld [vmem:[%s6 + $0x68] sm:$0xff]
        %v2048 = vld [vmem:[%s6 + $0x70] sm:$0xff]
        %v2049 = vld [vmem:[%s6 + $0x78] sm:$0xff]
        %2051 = vset.pattern.permute.xlu0 0
        %2052 = vperm.xlu0 %2051, %v2034
        %v2053 = vpop.permute.xlu0 %2052
        %2056 = vset.pattern.permute.xlu0 0
        %2057 = vperm.xlu0 %2056, %v2035
        %v2058 = vpop.permute.xlu0 %2057
        %2061 = vset.pattern.permute.xlu0 0
        %2062 = vperm.xlu0 %2061, %v2036
        %v2063 = vpop.permute.xlu0 %2062
        %2066 = vset.pattern.permute.xlu0 0
        %2067 = vperm.xlu0 %2066, %v2037
        %v2068 = vpop.permute.xlu0 %2067
        %2071 = vset.pattern.permute.xlu0 0
        %2072 = vperm.xlu0 %2071, %v2038
        %v2073 = vpop.permute.xlu0 %2072
        %2076 = vset.pattern.permute.xlu0 0
        %2077 = vperm.xlu0 %2076, %v2039
        %v2078 = vpop.permute.xlu0 %2077
        %2081 = vset.pattern.permute.xlu0 0
        %2082 = vperm.xlu0 %2081, %v2040
        %v2083 = vpop.permute.xlu0 %2082
        %2086 = vset.pattern.permute.xlu0 0
        %2087 = vperm.xlu0 %2086, %v2041
        %v2088 = vpop.permute.xlu0 %2087
        %2091 = vset.pattern.permute.xlu0 0
        %2092 = vperm.xlu0 %2091, %v2042
        %v2093 = vpop.permute.xlu0 %2092
        %2096 = vset.pattern.permute.xlu0 0
        %2097 = vperm.xlu0 %2096, %v2043
        %v2098 = vpop.permute.xlu0 %2097
        %2101 = vset.pattern.permute.xlu0 0
        %2102 = vperm.xlu0 %2101, %v2044
        %v2103 = vpop.permute.xlu0 %2102
        %2106 = vset.pattern.permute.xlu0 0
        %2107 = vperm.xlu0 %2106, %v2045
        %v2108 = vpop.permute.xlu0 %2107
        %2111 = vset.pattern.permute.xlu0 0
        %2112 = vperm.xlu0 %2111, %v2046
        %v2113 = vpop.permute.xlu0 %2112
        %2116 = vset.pattern.permute.xlu0 0
        %2117 = vperm.xlu0 %2116, %v2047
        %v2118 = vpop.permute.xlu0 %2117
        %2121 = vset.pattern.permute.xlu0 0
        %2122 = vperm.xlu0 %2121, %v2048
        %v2123 = vpop.permute.xlu0 %2122
        %2126 = vset.pattern.permute.xlu0 0
        %2127 = vperm.xlu0 %2126, %v2049
        %v2128 = vpop.permute.xlu0 %2127
        %v2146 = vunpack.c.l.b16 %v2010
        %v2147 = vunpack.c.l.b16 %v2011
        %v2148 = vunpack.c.l.b16 %v2012
        %v2149 = vunpack.c.l.b16 %v2013
        %v2150 = vunpack.c.l.b16 %v2014
        %v2151 = vunpack.c.l.b16 %v2015
        %v2152 = vunpack.c.l.b16 %v2016
        %v2153 = vunpack.c.l.b16 %v2017
        %v2154 = vunpack.c.l.b16 %v2018
        %v2155 = vunpack.c.l.b16 %v2019
        %v2156 = vunpack.c.l.b16 %v2020
        %v2157 = vunpack.c.l.b16 %v2021
        %v2158 = vunpack.c.l.b16 %v2022
        %v2159 = vunpack.c.l.b16 %v2023
        %v2160 = vunpack.c.l.b16 %v2024
        %v2161 = vunpack.c.l.b16 %v2025
        %v2162 = vpack.c.b16 %v2147, %v2146
        %v2163 = vpack.c.b16 %v2149, %v2148
        %v2164 = vpack.c.b16 %v2151, %v2150
        %v2165 = vpack.c.b16 %v2153, %v2152
        %v2166 = vpack.c.b16 %v2155, %v2154
        %v2167 = vpack.c.b16 %v2157, %v2156
        %v2168 = vpack.c.b16 %v2159, %v2158
        %v2169 = vpack.c.b16 %v2161, %v2160
        %v2171 = vsel %vm542, %v2162, 0
        %v2174 = vsel %vm542, %v2163, 0
        %v2177 = vsel %vm542, %v2164, 0
        %v2180 = vsel %vm542, %v2165, 0
        %v2183 = vsel %vm542, %v2166, 0
        %v2186 = vsel %vm542, %v2167, 0
        %v2189 = vsel %vm542, %v2168, 0
        %v2192 = vsel %vm542, %v2169, 0
        %2194 = vmatprep.subr.bf16.mxu0 %v2027
        %2195 = vmatpush1.bf16.msra.mxu0 %v2026
        %2196 = vmatprep.subr.bf16.mxu0 %v2029
        %2197 = vmatpush1.bf16.msra.mxu0 %v2028
        %2198 = vmatprep.subr.bf16.mxu0 %v2031
        %2199 = vmatpush1.bf16.msra.mxu0 %v2030
        %2200 = vmatprep.subr.bf16.mxu0 %v2033
        %2201 = vmatpush1.bf16.msra.mxu0 %v2032
        %2202 = vmatprep.subr.bf16.mxu0 0
        %2203 = vmatpush1.bf16.msra.mxu0 0
        %2204 = vmatprep.subr.bf16.mxu0 0
        %2205 = vmatpush1.bf16.msra.mxu0 0
        %2206 = vmatprep.subr.bf16.mxu0 0
        %2207 = vmatpush1.bf16.msra.mxu0 0
        %2208 = vmatprep.subr.bf16.mxu0 0
        %2209 = vmatpush1.bf16.msra.mxu0 0
        %2210 = vmatprep.subr.bf16.mxu0 0
        %2211 = vmatpush1.bf16.msra.mxu0 0
        %2212 = vmatprep.subr.bf16.mxu0 0
        %2213 = vmatpush1.bf16.msra.mxu0 0
        %2214 = vmatprep.subr.bf16.mxu0 0
        %2215 = vmatpush1.bf16.msra.mxu0 0
        %2216 = vmatprep.subr.bf16.mxu0 0
        %2217 = vmatpush1.bf16.msra.mxu0 0
        %2218 = vmatprep.subr.bf16.mxu0 0
        %2219 = vmatpush1.bf16.msra.mxu0 0
        %2220 = vmatprep.subr.bf16.mxu0 0
        %2221 = vmatpush1.bf16.msra.mxu0 0
        %2222 = vmatprep.subr.bf16.mxu0 0
        %2223 = vmatpush1.bf16.msra.mxu0 0
        %2224 = vmatprep.subr.bf16.mxu0 0
        %2225 = vmatpush1.bf16.msra.mxu0 0
        %2226 = vmatprep.mubr.bf16.mxu0 0
        %2227 = vmatmul.mubr.bf16.gmra.mrb[0].mxu0 %v2171
        %v2228 = vpop.f32.mrb[0].mxu0
        %v2229 = vadd.f32 %v2053, %v2228
        %v2230 = vpop.f32.mrb[0].mxu0
        %v2231 = vadd.f32 %v2053, %v2230
        %v2232 = vpop.f32.mrb[0].mxu0
        %v2233 = vadd.f32 %v2058, %v2232
        %v2234 = vpop.f32.mrb[0].mxu0
        %v2235 = vadd.f32 %v2058, %v2234
        %2236 = vmatprep.mubr.bf16.mxu0 0
        %2237 = vmatmul.mubr.bf16.gmra.mrb[0].mxu0 %v2174
        %v2238 = vpop.f32.mrb[0].mxu0
        %v2239 = vadd.f32 %v2063, %v2238
        %v2240 = vpop.f32.mrb[0].mxu0
        %v2241 = vadd.f32 %v2063, %v2240
        %v2242 = vpop.f32.mrb[0].mxu0
        %v2243 = vadd.f32 %v2068, %v2242
        %v2244 = vpop.f32.mrb[0].mxu0
        %v2245 = vadd.f32 %v2068, %v2244
        %2246 = vmatprep.mubr.bf16.mxu0 0
        %2247 = vmatmul.mubr.bf16.gmra.mrb[0].mxu0 %v2177
        %v2248 = vpop.f32.mrb[0].mxu0
        %v2249 = vadd.f32 %v2073, %v2248
        %v2250 = vpop.f32.mrb[0].mxu0
        %v2251 = vadd.f32 %v2073, %v2250
        %v2252 = vpop.f32.mrb[0].mxu0
        %v2253 = vadd.f32 %v2078, %v2252
        %v2254 = vpop.f32.mrb[0].mxu0
        %v2255 = vadd.f32 %v2078, %v2254
        %2256 = vmatprep.mubr.bf16.mxu0 0
        %2257 = vmatmul.mubr.bf16.gmra.mrb[0].mxu0 %v2180
        %v2258 = vpop.f32.mrb[0].mxu0
        %v2259 = vadd.f32 %v2083, %v2258
        %v2260 = vpop.f32.mrb[0].mxu0
        %v2261 = vadd.f32 %v2083, %v2260
        %v2262 = vpop.f32.mrb[0].mxu0
        %v2263 = vadd.f32 %v2088, %v2262
        %v2264 = vpop.f32.mrb[0].mxu0
        %v2265 = vadd.f32 %v2088, %v2264
        %2266 = vmatprep.mubr.bf16.mxu0 0
        %2267 = vmatmul.mubr.bf16.gmra.mrb[0].mxu0 %v2183
        %v2268 = vpop.f32.mrb[0].mxu0
        %v2269 = vadd.f32 %v2093, %v2268
        %v2270 = vpop.f32.mrb[0].mxu0
        %v2271 = vadd.f32 %v2093, %v2270
        %v2272 = vpop.f32.mrb[0].mxu0
        %v2273 = vadd.f32 %v2098, %v2272
        %v2274 = vpop.f32.mrb[0].mxu0
        %v2275 = vadd.f32 %v2098, %v2274
        %2276 = vmatprep.mubr.bf16.mxu0 0
        %2277 = vmatmul.mubr.bf16.gmra.mrb[0].mxu0 %v2186
        %v2278 = vpop.f32.mrb[0].mxu0
        %v2279 = vadd.f32 %v2103, %v2278
        %v2280 = vpop.f32.mrb[0].mxu0
        %v2281 = vadd.f32 %v2103, %v2280
        %v2282 = vpop.f32.mrb[0].mxu0
        %v2283 = vadd.f32 %v2108, %v2282
        %v2284 = vpop.f32.mrb[0].mxu0
        %v2285 = vadd.f32 %v2108, %v2284
        %2286 = vmatprep.mubr.bf16.mxu0 0
        %2287 = vmatmul.mubr.bf16.gmra.mrb[0].mxu0 %v2189
        %v2288 = vpop.f32.mrb[0].mxu0
        %v2289 = vadd.f32 %v2113, %v2288
        %v2290 = vpop.f32.mrb[0].mxu0
        %v2291 = vadd.f32 %v2113, %v2290
        %v2292 = vpop.f32.mrb[0].mxu0
        %v2293 = vadd.f32 %v2118, %v2292
        %v2294 = vpop.f32.mrb[0].mxu0
        %v2295 = vadd.f32 %v2118, %v2294
        %2296 = vmatprep.mubr.bf16.mxu0 0
        %2297 = vmatmul.mubr.bf16.gmra.mrb[0].mxu0 %v2192
        %v2298 = vpop.f32.mrb[0].mxu0
        %v2299 = vadd.f32 %v2123, %v2298
        %v2300 = vpop.f32.mrb[0].mxu0
        %v2301 = vadd.f32 %v2123, %v2300
        %v2302 = vpop.f32.mrb[0].mxu0
        %v2303 = vadd.f32 %v2128, %v2302
        %v2304 = vpop.f32.mrb[0].mxu0
        %v2305 = vadd.f32 %v2128, %v2304
        %2306 = vdwg.mxu0
        %v2307 = vadd.f32 %v2229, %v2231
        %2308 = vadd.xlane.f32.xlu0 %v2307
        %v2309 = vpop.xlane.xlu0 %2308
        %v2310 = vadd.f32 %v2233, %v2235
        %2311 = vadd.xlane.f32.xlu0 %v2310
        %v2312 = vpop.xlane.xlu0 %2311
        %v2313 = vadd.f32 %v2239, %v2241
        %2314 = vadd.xlane.f32.xlu0 %v2313
        %v2315 = vpop.xlane.xlu0 %2314
        %v2316 = vadd.f32 %v2243, %v2245
        %2317 = vadd.xlane.f32.xlu0 %v2316
        %v2318 = vpop.xlane.xlu0 %2317
        %v2319 = vadd.f32 %v2249, %v2251
        %2320 = vadd.xlane.f32.xlu0 %v2319
        %v2321 = vpop.xlane.xlu0 %2320
        %v2322 = vadd.f32 %v2253, %v2255
        %2323 = vadd.xlane.f32.xlu0 %v2322
        %v2324 = vpop.xlane.xlu0 %2323
        %v2325 = vadd.f32 %v2259, %v2261
        %2326 = vadd.xlane.f32.xlu0 %v2325
        %v2327 = vpop.xlane.xlu0 %2326
        %v2328 = vadd.f32 %v2263, %v2265
        %2329 = vadd.xlane.f32.xlu0 %v2328
        %v2330 = vpop.xlane.xlu0 %2329
        %v2331 = vadd.f32 %v2269, %v2271
        %2332 = vadd.xlane.f32.xlu0 %v2331
        %v2333 = vpop.xlane.xlu0 %2332
        %v2334 = vadd.f32 %v2273, %v2275
        %2335 = vadd.xlane.f32.xlu0 %v2334
        %v2336 = vpop.xlane.xlu0 %2335
        %v2337 = vadd.f32 %v2279, %v2281
        %2338 = vadd.xlane.f32.xlu0 %v2337
        %v2339 = vpop.xlane.xlu0 %2338
        %v2340 = vadd.f32 %v2283, %v2285
        %2341 = vadd.xlane.f32.xlu0 %v2340
        %v2342 = vpop.xlane.xlu0 %2341
        %v2343 = vadd.f32 %v2289, %v2291
        %2344 = vadd.xlane.f32.xlu0 %v2343
        %v2345 = vpop.xlane.xlu0 %2344
        %v2346 = vadd.f32 %v2293, %v2295
        %2347 = vadd.xlane.f32.xlu0 %v2346
        %v2348 = vpop.xlane.xlu0 %2347
        %v2349 = vadd.f32 %v2299, %v2301
        %2350 = vadd.xlane.f32.xlu0 %v2349
        %v2351 = vpop.xlane.xlu0 %2350
        %v2352 = vadd.f32 %v2303, %v2305
        %2353 = vadd.xlane.f32.xlu0 %v2352
        %v2354 = vpop.xlane.xlu0 %2353
        %v2355 = vrcp.pop 256.0
        %v2356 = vmul.f32 %v2309, %v2355
        %v2357 = vmul.f32 %v2312, %v2355
        %v2358 = vmul.f32 %v2315, %v2355
        %v2359 = vmul.f32 %v2318, %v2355
        %v2360 = vmul.f32 %v2321, %v2355
        %v2361 = vmul.f32 %v2324, %v2355
        %v2362 = vmul.f32 %v2327, %v2355
        %v2363 = vmul.f32 %v2330, %v2355
        %v2364 = vmul.f32 %v2333, %v2355
        %v2365 = vmul.f32 %v2336, %v2355
        %v2366 = vmul.f32 %v2339, %v2355
        %v2367 = vmul.f32 %v2342, %v2355
        %v2368 = vmul.f32 %v2345, %v2355
        %v2369 = vmul.f32 %v2348, %v2355
        %v2370 = vmul.f32 %v2351, %v2355
        %v2371 = vmul.f32 %v2354, %v2355
        %v2372 = vld [vmem:[%s7] sm:$0xff]
        %v2373 = vld [vmem:[%s8] sm:$0xff]
        %2374 = vmatprep.subr.mxu0 0.0
        %2375 = vmatpush1.msra.mxu0 %v2356
        %2376 = vmatprep.subr.mxu0 0.0
        %2377 = vmatpush1.msra.mxu0 %v2357
        %2378 = vmatprep.subr.mxu0 0.0
        %2379 = vmatpush1.msra.mxu0 %v2358
        %2380 = vmatprep.subr.mxu0 0.0
        %2381 = vmatpush1.msra.mxu0 %v2359
        %2382 = vmatprep.subr.mxu0 0.0
        %2383 = vmatpush1.msra.mxu0 %v2360
        %2384 = vmatprep.subr.mxu0 0.0
        %2385 = vmatpush1.msra.mxu0 %v2361
        %2386 = vmatprep.subr.mxu0 0.0
        %2387 = vmatpush1.msra.mxu0 %v2362
        %2388 = vmatprep.subr.mxu0 0.0
        %2389 = vmatpush1.msra.mxu0 %v2363
        %2390 = vmatprep.subr.mxu0 0.0
        %2391 = vmatpush1.msra.mxu0 %v2364
        %2392 = vmatprep.subr.mxu0 0.0
        %2393 = vmatpush1.msra.mxu0 %v2365
        %2394 = vmatprep.subr.mxu0 0.0
        %2395 = vmatpush1.msra.mxu0 %v2366
        %2396 = vmatprep.subr.mxu0 0.0
        %2397 = vmatpush1.msra.mxu0 %v2367
        %2398 = vmatprep.subr.mxu0 0.0
        %2399 = vmatpush1.msra.mxu0 %v2368
        %2400 = vmatprep.subr.mxu0 0.0
        %2401 = vmatpush1.msra.mxu0 %v2369
        %2402 = vmatprep.subr.mxu0 0.0
        %2403 = vmatpush1.msra.mxu0 %v2370
        %2404 = vmatprep.subr.mxu0 0.0
        %2405 = vmatpush1.msra.mxu0 %v2371
        %2406 = vmatprep.subr.mxu0 0.0
        %2407 = vmatpush1.msra.mxu0 0.0
        %2408 = vmatprep.subr.mxu0 0.0
        %2409 = vmatpush1.msra.mxu0 0.0
        %2410 = vmatprep.subr.mxu0 0.0
        %2411 = vmatpush1.msra.mxu0 0.0
        %2412 = vmatprep.subr.mxu0 0.0
        %2413 = vmatpush1.msra.mxu0 0.0
        %2414 = vmatprep.subr.mxu0 0.0
        %2415 = vmatpush1.msra.mxu0 0.0
        %2416 = vmatprep.subr.mxu0 0.0
        %2417 = vmatpush1.msra.mxu0 0.0
        %2418 = vmatprep.subr.mxu0 0.0
        %2419 = vmatpush1.msra.mxu0 0.0
        %2420 = vmatprep.subr.mxu0 0.0
        %2421 = vmatpush1.msra.mxu0 0.0
        %2422 = vmatprep.subr.mxu0 0.0
        %2423 = vmatpush1.msra.mxu0 0.0
        %2424 = vmatprep.subr.mxu0 0.0
        %2425 = vmatpush1.msra.mxu0 0.0
        %2426 = vmatprep.subr.mxu0 0.0
        %2427 = vmatpush1.msra.mxu0 0.0
        %2428 = vmatprep.subr.mxu0 0.0
        %2429 = vmatpush1.msra.mxu0 0.0
        %2430 = vmatprep.subr.mxu0 0.0
        %2431 = vmatpush1.msra.mxu0 0.0
        %2432 = vmatprep.subr.mxu0 0.0
        %2433 = vmatpush1.msra.mxu0 0.0
        %2434 = vmatprep.subr.mxu0 0.0
        %2435 = vmatpush1.msra.mxu0 0.0
        %2436 = vmatprep.subr.mxu0 0.0
        %2437 = vmatpush1.msra.mxu0 0.0
        %2438 = vmatprep.mubr.f32.mxu0 0.0
        %2439 = vmatmul.mubr.f32.gmra.mrb[0].mxu0 %v2372
        %v2440 = vpop.f32.mrb[0].mxu0
        %v2441 = vadd.f32 %v2373, %v2440
        %v2442 = vpop.f32.mrb[0].mxu0
        %2443 = vdwg.mxu0
        %v2444 = vmax.f32 %v2441, 0.0
        %v2445 = vld [vmem:[%s9] sm:$0xff]
        %v2446 = vld [vmem:[%s9 + $0x8] sm:$0xff]
        %v2447 = vld [vmem:[%s9 + $0x10] sm:$0xff]
        %v2448 = vld [vmem:[%s9 + $0x18] sm:$0xff]
        %v2449 = vld [vmem:[%s9 + $0x20] sm:$0xff]
        %v2450 = vld [vmem:[%s9 + $0x28] sm:$0xff]
        %v2451 = vld [vmem:[%s9 + $0x30] sm:$0xff]
        %v2452 = vld [vmem:[%s9 + $0x38] sm:$0xff]
        %v2453 = vld [vmem:[%s9 + $0x40] sm:$0xff]
        %v2454 = vld [vmem:[%s9 + $0x48] sm:$0xff]
        %v2455 = vld [vmem:[%s9 + $0x50] sm:$0xff]
        %v2456 = vld [vmem:[%s9 + $0x58] sm:$0xff]
        %v2457 = vld [vmem:[%s9 + $0x60] sm:$0xff]
        %v2458 = vld [vmem:[%s9 + $0x68] sm:$0xff]
        %v2459 = vld [vmem:[%s9 + $0x70] sm:$0xff]
        %v2460 = vld [vmem:[%s9 + $0x78] sm:$0xff]
        %v2461 = vld [vmem:[%s10] sm:$0xff]
        %v2462 = vld [vmem:[%s10 + $0x8] sm:$0xff]
        %v2463 = vld [vmem:[%s10 + $0x10] sm:$0xff]
        %v2464 = vld [vmem:[%s10 + $0x18] sm:$0xff]
        %v2465 = vld [vmem:[%s10 + $0x20] sm:$0xff]
        %v2466 = vld [vmem:[%s10 + $0x28] sm:$0xff]
        %v2467 = vld [vmem:[%s10 + $0x30] sm:$0xff]
        %v2468 = vld [vmem:[%s10 + $0x38] sm:$0xff]
        %v2469 = vld [vmem:[%s10 + $0x40] sm:$0xff]
        %v2470 = vld [vmem:[%s10 + $0x48] sm:$0xff]
        %v2471 = vld [vmem:[%s10 + $0x50] sm:$0xff]
        %v2472 = vld [vmem:[%s10 + $0x58] sm:$0xff]
        %v2473 = vld [vmem:[%s10 + $0x60] sm:$0xff]
        %v2474 = vld [vmem:[%s10 + $0x68] sm:$0xff]
        %v2475 = vld [vmem:[%s10 + $0x70] sm:$0xff]
        %v2476 = vld [vmem:[%s10 + $0x78] sm:$0xff]
        %vm2477 = vcmask 64512
        %v2479 = vsel %vm2477, %v2445, 0
        %v2482 = vsel %vm2477, %v2446, 0
        %v2485 = vsel %vm2477, %v2447, 0
        %v2488 = vsel %vm2477, %v2448, 0
        %v2491 = vsel %vm2477, %v2449, 0
        %v2494 = vsel %vm2477, %v2450, 0
        %v2497 = vsel %vm2477, %v2451, 0
        %v2500 = vsel %vm2477, %v2452, 0
        %v2503 = vsel %vm2477, %v2453, 0
        %v2506 = vsel %vm2477, %v2454, 0
        %v2509 = vsel %vm2477, %v2455, 0
        %v2512 = vsel %vm2477, %v2456, 0
        %v2515 = vsel %vm2477, %v2457, 0
        %v2518 = vsel %vm2477, %v2458, 0
        %v2521 = vsel %vm2477, %v2459, 0
        %v2524 = vsel %vm2477, %v2460, 0
        %2526 = vmatprep.subr.mxu0 0.0
        %2527 = vmatpush1.msra.mxu0 %v2444
        %2528 = vmatprep.subr.mxu0 0.0
        %2529 = vmatpush1.msra.mxu0 0.0
        %2530 = vmatprep.subr.mxu0 0.0
        %2531 = vmatpush1.msra.mxu0 0.0
        %2532 = vmatprep.subr.mxu0 0.0
        %2533 = vmatpush1.msra.mxu0 0.0
        %2534 = vmatprep.subr.mxu0 0.0
        %2535 = vmatpush1.msra.mxu0 0.0
        %2536 = vmatprep.subr.mxu0 0.0
        %2537 = vmatpush1.msra.mxu0 0.0
        %2538 = vmatprep.subr.mxu0 0.0
        %2539 = vmatpush1.msra.mxu0 0.0
        %2540 = vmatprep.subr.mxu0 0.0
        %2541 = vmatpush1.msra.mxu0 0.0
        %2542 = vmatprep.subr.mxu0 0.0
        %2543 = vmatpush1.msra.mxu0 0.0
        %2544 = vmatprep.subr.mxu0 0.0
        %2545 = vmatpush1.msra.mxu0 0.0
        %2546 = vmatprep.subr.mxu0 0.0
        %2547 = vmatpush1.msra.mxu0 0.0
        %2548 = vmatprep.subr.mxu0 0.0
        %2549 = vmatpush1.msra.mxu0 0.0
        %2550 = vmatprep.subr.mxu0 0.0
        %2551 = vmatpush1.msra.mxu0 0.0
        %2552 = vmatprep.subr.mxu0 0.0
        %2553 = vmatpush1.msra.mxu0 0.0
        %2554 = vmatprep.subr.mxu0 0.0
        %2555 = vmatpush1.msra.mxu0 0.0
        %2556 = vmatprep.subr.mxu0 0.0
        %2557 = vmatpush1.msra.mxu0 0.0
        %2558 = vmatprep.subr.mxu0 0.0
        %2559 = vmatpush1.msra.mxu0 0.0
        %2560 = vmatprep.subr.mxu0 0.0
        %2561 = vmatpush1.msra.mxu0 0.0
        %2562 = vmatprep.subr.mxu0 0.0
        %2563 = vmatpush1.msra.mxu0 0.0
        %2564 = vmatprep.subr.mxu0 0.0
        %2565 = vmatpush1.msra.mxu0 0.0
        %2566 = vmatprep.subr.mxu0 0.0
        %2567 = vmatpush1.msra.mxu0 0.0
        %2568 = vmatprep.subr.mxu0 0.0
        %2569 = vmatpush1.msra.mxu0 0.0
        %2570 = vmatprep.subr.mxu0 0.0
        %2571 = vmatpush1.msra.mxu0 0.0
        %2572 = vmatprep.subr.mxu0 0.0
        %2573 = vmatpush1.msra.mxu0 0.0
        %2574 = vmatprep.subr.mxu0 0.0
        %2575 = vmatpush1.msra.mxu0 0.0
        %2576 = vmatprep.subr.mxu0 0.0
        %2577 = vmatpush1.msra.mxu0 0.0
        %2578 = vmatprep.subr.mxu0 0.0
        %2579 = vmatpush1.msra.mxu0 0.0
        %2580 = vmatprep.subr.mxu0 0.0
        %2581 = vmatpush1.msra.mxu0 0.0
        %2582 = vmatprep.subr.mxu0 0.0
        %2583 = vmatpush1.msra.mxu0 0.0
        %2584 = vmatprep.subr.mxu0 0.0
        %2585 = vmatpush1.msra.mxu0 0.0
        %2586 = vmatprep.subr.mxu0 0.0
        %2587 = vmatpush1.msra.mxu0 0.0
        %2588 = vmatprep.subr.mxu0 0.0
        %2589 = vmatpush1.msra.mxu0 0.0
        %2590 = vmatprep.mubr.f32.mxu0 0.0
        %2591 = vmatmul.mubr.f32.gmra.mrb[0].mxu0 %v2479
        %v2592 = vpop.f32.mrb[0].mxu0
        %v2593 = vadd.f32 %v2461, %v2592
        %v2594 = vpop.f32.mrb[0].mxu0
        %2595 = vmatprep.mubr.f32.mxu0 0.0
        %2596 = vmatmul.mubr.f32.gmra.mrb[0].mxu0 %v2482
        %v2597 = vpop.f32.mrb[0].mxu0
        %v2598 = vadd.f32 %v2462, %v2597
        %v2599 = vpop.f32.mrb[0].mxu0
        %2600 = vmatprep.mubr.f32.mxu0 0.0
        %2601 = vmatmul.mubr.f32.gmra.mrb[0].mxu0 %v2485
        %v2602 = vpop.f32.mrb[0].mxu0
        %v2603 = vadd.f32 %v2463, %v2602
        %v2604 = vpop.f32.mrb[0].mxu0
        %2605 = vmatprep.mubr.f32.mxu0 0.0
        %2606 = vmatmul.mubr.f32.gmra.mrb[0].mxu0 %v2488
        %v2607 = vpop.f32.mrb[0].mxu0
        %v2608 = vadd.f32 %v2464, %v2607
        %v2609 = vpop.f32.mrb[0].mxu0
        %2610 = vmatprep.mubr.f32.mxu0 0.0
        %2611 = vmatmul.mubr.f32.gmra.mrb[0].mxu0 %v2491
        %v2612 = vpop.f32.mrb[0].mxu0
        %v2613 = vadd.f32 %v2465, %v2612
        %v2614 = vpop.f32.mrb[0].mxu0
        %2615 = vmatprep.mubr.f32.mxu0 0.0
        %2616 = vmatmul.mubr.f32.gmra.mrb[0].mxu0 %v2494
        %v2617 = vpop.f32.mrb[0].mxu0
        %v2618 = vadd.f32 %v2466, %v2617
        %v2619 = vpop.f32.mrb[0].mxu0
        %2620 = vmatprep.mubr.f32.mxu0 0.0
        %2621 = vmatmul.mubr.f32.gmra.mrb[0].mxu0 %v2497
        %v2622 = vpop.f32.mrb[0].mxu0
        %v2623 = vadd.f32 %v2467, %v2622
        %v2624 = vpop.f32.mrb[0].mxu0
        %2625 = vmatprep.mubr.f32.mxu0 0.0
        %2626 = vmatmul.mubr.f32.gmra.mrb[0].mxu0 %v2500
        %v2627 = vpop.f32.mrb[0].mxu0
        %v2628 = vadd.f32 %v2468, %v2627
        %v2629 = vpop.f32.mrb[0].mxu0
        %2630 = vmatprep.mubr.f32.mxu0 0.0
        %2631 = vmatmul.mubr.f32.gmra.mrb[0].mxu0 %v2503
        %v2632 = vpop.f32.mrb[0].mxu0
        %v2633 = vadd.f32 %v2469, %v2632
        %v2634 = vpop.f32.mrb[0].mxu0
        %2635 = vmatprep.mubr.f32.mxu0 0.0
        %2636 = vmatmul.mubr.f32.gmra.mrb[0].mxu0 %v2506
        %v2637 = vpop.f32.mrb[0].mxu0
        %v2638 = vadd.f32 %v2470, %v2637
        %v2639 = vpop.f32.mrb[0].mxu0
        %2640 = vmatprep.mubr.f32.mxu0 0.0
        %2641 = vmatmul.mubr.f32.gmra.mrb[0].mxu0 %v2509
        %v2642 = vpop.f32.mrb[0].mxu0
        %v2643 = vadd.f32 %v2471, %v2642
        %v2644 = vpop.f32.mrb[0].mxu0
        %2645 = vmatprep.mubr.f32.mxu0 0.0
        %2646 = vmatmul.mubr.f32.gmra.mrb[0].mxu0 %v2512
        %v2647 = vpop.f32.mrb[0].mxu0
        %v2648 = vadd.f32 %v2472, %v2647
        %v2649 = vpop.f32.mrb[0].mxu0
        %2650 = vmatprep.mubr.f32.mxu0 0.0
        %2651 = vmatmul.mubr.f32.gmra.mrb[0].mxu0 %v2515
        %v2652 = vpop.f32.mrb[0].mxu0
        %v2653 = vadd.f32 %v2473, %v2652
        %v2654 = vpop.f32.mrb[0].mxu0
        %2655 = vmatprep.mubr.f32.mxu0 0.0
        %2656 = vmatmul.mubr.f32.gmra.mrb[0].mxu0 %v2518
        %v2657 = vpop.f32.mrb[0].mxu0
        %v2658 = vadd.f32 %v2474, %v2657
        %v2659 = vpop.f32.mrb[0].mxu0
        %2660 = vmatprep.mubr.f32.mxu0 0.0
        %2661 = vmatmul.mubr.f32.gmra.mrb[0].mxu0 %v2521
        %v2662 = vpop.f32.mrb[0].mxu0
        %v2663 = vadd.f32 %v2475, %v2662
        %v2664 = vpop.f32.mrb[0].mxu0
        %2665 = vmatprep.mubr.f32.mxu0 0.0
        %2666 = vmatmul.mubr.f32.gmra.mrb[0].mxu0 %v2524
        %v2667 = vpop.f32.mrb[0].mxu0
        %v2668 = vadd.f32 %v2476, %v2667
        %v2669 = vpop.f32.mrb[0].mxu0
        %2670 = vdwg.mxu0
        %v2671 = vsub.f32 0.0, %v2593
        %v2672 = vsub.f32 0.0, %v2598
        %v2673 = vsub.f32 0.0, %v2603
        %v2674 = vsub.f32 0.0, %v2608
        %v2675 = vsub.f32 0.0, %v2613
        %v2676 = vsub.f32 0.0, %v2618
        %v2677 = vsub.f32 0.0, %v2623
        %v2678 = vsub.f32 0.0, %v2628
        %v2679 = vsub.f32 0.0, %v2633
        %v2680 = vsub.f32 0.0, %v2638
        %v2681 = vsub.f32 0.0, %v2643
        %v2682 = vsub.f32 0.0, %v2648
        %v2683 = vsub.f32 0.0, %v2653
        %v2684 = vsub.f32 0.0, %v2658
        %v2685 = vsub.f32 0.0, %v2663
        %v2686 = vsub.f32 0.0, %v2668
        %v2687 = vmul.f32 %v2671, 1.442695
        %v2688 = vpow.pop %v2687
        %v2689 = vmul.f32 %v2672, 1.442695
        %v2690 = vpow.pop %v2689
        %v2691 = vmul.f32 %v2673, 1.442695
        %v2692 = vpow.pop %v2691
        %v2693 = vmul.f32 %v2674, 1.442695
        %v2694 = vpow.pop %v2693
        %v2695 = vmul.f32 %v2675, 1.442695
        %v2696 = vpow.pop %v2695
        %v2697 = vmul.f32 %v2676, 1.442695
        %v2698 = vpow.pop %v2697
        %v2699 = vmul.f32 %v2677, 1.442695
        %v2700 = vpow.pop %v2699
        %v2701 = vmul.f32 %v2678, 1.442695
        %v2702 = vpow.pop %v2701
        %v2703 = vmul.f32 %v2679, 1.442695
        %v2704 = vpow.pop %v2703
        %v2705 = vmul.f32 %v2680, 1.442695
        %v2706 = vpow.pop %v2705
        %v2707 = vmul.f32 %v2681, 1.442695
        %v2708 = vpow.pop %v2707
        %v2709 = vmul.f32 %v2682, 1.442695
        %v2710 = vpow.pop %v2709
        %v2711 = vmul.f32 %v2683, 1.442695
        %v2712 = vpow.pop %v2711
        %v2713 = vmul.f32 %v2684, 1.442695
        %v2714 = vpow.pop %v2713
        %v2715 = vmul.f32 %v2685, 1.442695
        %v2716 = vpow.pop %v2715
        %v2717 = vmul.f32 %v2686, 1.442695
        %v2718 = vpow.pop %v2717
        %v2719 = vadd.f32 %v2688, 1.0
        %v2720 = vadd.f32 %v2690, 1.0
        %v2721 = vadd.f32 %v2692, 1.0
        %v2722 = vadd.f32 %v2694, 1.0
        %v2723 = vadd.f32 %v2696, 1.0
        %v2724 = vadd.f32 %v2698, 1.0
        %v2725 = vadd.f32 %v2700, 1.0
        %v2726 = vadd.f32 %v2702, 1.0
        %v2727 = vadd.f32 %v2704, 1.0
        %v2728 = vadd.f32 %v2706, 1.0
        %v2729 = vadd.f32 %v2708, 1.0
        %v2730 = vadd.f32 %v2710, 1.0
        %v2731 = vadd.f32 %v2712, 1.0
        %v2732 = vadd.f32 %v2714, 1.0
        %v2733 = vadd.f32 %v2716, 1.0
        %v2734 = vadd.f32 %v2718, 1.0
        %v2735 = vrcp.pop %v2719
        %v2736 = vrcp.pop %v2720
        %v2737 = vrcp.pop %v2721
        %v2738 = vrcp.pop %v2722
        %v2739 = vrcp.pop %v2723
        %v2740 = vrcp.pop %v2724
        %v2741 = vrcp.pop %v2725
        %v2742 = vrcp.pop %v2726
        %v2743 = vrcp.pop %v2727
        %v2744 = vrcp.pop %v2728
        %v2745 = vrcp.pop %v2729
        %v2746 = vrcp.pop %v2730
        %v2747 = vrcp.pop %v2731
        %v2748 = vrcp.pop %v2732
        %v2749 = vrcp.pop %v2733
        %v2750 = vrcp.pop %v2734
        %v2751 = vld [vmem:[%s11] sm:$0xf]
        %v2752 = vld [vmem:[%s11 + $0x4] sm:$0xf]
        %v2753 = vld [vmem:[%s11 + $0x8] sm:$0xf]
        %v2754 = vld [vmem:[%s11 + $0xc] sm:$0xf]
        %v2755 = vld [vmem:[%s11 + $0x10] sm:$0xf]
        %v2756 = vld [vmem:[%s11 + $0x14] sm:$0xf]
        %v2757 = vld [vmem:[%s11 + $0x18] sm:$0xf]
        %v2758 = vld [vmem:[%s11 + $0x1c] sm:$0xf]
        %v2759 = vld [vmem:[%s11 + $0x20] sm:$0xf]
        %v2760 = vld [vmem:[%s11 + $0x24] sm:$0xf]
        %v2761 = vld [vmem:[%s11 + $0x28] sm:$0xf]
        %v2762 = vld [vmem:[%s11 + $0x2c] sm:$0xf]
        %v2763 = vld [vmem:[%s11 + $0x30] sm:$0xf]
        %v2764 = vld [vmem:[%s11 + $0x34] sm:$0xf]
        %v2765 = vld [vmem:[%s11 + $0x38] sm:$0xf]
        %v2766 = vld [vmem:[%s11 + $0x3c] sm:$0xf]
        %v2767 = vld [vmem:[%s12] sm:$0xff]
        %v2768 = vld [vmem:[%s12 + $0x8] sm:$0xff]
        %v2769 = vld [vmem:[%s12 + $0x10] sm:$0xff]
        %v2770 = vld [vmem:[%s12 + $0x18] sm:$0xff]
        %v2771 = vld [vmem:[%s12 + $0x20] sm:$0xff]
        %v2772 = vld [vmem:[%s12 + $0x28] sm:$0xff]
        %v2773 = vld [vmem:[%s12 + $0x30] sm:$0xff]
        %v2774 = vld [vmem:[%s12 + $0x38] sm:$0xff]
        %v2775 = vld [vmem:[%s12 + $0x40] sm:$0xff]
        %v2776 = vld [vmem:[%s12 + $0x48] sm:$0xff]
        %v2777 = vld [vmem:[%s12 + $0x50] sm:$0xff]
        %v2778 = vld [vmem:[%s12 + $0x58] sm:$0xff]
        %v2779 = vld [vmem:[%s12 + $0x60] sm:$0xff]
        %v2780 = vld [vmem:[%s12 + $0x68] sm:$0xff]
        %v2781 = vld [vmem:[%s12 + $0x70] sm:$0xff]
        %v2782 = vld [vmem:[%s12 + $0x78] sm:$0xff]
        %2784 = vset.pattern.permute.xlu0 0
        %2785 = vperm.xlu0 %2784, %v2767
        %v2786 = vpop.permute.xlu0 %2785
        %2789 = vset.pattern.permute.xlu0 0
        %2790 = vperm.xlu0 %2789, %v2768
        %v2791 = vpop.permute.xlu0 %2790
        %2794 = vset.pattern.permute.xlu0 0
        %2795 = vperm.xlu0 %2794, %v2769
        %v2796 = vpop.permute.xlu0 %2795
        %2799 = vset.pattern.permute.xlu0 0
        %2800 = vperm.xlu0 %2799, %v2770
        %v2801 = vpop.permute.xlu0 %2800
        %2804 = vset.pattern.permute.xlu0 0
        %2805 = vperm.xlu0 %2804, %v2771
        %v2806 = vpop.permute.xlu0 %2805
        %2809 = vset.pattern.permute.xlu0 0
        %2810 = vperm.xlu0 %2809, %v2772
        %v2811 = vpop.permute.xlu0 %2810
        %2814 = vset.pattern.permute.xlu0 0
        %2815 = vperm.xlu0 %2814, %v2773
        %v2816 = vpop.permute.xlu0 %2815
        %2819 = vset.pattern.permute.xlu0 0
        %2820 = vperm.xlu0 %2819, %v2774
        %v2821 = vpop.permute.xlu0 %2820
        %2824 = vset.pattern.permute.xlu0 0
        %2825 = vperm.xlu0 %2824, %v2775
        %v2826 = vpop.permute.xlu0 %2825
        %2829 = vset.pattern.permute.xlu0 0
        %2830 = vperm.xlu0 %2829, %v2776
        %v2831 = vpop.permute.xlu0 %2830
        %2834 = vset.pattern.permute.xlu0 0
        %2835 = vperm.xlu0 %2834, %v2777
        %v2836 = vpop.permute.xlu0 %2835
        %2839 = vset.pattern.permute.xlu0 0
        %2840 = vperm.xlu0 %2839, %v2778
        %v2841 = vpop.permute.xlu0 %2840
        %2844 = vset.pattern.permute.xlu0 0
        %2845 = vperm.xlu0 %2844, %v2779
        %v2846 = vpop.permute.xlu0 %2845
        %2849 = vset.pattern.permute.xlu0 0
        %2850 = vperm.xlu0 %2849, %v2780
        %v2851 = vpop.permute.xlu0 %2850
        %2854 = vset.pattern.permute.xlu0 0
        %2855 = vperm.xlu0 %2854, %v2781
        %v2856 = vpop.permute.xlu0 %2855
        %2859 = vset.pattern.permute.xlu0 0
        %2860 = vperm.xlu0 %2859, %v2782
        %v2861 = vpop.permute.xlu0 %2860
        %v2879 = vunpack.c.l.b16 %v2751
        %v2880 = vunpack.c.l.b16 %v2752
        %v2881 = vunpack.c.l.b16 %v2753
        %v2882 = vunpack.c.l.b16 %v2754
        %v2883 = vunpack.c.l.b16 %v2755
        %v2884 = vunpack.c.l.b16 %v2756
        %v2885 = vunpack.c.l.b16 %v2757
        %v2886 = vunpack.c.l.b16 %v2758
        %v2887 = vunpack.c.l.b16 %v2759
        %v2888 = vunpack.c.l.b16 %v2760
        %v2889 = vunpack.c.l.b16 %v2761
        %v2890 = vunpack.c.l.b16 %v2762
        %v2891 = vunpack.c.l.b16 %v2763
        %v2892 = vunpack.c.l.b16 %v2764
        %v2893 = vunpack.c.l.b16 %v2765
        %v2894 = vunpack.c.l.b16 %v2766
        %v2895 = vpack.c.b16 %v2880, %v2879
        %v2896 = vpack.c.b16 %v2882, %v2881
        %v2897 = vpack.c.b16 %v2884, %v2883
        %v2898 = vpack.c.b16 %v2886, %v2885
        %v2899 = vpack.c.b16 %v2888, %v2887
        %v2900 = vpack.c.b16 %v2890, %v2889
        %v2901 = vpack.c.b16 %v2892, %v2891
        %v2902 = vpack.c.b16 %v2894, %v2893
        %v2904 = vsel %vm542, %v2895, 0
        %v2907 = vsel %vm542, %v2896, 0
        %v2910 = vsel %vm542, %v2897, 0
        %v2913 = vsel %vm542, %v2898, 0
        %v2916 = vsel %vm542, %v2899, 0
        %v2919 = vsel %vm542, %v2900, 0
        %v2922 = vsel %vm542, %v2901, 0
        %v2925 = vsel %vm542, %v2902, 0
        %2927 = vmatprep.subr.bf16.mxu0 %v459
        %2928 = vmatpush1.bf16.msra.mxu0 %v458
        %2929 = vmatprep.subr.bf16.mxu0 %v461
        %2930 = vmatpush1.bf16.msra.mxu0 %v460
        %2931 = vmatprep.subr.bf16.mxu0 %v463
        %2932 = vmatpush1.bf16.msra.mxu0 %v462
        %2933 = vmatprep.subr.bf16.mxu0 %v465
        %2934 = vmatpush1.bf16.msra.mxu0 %v464
        %2935 = vmatprep.subr.bf16.mxu0 0
        %2936 = vmatpush1.bf16.msra.mxu0 0
        %2937 = vmatprep.subr.bf16.mxu0 0
        %2938 = vmatpush1.bf16.msra.mxu0 0
        %2939 = vmatprep.subr.bf16.mxu0 0
        %2940 = vmatpush1.bf16.msra.mxu0 0
        %2941 = vmatprep.subr.bf16.mxu0 0
        %2942 = vmatpush1.bf16.msra.mxu0 0
        %2943 = vmatprep.subr.bf16.mxu0 0
        %2944 = vmatpush1.bf16.msra.mxu0 0
        %2945 = vmatprep.subr.bf16.mxu0 0
        %2946 = vmatpush1.bf16.msra.mxu0 0
        %2947 = vmatprep.subr.bf16.mxu0 0
        %2948 = vmatpush1.bf16.msra.mxu0 0
        %2949 = vmatprep.subr.bf16.mxu0 0
        %2950 = vmatpush1.bf16.msra.mxu0 0
        %2951 = vmatprep.subr.bf16.mxu0 0
        %2952 = vmatpush1.bf16.msra.mxu0 0
        %2953 = vmatprep.subr.bf16.mxu0 0
        %2954 = vmatpush1.bf16.msra.mxu0 0
        %2955 = vmatprep.subr.bf16.mxu0 0
        %2956 = vmatpush1.bf16.msra.mxu0 0
        %2957 = vmatprep.subr.bf16.mxu0 0
        %2958 = vmatpush1.bf16.msra.mxu0 0
        %2959 = vmatprep.mubr.bf16.mxu0 0
        %2960 = vmatmul.mubr.bf16.gmra.mrb[0].mxu0 %v2904
        %v2961 = vpop.f32.mrb[0].mxu0
        %v2962 = vadd.f32 %v2786, %v2961
        %v2963 = vpop.f32.mrb[0].mxu0
        %v2964 = vadd.f32 %v2786, %v2963
        %v2965 = vpop.f32.mrb[0].mxu0
        %v2966 = vadd.f32 %v2791, %v2965
        %v2967 = vpop.f32.mrb[0].mxu0
        %v2968 = vadd.f32 %v2791, %v2967
        %2969 = vmatprep.mubr.bf16.mxu0 0
        %2970 = vmatmul.mubr.bf16.gmra.mrb[0].mxu0 %v2907
        %v2971 = vpop.f32.mrb[0].mxu0
        %v2972 = vadd.f32 %v2796, %v2971
        %v2973 = vpop.f32.mrb[0].mxu0
        %v2974 = vadd.f32 %v2796, %v2973
        %v2975 = vpop.f32.mrb[0].mxu0
        %v2976 = vadd.f32 %v2801, %v2975
        %v2977 = vpop.f32.mrb[0].mxu0
        %v2978 = vadd.f32 %v2801, %v2977
        %2979 = vmatprep.mubr.bf16.mxu0 0
        %2980 = vmatmul.mubr.bf16.gmra.mrb[0].mxu0 %v2910
        %v2981 = vpop.f32.mrb[0].mxu0
        %v2982 = vadd.f32 %v2806, %v2981
        %v2983 = vpop.f32.mrb[0].mxu0
        %v2984 = vadd.f32 %v2806, %v2983
        %v2985 = vpop.f32.mrb[0].mxu0
        %v2986 = vadd.f32 %v2811, %v2985
        %v2987 = vpop.f32.mrb[0].mxu0
        %v2988 = vadd.f32 %v2811, %v2987
        %2989 = vmatprep.mubr.bf16.mxu0 0
        %2990 = vmatmul.mubr.bf16.gmra.mrb[0].mxu0 %v2913
        %v2991 = vpop.f32.mrb[0].mxu0
        %v2992 = vadd.f32 %v2816, %v2991
        %v2993 = vpop.f32.mrb[0].mxu0
        %v2994 = vadd.f32 %v2816, %v2993
        %v2995 = vpop.f32.mrb[0].mxu0
        %v2996 = vadd.f32 %v2821, %v2995
        %v2997 = vpop.f32.mrb[0].mxu0
        %v2998 = vadd.f32 %v2821, %v2997
        %2999 = vmatprep.mubr.bf16.mxu0 0
        %3000 = vmatmul.mubr.bf16.gmra.mrb[0].mxu0 %v2916
        %v3001 = vpop.f32.mrb[0].mxu0
        %v3002 = vadd.f32 %v2826, %v3001
        %v3003 = vpop.f32.mrb[0].mxu0
        %v3004 = vadd.f32 %v2826, %v3003
        %v3005 = vpop.f32.mrb[0].mxu0
        %v3006 = vadd.f32 %v2831, %v3005
        %v3007 = vpop.f32.mrb[0].mxu0
        %v3008 = vadd.f32 %v2831, %v3007
        %3009 = vmatprep.mubr.bf16.mxu0 0
        %3010 = vmatmul.mubr.bf16.gmra.mrb[0].mxu0 %v2919
        %v3011 = vpop.f32.mrb[0].mxu0
        %v3012 = vadd.f32 %v2836, %v3011
        %v3013 = vpop.f32.mrb[0].mxu0
        %v3014 = vadd.f32 %v2836, %v3013
        %v3015 = vpop.f32.mrb[0].mxu0
        %v3016 = vadd.f32 %v2841, %v3015
        %v3017 = vpop.f32.mrb[0].mxu0
        %v3018 = vadd.f32 %v2841, %v3017
        %3019 = vmatprep.mubr.bf16.mxu0 0
        %3020 = vmatmul.mubr.bf16.gmra.mrb[0].mxu0 %v2922
        %v3021 = vpop.f32.mrb[0].mxu0
        %v3022 = vadd.f32 %v2846, %v3021
        %v3023 = vpop.f32.mrb[0].mxu0
        %v3024 = vadd.f32 %v2846, %v3023
        %v3025 = vpop.f32.mrb[0].mxu0
        %v3026 = vadd.f32 %v2851, %v3025
        %v3027 = vpop.f32.mrb[0].mxu0
        %v3028 = vadd.f32 %v2851, %v3027
        %3029 = vmatprep.mubr.bf16.mxu0 0
        %3030 = vmatmul.mubr.bf16.gmra.mrb[0].mxu0 %v2925
        %v3031 = vpop.f32.mrb[0].mxu0
        %v3032 = vadd.f32 %v2856, %v3031
        %v3033 = vpop.f32.mrb[0].mxu0
        %v3034 = vadd.f32 %v2856, %v3033
        %v3035 = vpop.f32.mrb[0].mxu0
        %v3036 = vadd.f32 %v2861, %v3035
        %v3037 = vpop.f32.mrb[0].mxu0
        %v3038 = vadd.f32 %v2861, %v3037
        %3039 = vdwg.mxu0
        %3041 = vset.pattern.permute.xlu0 0
        %3042 = vperm.xlu0 %3041, %v2735
        %v3043 = vpop.permute.xlu0 %3042
        %3046 = vset.pattern.permute.xlu0 0
        %3047 = vperm.xlu0 %3046, %v2736
        %v3048 = vpop.permute.xlu0 %3047
        %3051 = vset.pattern.permute.xlu0 0
        %3052 = vperm.xlu0 %3051, %v2737
        %v3053 = vpop.permute.xlu0 %3052
        %3056 = vset.pattern.permute.xlu0 0
        %3057 = vperm.xlu0 %3056, %v2738
        %v3058 = vpop.permute.xlu0 %3057
        %3061 = vset.pattern.permute.xlu0 0
        %3062 = vperm.xlu0 %3061, %v2739
        %v3063 = vpop.permute.xlu0 %3062
        %3066 = vset.pattern.permute.xlu0 0
        %3067 = vperm.xlu0 %3066, %v2740
        %v3068 = vpop.permute.xlu0 %3067
        %3071 = vset.pattern.permute.xlu0 0
        %3072 = vperm.xlu0 %3071, %v2741
        %v3073 = vpop.permute.xlu0 %3072
        %3076 = vset.pattern.permute.xlu0 0
        %3077 = vperm.xlu0 %3076, %v2742
        %v3078 = vpop.permute.xlu0 %3077
        %3081 = vset.pattern.permute.xlu0 0
        %3082 = vperm.xlu0 %3081, %v2743
        %v3083 = vpop.permute.xlu0 %3082
        %3086 = vset.pattern.permute.xlu0 0
        %3087 = vperm.xlu0 %3086, %v2744
        %v3088 = vpop.permute.xlu0 %3087
        %3091 = vset.pattern.permute.xlu0 0
        %3092 = vperm.xlu0 %3091, %v2745
        %v3093 = vpop.permute.xlu0 %3092
        %3096 = vset.pattern.permute.xlu0 0
        %3097 = vperm.xlu0 %3096, %v2746
        %v3098 = vpop.permute.xlu0 %3097
        %3101 = vset.pattern.permute.xlu0 0
        %3102 = vperm.xlu0 %3101, %v2747
        %v3103 = vpop.permute.xlu0 %3102
        %3106 = vset.pattern.permute.xlu0 0
        %3107 = vperm.xlu0 %3106, %v2748
        %v3108 = vpop.permute.xlu0 %3107
        %3111 = vset.pattern.permute.xlu0 0
        %3112 = vperm.xlu0 %3111, %v2749
        %v3113 = vpop.permute.xlu0 %3112
        %3116 = vset.pattern.permute.xlu0 0
        %3117 = vperm.xlu0 %3116, %v2750
        %v3118 = vpop.permute.xlu0 %3117
        %v3120 = vmul.f32 %v2229, %v3043
        %v3121 = vmul.f32 %v2231, %v3043
        %v3122 = vmul.f32 %v2233, %v3048
        %v3123 = vmul.f32 %v2235, %v3048
        %v3124 = vmul.f32 %v2239, %v3053
        %v3125 = vmul.f32 %v2241, %v3053
        %v3126 = vmul.f32 %v2243, %v3058
        %v3127 = vmul.f32 %v2245, %v3058
        %v3128 = vmul.f32 %v2249, %v3063
        %v3129 = vmul.f32 %v2251, %v3063
        %v3130 = vmul.f32 %v2253, %v3068
        %v3131 = vmul.f32 %v2255, %v3068
        %v3132 = vmul.f32 %v2259, %v3073
        %v3133 = vmul.f32 %v2261, %v3073
        %v3134 = vmul.f32 %v2263, %v3078
        %v3135 = vmul.f32 %v2265, %v3078
        %v3136 = vmul.f32 %v2269, %v3083
        %v3137 = vmul.f32 %v2271, %v3083
        %v3138 = vmul.f32 %v2273, %v3088
        %v3139 = vmul.f32 %v2275, %v3088
        %v3140 = vmul.f32 %v2279, %v3093
        %v3141 = vmul.f32 %v2281, %v3093
        %v3142 = vmul.f32 %v2283, %v3098
        %v3143 = vmul.f32 %v2285, %v3098
        %v3144 = vmul.f32 %v2289, %v3103
        %v3145 = vmul.f32 %v2291, %v3103
        %v3146 = vmul.f32 %v2293, %v3108
        %v3147 = vmul.f32 %v2295, %v3108
        %v3148 = vmul.f32 %v2299, %v3113
        %v3149 = vmul.f32 %v2301, %v3113
        %v3150 = vmul.f32 %v2303, %v3118
        %v3151 = vmul.f32 %v2305, %v3118
        %v3152 = vadd.f32 %v3120, %v2962
        %v3153 = vadd.f32 %v3121, %v2964
        %v3154 = vadd.f32 %v3122, %v2966
        %v3155 = vadd.f32 %v3123, %v2968
        %v3156 = vadd.f32 %v3124, %v2972
        %v3157 = vadd.f32 %v3125, %v2974
        %v3158 = vadd.f32 %v3126, %v2976
        %v3159 = vadd.f32 %v3127, %v2978
        %v3160 = vadd.f32 %v3128, %v2982
        %v3161 = vadd.f32 %v3129, %v2984
        %v3162 = vadd.f32 %v3130, %v2986
        %v3163 = vadd.f32 %v3131, %v2988
        %v3164 = vadd.f32 %v3132, %v2992
        %v3165 = vadd.f32 %v3133, %v2994
        %v3166 = vadd.f32 %v3134, %v2996
        %v3167 = vadd.f32 %v3135, %v2998
        %v3168 = vadd.f32 %v3136, %v3002
        %v3169 = vadd.f32 %v3137, %v3004
        %v3170 = vadd.f32 %v3138, %v3006
        %v3171 = vadd.f32 %v3139, %v3008
        %v3172 = vadd.f32 %v3140, %v3012
        %v3173 = vadd.f32 %v3141, %v3014
        %v3174 = vadd.f32 %v3142, %v3016
        %v3175 = vadd.f32 %v3143, %v3018
        %v3176 = vadd.f32 %v3144, %v3022
        %v3177 = vadd.f32 %v3145, %v3024
        %v3178 = vadd.f32 %v3146, %v3026
        %v3179 = vadd.f32 %v3147, %v3028
        %v3180 = vadd.f32 %v3148, %v3032
        %v3181 = vadd.f32 %v3149, %v3034
        %v3182 = vadd.f32 %v3150, %v3036
        %v3183 = vadd.f32 %v3151, %v3038
        %v3184 = vmax.f32 %v3152, 0.0
        %v3185 = vmax.f32 %v3153, 0.0
        %v3186 = vmax.f32 %v3154, 0.0
        %v3187 = vmax.f32 %v3155, 0.0
        %v3188 = vmax.f32 %v3156, 0.0
        %v3189 = vmax.f32 %v3157, 0.0
        %v3190 = vmax.f32 %v3158, 0.0
        %v3191 = vmax.f32 %v3159, 0.0
        %v3192 = vmax.f32 %v3160, 0.0
        %v3193 = vmax.f32 %v3161, 0.0
        %v3194 = vmax.f32 %v3162, 0.0
        %v3195 = vmax.f32 %v3163, 0.0
        %v3196 = vmax.f32 %v3164, 0.0
        %v3197 = vmax.f32 %v3165, 0.0
        %v3198 = vmax.f32 %v3166, 0.0
        %v3199 = vmax.f32 %v3167, 0.0
        %v3200 = vmax.f32 %v3168, 0.0
        %v3201 = vmax.f32 %v3169, 0.0
        %v3202 = vmax.f32 %v3170, 0.0
        %v3203 = vmax.f32 %v3171, 0.0
        %v3204 = vmax.f32 %v3172, 0.0
        %v3205 = vmax.f32 %v3173, 0.0
        %v3206 = vmax.f32 %v3174, 0.0
        %v3207 = vmax.f32 %v3175, 0.0
        %v3208 = vmax.f32 %v3176, 0.0
        %v3209 = vmax.f32 %v3177, 0.0
        %v3210 = vmax.f32 %v3178, 0.0
        %v3211 = vmax.f32 %v3179, 0.0
        %v3212 = vmax.f32 %v3180, 0.0
        %v3213 = vmax.f32 %v3181, 0.0
        %v3214 = vmax.f32 %v3182, 0.0
        %v3215 = vmax.f32 %v3183, 0.0
        %3216 = vst [vmem:[%s433] sm:$0xff] %v3184
        %3217 = vst [vmem:[%s433 + $0x8] sm:$0xff] %v3185
        %3218 = vst [vmem:[%s433 + $0x10] sm:$0xff] %v3186
        %3219 = vst [vmem:[%s433 + $0x18] sm:$0xff] %v3187
        %3220 = vst [vmem:[%s433 + $0x20] sm:$0xff] %v3188
        %3221 = vst [vmem:[%s433 + $0x28] sm:$0xff] %v3189
        %3222 = vst [vmem:[%s433 + $0x30] sm:$0xff] %v3190
        %3223 = vst [vmem:[%s433 + $0x38] sm:$0xff] %v3191
        %3224 = vst [vmem:[%s433 + $0x40] sm:$0xff] %v3192
        %3225 = vst [vmem:[%s433 + $0x48] sm:$0xff] %v3193
        %3226 = vst [vmem:[%s433 + $0x50] sm:$0xff] %v3194
        %3227 = vst [vmem:[%s433 + $0x58] sm:$0xff] %v3195
        %3228 = vst [vmem:[%s433 + $0x60] sm:$0xff] %v3196
        %3229 = vst [vmem:[%s433 + $0x68] sm:$0xff] %v3197
        %3230 = vst [vmem:[%s433 + $0x70] sm:$0xff] %v3198
        %3231 = vst [vmem:[%s433 + $0x78] sm:$0xff] %v3199
        %3232 = vst [vmem:[%s433 + $0x80] sm:$0xff] %v3200
        %3233 = vst [vmem:[%s433 + $0x88] sm:$0xff] %v3201
        %3234 = vst [vmem:[%s433 + $0x90] sm:$0xff] %v3202
        %3235 = vst [vmem:[%s433 + $0x98] sm:$0xff] %v3203
        %3236 = vst [vmem:[%s433 + $0xa0] sm:$0xff] %v3204
        %3237 = vst [vmem:[%s433 + $0xa8] sm:$0xff] %v3205
        %3238 = vst [vmem:[%s433 + $0xb0] sm:$0xff] %v3206
        %3239 = vst [vmem:[%s433 + $0xb8] sm:$0xff] %v3207
        %3240 = vst [vmem:[%s433 + $0xc0] sm:$0xff] %v3208
        %3241 = vst [vmem:[%s433 + $0xc8] sm:$0xff] %v3209
        %3242 = vst [vmem:[%s433 + $0xd0] sm:$0xff] %v3210
        %3243 = vst [vmem:[%s433 + $0xd8] sm:$0xff] %v3211
        %3244 = vst [vmem:[%s433 + $0xe0] sm:$0xff] %v3212
        %3245 = vst [vmem:[%s433 + $0xe8] sm:$0xff] %v3213
        %3246 = vst [vmem:[%s433 + $0xf0] sm:$0xff] %v3214
        %3247 = vst [vmem:[%s433 + $0xf8] sm:$0xff] %v3215
        %s3248 = sand.u32 %s313, 1
        %s3249 = scalar_lea.sflag [#allocation4], %s3248
        %s3250 = sand.u32 %s313, 1
        %s3251 = smul.addr %s3250, 256
        %s3252 = scalar_lea.vmem [#allocation3], %s3251
        // Predicated region
        $region73: #{tpu_custom_call.1} parent=71 // pred_check
          %p3253 = pneg %p323
        $region74: #{tpu_custom_call.1} parent=71 // pred_check_branch
          %3255 = sbr.rel (%p3253) target = $region76
        $region75: #{tpu_custom_call.1} parent=71 // pred_region
          %s3257 = ssub.s32 4096, 4096
          %3258 = vsyncadd %s3249, %s3257
          %s3259 = smul.addr %s27, 32
          %s3260 = smul.addr %s3259, 128
          %s3261 = scalar_lea.hbm %s13, %s3260
          %s3262 = sshll.u32 %s3252, 4
          %s3263 = int_to_ptr.vmem [resolvable:$true] %s3262
          %3268 = dma.vmem_to_hbm [thread:$0]  %s3263, 4096, %s3261, %s3249, 256, 256, 16
        $region76: #{tpu_custom_call.1} parent=71 // pred_fallthru
          _
      $region72: #{tpu_custom_call.1} parent=5 // pred_fallthru
        _
      %p3269 = scmp.le.s32.totalorder 2, %s22
      // Predicated region
      $region77: #{tpu_custom_call.1} parent=5 // pred_check
        %p3270 = pneg %p3269
      $region78: #{tpu_custom_call.1} parent=5 // pred_check_branch
        %3272 = sbr.rel (%p3270) target = $region80
      $region79: #{tpu_custom_call.1} parent=5 // pred_region
        %s3273 = ssub.s32 %s22, 2
        // Predicated region
        $region81: #{tpu_custom_call.1} parent=79 // pred_check
          %p3274 = pneg %p329
        $region82: #{tpu_custom_call.1} parent=79 // pred_check_branch
          %3276 = sbr.rel (%p3274) target = $region84
        $region83: #{tpu_custom_call.1} parent=79 // pred_region
          %s3277 = sand.u32 %s314, 1
          %s3278 = scalar_lea.sflag [#allocation4], %s3277
          %s3279 = sand.u32 %s314, 1
          %s3280 = smul.addr %s3279, 256
          %s3281 = scalar_lea.vmem [#allocation3], %s3280
          %3282 = dma.done %s3278, 4096
        $region84: #{tpu_custom_call.1} parent=79 // pred_fallthru
          _
      $region80: #{tpu_custom_call.1} parent=5 // pred_fallthru
        _
    $region6: #{tpu_custom_call.1} parent=1 // loop_footer
      %s26 = sadd.s32 1, %s22
    $region7: #{tpu_custom_call.1} parent=1 // loop_footer_branch
      %21 = sbr.rel target = $region3
    $region8: #{tpu_custom_call.1} parent=1 // loop_exit
      _
    %3283 = vsyncpa [#allocation4], 1
    %s3284 = scalar_lea.sflag [#allocation4], 1
    %3285 = vsyncpa %s3284, 1

</llo_original>
